<compile_context>
chip_gen: v7x
topology: tpu7x:2x2x1
jax: 0.10.0
libtpu: 0.0.40
codegen_flags: <defaults>
</compile_context>

<pallas_src>
import functools

import jax
import jax.numpy as jnp
from jax import lax
from jax.experimental import pallas as pl
from jax.experimental.pallas import tpu as pltpu

# ---------------- model hyper-parameters (small, module-consistent) ----------------
VOCAB_SIZE = 128
EMBED_DIM = 128            # embedding_dim
FILTER_SIZES = (3, 4, 5)   # filter_sizes
NUM_FILTERS = 64           # num_filters[i] (same for each branch)
NUM_CLASSES = 10           # num_classes
PADDING_IDX = 3
MAX_NORM = 0.5
BATCH = 4
SEQ_LEN = 32

MAX_K = max(FILTER_SIZES)
CONV_WIDTH = 256                                     # 3*64 = 192 padded to 2*128 lanes
PAD_O = CONV_WIDTH - len(FILTER_SIZES) * NUM_FILTERS


def textcnn_kernel(ids_ref, emb_ref, wconv_ref, bconv_ref, wfc_ref, bfc_ref,
                   out_ref, *, batch, seq_len):
    """Single grid step, whole (tiny) batch resident in VMEM.

    ids_ref   : (MAX_K, B*L, 1) i32  slice j, row r  =  token id at flat position r + j
                                     (out-of-range rows hold VOCAB_SIZE -> all-zero row)
    emb_ref   : (V, E)          f32  embedding table (max_norm renorm pre-applied)
    wconv_ref : (MAX_K*E, 256)  bf16 conv taps stacked on K, branches stacked on N (0-pad)
    bconv_ref : (1, 256)        f32  conv biases (0-pad)
    wfc_ref   : (256, C)        f32  fc weight (rows >= 192 are zero)
    bfc_ref   : (1, C)          f32  fc bias
    out_ref   : (B, C)          f32  logits
    """
    nrows = batch * seq_len
    emb = emb_ref[...]                                               # (V, E) f32

    # ---- fused embedding gather + Conv1d: one exact one-hot gather matmul and one
    #      conv-tap matmul per tap, accumulated in f32 (MXU; FLOPs are trivial here) ----
    acc = jnp.zeros((nrows, CONV_WIDTH), jnp.float32)
    vocab_iota = lax.broadcasted_iota(jnp.int32, (nrows, VOCAB_SIZE), 1)
    for j in range(MAX_K):
        onehot = (ids_ref[j] == vocab_iota).astype(jnp.float32)     # (B*L, V)
        xj = jnp.dot(onehot, emb, preferred_element_type=jnp.float32)   # exact gather
        acc = acc + jnp.dot(xj.astype(jnp.bfloat16),
                            wconv_ref[pl.ds(j * EMBED_DIM, EMBED_DIM), :],
                            preferred_element_type=jnp.float32)

    # ---- bias + ReLU, then zero invalid window positions with an IN-KERNEL mask.
    #      ReLU output >= 0 and every branch has >= 1 valid position (L >= max k), so
    #      masking invalid positions to 0 keeps the per-branch time-max exact. ---------
    z = jnp.maximum(acc + bconv_ref[...], 0.0)
    row = lax.broadcasted_iota(jnp.int32, (nrows, CONV_WIDTH), 0)
    col = lax.broadcasted_iota(jnp.int32, (nrows, CONV_WIDTH), 1)
    if (seq_len & (seq_len - 1)) == 0:
        t_idx = jnp.bitwise_and(row, seq_len - 1)    # time index within each batch row
    else:
        t_idx = row % seq_len
    valid_len = jnp.zeros((nrows, CONV_WIDTH), jnp.int32)           # stays 0 on pad cols
    for i, k in enumerate(FILTER_SIZES):
        in_branch = (col >= i * NUM_FILTERS) & (col < (i + 1) * NUM_FILTERS)
        valid_len = jnp.where(in_branch, seq_len - k + 1, valid_len)
    z = jnp.where(t_idx < valid_len, z, 0.0)

    # ---- global max-pool over time per batch element, then one batched FC ------------
    pooled = jnp.max(z.reshape(batch, seq_len, CONV_WIDTH), axis=1)  # (B, 256)
    out_ref[...] = (jnp.dot(pooled, wfc_ref[...], preferred_element_type=jnp.float32)
                    + bfc_ref[...])


def pack_params(params):
    """One-time packing of the weights into MXU/lane-friendly layouts (hoisted out of the
    per-call path per the performance review)."""
    E, O = EMBED_DIM, NUM_FILTERS
    convs = params["convs"]
    wfc, bfc = params["fc"]

    # fused conv weight (MAX_K*E, 256): row block j = tap j of every branch (zero pad)
    blocks = []
    for j in range(MAX_K):
        cols = [convs[i][0][j] if j < k else jnp.zeros((E, O), jnp.float32)
                for i, k in enumerate(FILTER_SIZES)]
        cols.append(jnp.zeros((E, PAD_O), jnp.float32))
        blocks.append(jnp.concatenate(cols, axis=1))
    wconv = jnp.concatenate(blocks, axis=0).astype(jnp.bfloat16)          # (MAX_K*E, 256)

    bconv = jnp.concatenate([convs[i][1] for i in range(len(FILTER_SIZES))]
                            + [jnp.zeros((1, PAD_O), jnp.float32)], axis=1)  # (1, 256)
    wfc_pad = jnp.concatenate([wfc, jnp.zeros((PAD_O, wfc.shape[1]), jnp.float32)],
                              axis=0)                                     # (256, C)
    return {"embedding": params["embedding"],   # (V, E) f32, max_norm renorm baked in
            "wconv": wconv, "bconv": bconv, "wfc": wfc_pad, "bfc": bfc}


def textcnn_pallas(input_ids, packed):
    """input_ids: (B, L) int32 token ids. Returns logits (B, C). Fully fused forward."""
    B, L = input_ids.shape
    assert L >= MAX_K, "mask-to-zero max-pool needs >=1 valid position per branch"
    nrows = B * L
    C = packed["bfc"].shape[-1]

    # glue: per-tap shifted token ids (tiny int32). Out-of-range positions get the
    # sentinel VOCAB_SIZE (one-hot row of zeros); cross-batch bleed rows only ever land
    # on positions t >= L - k + 1, which the in-kernel mask zeroes, so results are exact.
    ids_flat = input_ids.reshape(nrows).astype(jnp.int32)
    pos = (jnp.arange(nrows, dtype=jnp.int32)[None, :]
           + jnp.arange(MAX_K, dtype=jnp.int32)[:, None])                # (MAX_K, B*L)
    ids_shift = jnp.where(pos < nrows, ids_flat[jnp.minimum(pos, nrows - 1)], VOCAB_SIZE)
    ids_shift = ids_shift.astype(jnp.int32)[..., None]                   # (MAX_K, B*L, 1)

    kernel = functools.partial(textcnn_kernel, batch=B, seq_len=L)
    return pl.pallas_call(
        kernel,
        out_shape=jax.ShapeDtypeStruct((B, C), jnp.float32),
        grid=(1,),     # latency-bound problem: one step, everything resident in VMEM
        in_specs=[
            pl.BlockSpec(ids_shift.shape, lambda i: (0, 0, 0)),
            pl.BlockSpec(packed["embedding"].shape, lambda i: (0, 0)),
            pl.BlockSpec(packed["wconv"].shape, lambda i: (0, 0)),
            pl.BlockSpec(packed["bconv"].shape, lambda i: (0, 0)),
            pl.BlockSpec(packed["wfc"].shape, lambda i: (0, 0)),
            pl.BlockSpec(packed["bfc"].shape, lambda i: (0, 0)),
        ],
        out_specs=pl.BlockSpec((B, C), lambda i: (0, 0)),
        compiler_params=pltpu.CompilerParams(dimension_semantics=("arbitrary",)),
    )(ids_shift, packed["embedding"], packed["wconv"], packed["bconv"],
      packed["wfc"], packed["bfc"])


def init_params(key):
    keys = jax.random.split(key, 9)
    # embedding table ~ N(0,1), padding_idx row zeroed, then max_norm renorm.
    # TODO(synk): PyTorch applies max_norm in-place per accessed row at forward time;
    # renorming the whole table once is output-equivalent for a forward pass.
    emb = jax.random.normal(keys[0], (VOCAB_SIZE, EMBED_DIM), jnp.float32)
    emb = emb.at[PADDING_IDX].set(0.0)
    norms = jnp.linalg.norm(emb, axis=1, keepdims=True)
    emb = emb * jnp.minimum(1.0, MAX_NORM / jnp.maximum(norms, 1e-7))

    convs = []
    for i, k in enumerate(FILTER_SIZES):
        # stored (k, E, O) so tap j multiplies x[t+j] directly (torch W[o,c,j] -> [j,c,o])
        w = 0.05 * jax.random.normal(keys[1 + 2 * i], (k, EMBED_DIM, NUM_FILTERS),
                                     jnp.float32)
        b = 0.05 * jax.random.normal(keys[2 + 2 * i], (1, NUM_FILTERS), jnp.float32)
        convs.append((w, b))

    wfc = 0.05 * jax.random.normal(keys[7], (len(FILTER_SIZES) * NUM_FILTERS,
                                             NUM_CLASSES), jnp.float32)
    bfc = 0.05 * jax.random.normal(keys[8], (1, NUM_CLASSES), jnp.float32)
    return {"embedding": emb, "convs": convs, "fc": (wfc, bfc)}


def reference_forward(input_ids, params):
    """Pure-JAX reference matching the PyTorch forward (eval mode)."""
    x = params["embedding"][input_ids]               # (B, L, E)
    pooled = []
    for (w, b), k in zip(params["convs"], FILTER_SIZES):
        L = x.shape[1]
        l_out = L - k + 1
        acc = jnp.zeros((x.shape[0], l_out, NUM_FILTERS), jnp.float32)
        for j in range(k):
            acc += jnp.einsum("ble,eo->blo", x[:, j:j + l_out, :], w[j])
        acc = jax.nn.relu(acc + b[None, :, :])
        pooled.append(jnp.max(acc, axis=1))          # (B, O)
    feats = jnp.concatenate(pooled, axis=1)          # (B, 3*O)
    # TODO(synk): nn.Dropout(p=0.5) is identity in eval mode; train-mode masking not implemented.
    wfc, bfc = params["fc"]
    return feats @ wfc + bfc


if __name__ == "__main__":
    key = jax.random.PRNGKey(0)
    k_param, k_ids = jax.random.split(key)
    params = init_params(k_param)
    packed = pack_params(params)      # one-time weight packing, outside the hot path

    input_ids = jax.random.randint(k_ids, (BATCH, SEQ_LEN), 0, VOCAB_SIZE,
                                   dtype=jnp.int32)

    forward = jax.jit(textcnn_pallas)
    logits = jax.block_until_ready(forward(input_ids, packed))

    ref = reference_forward(input_ids, params)
    assert logits.shape == (BATCH, NUM_CLASSES)
    # conv operands are bf16 on the MXU (f32 accumulate): loosen tolerance vs f32 reference
    assert jnp.allclose(logits, ref, atol=1e-2, rtol=1e-2), "mismatch vs reference"

    print("KERNEL_OK")
</pallas_src>

<mosaic_0001>
module attributes {stable_mosaic.version = 11 : i64} {
  func.func @textcnn_kernel(%arg0: i32, %arg1: memref<5x128x1xi32, #tpu.memory_space<vmem>>, %arg2: memref<128x128xf32, #tpu.memory_space<vmem>>, %arg3: memref<640x256xbf16, #tpu.memory_space<vmem>>, %arg4: memref<1x256xf32, #tpu.memory_space<vmem>>, %arg5: memref<256x10xf32, #tpu.memory_space<vmem>>, %arg6: memref<1x10xf32, #tpu.memory_space<vmem>>, %arg7: memref<4x10xf32, #tpu.memory_space<vmem>>) attributes {dimension_semantics = [#tpu.dimension_semantics<arbitrary>], iteration_bounds = array<i64: 1>, scalar_prefetch = 0 : i64, scratch_operands = 0 : i64, tpu.core_type = #tpu.core_type<tc>, window_params = [{pipeline_mode = #tpu.pipeline_mode<synchronous>, transform_indices = @transform_0, window_bounds = array<i64: 5, 128, 1>}, {pipeline_mode = #tpu.pipeline_mode<synchronous>, transform_indices = @transform_1, window_bounds = array<i64: 128, 128>}, {pipeline_mode = #tpu.pipeline_mode<synchronous>, transform_indices = @transform_2, window_bounds = array<i64: 640, 256>}, {pipeline_mode = #tpu.pipeline_mode<synchronous>, transform_indices = @transform_3, window_bounds = array<i64: 1, 256>}, {pipeline_mode = #tpu.pipeline_mode<synchronous>, transform_indices = @transform_4, window_bounds = array<i64: 256, 10>}, {pipeline_mode = #tpu.pipeline_mode<synchronous>, transform_indices = @transform_5, window_bounds = array<i64: 1, 10>}, {pipeline_mode = #tpu.pipeline_mode<synchronous>, transform_indices = @transform_6, window_bounds = array<i64: 4, 10>}]} {
    %c0 = arith.constant 0 : index
    %c0_0 = arith.constant 0 : index
    %0 = vector.load %arg2[%c0, %c0_0] : memref<128x128xf32, #tpu.memory_space<vmem>>, vector<128x128xf32>
    %cst = arith.constant 0.000000e+00 : f32
    %1 = vector.broadcast %cst : f32 to vector<128x256xf32>
    %2 = tpu.iota {dimensions = array<i32: 1>} : vector<128x128xi32>
    %c0_1 = arith.constant 0 : index
    %c0_2 = arith.constant 0 : index
    %c0_3 = arith.constant 0 : index
    %3 = vector.load %arg1[%c0_1, %c0_2, %c0_3] : memref<5x128x1xi32, #tpu.memory_space<vmem>>, vector<1x128x1xi32>
    %4 = vector.shape_cast %3 : vector<1x128x1xi32> to vector<128x1xi32>
    %5 = vector.broadcast %4 : vector<128x1xi32> to vector<128x128xi32>
    %6 = arith.cmpi eq, %5, %2 : vector<128x128xi32>
    %7 = arith.extui %6 : vector<128x128xi1> to vector<128x128xi32>
    %8 = arith.sitofp %7 : vector<128x128xi32> to vector<128x128xf32>
    %cst_4 = arith.constant dense<0.000000e+00> : vector<128x128xf32>
    %9 = tpu.matmul %8, %0, %cst_4 {dimension_numbers = #tpu.dot_dimension_numbers<[1], [0], [0], [1], [0, 0, 1, 1], [], []>} : vector<128x128xf32>, vector<128x128xf32>, vector<128x128xf32> -> vector<128x128xf32>
    %10 = arith.truncf %9 : vector<128x128xf32> to vector<128x128xbf16>
    %c0_5 = arith.constant 0 : index
    %c0_6 = arith.constant 0 : index
    %11 = vector.load %arg3[%c0_5, %c0_6] : memref<640x256xbf16, #tpu.memory_space<vmem>>, vector<128x256xbf16>
    %cst_7 = arith.constant dense<0.000000e+00> : vector<128x256xf32>
    %12 = tpu.matmul %10, %11, %cst_7 {dimension_numbers = #tpu.dot_dimension_numbers<[1], [0], [0], [1], [0, 0, 1, 1], [], []>} : vector<128x128xbf16>, vector<128x256xbf16>, vector<128x256xf32> -> vector<128x256xf32>
    %13 = arith.addf %1, %12 : vector<128x256xf32>
    %c1 = arith.constant 1 : index
    %c0_8 = arith.constant 0 : index
    %c0_9 = arith.constant 0 : index
    %14 = vector.load %arg1[%c1, %c0_8, %c0_9] : memref<5x128x1xi32, #tpu.memory_space<vmem>>, vector<1x128x1xi32>
    %15 = vector.shape_cast %14 : vector<1x128x1xi32> to vector<128x1xi32>
    %16 = vector.broadcast %15 : vector<128x1xi32> to vector<128x128xi32>
    %17 = arith.cmpi eq, %16, %2 : vector<128x128xi32>
    %18 = arith.extui %17 : vector<128x128xi1> to vector<128x128xi32>
    %19 = arith.sitofp %18 : vector<128x128xi32> to vector<128x128xf32>
    %cst_10 = arith.constant dense<0.000000e+00> : vector<128x128xf32>
    %20 = tpu.matmul %19, %0, %cst_10 {dimension_numbers = #tpu.dot_dimension_numbers<[1], [0], [0], [1], [0, 0, 1, 1], [], []>} : vector<128x128xf32>, vector<128x128xf32>, vector<128x128xf32> -> vector<128x128xf32>
    %21 = arith.truncf %20 : vector<128x128xf32> to vector<128x128xbf16>
    %c128 = arith.constant 128 : index
    %c0_11 = arith.constant 0 : index
    %22 = vector.load %arg3[%c128, %c0_11] : memref<640x256xbf16, #tpu.memory_space<vmem>>, vector<128x256xbf16>
    %cst_12 = arith.constant dense<0.000000e+00> : vector<128x256xf32>
    %23 = tpu.matmul %21, %22, %cst_12 {dimension_numbers = #tpu.dot_dimension_numbers<[1], [0], [0], [1], [0, 0, 1, 1], [], []>} : vector<128x128xbf16>, vector<128x256xbf16>, vector<128x256xf32> -> vector<128x256xf32>
    %24 = arith.addf %13, %23 : vector<128x256xf32>
    %c2 = arith.constant 2 : index
    %c0_13 = arith.constant 0 : index
    %c0_14 = arith.constant 0 : index
    %25 = vector.load %arg1[%c2, %c0_13, %c0_14] : memref<5x128x1xi32, #tpu.memory_space<vmem>>, vector<1x128x1xi32>
    %26 = vector.shape_cast %25 : vector<1x128x1xi32> to vector<128x1xi32>
    %27 = vector.broadcast %26 : vector<128x1xi32> to vector<128x128xi32>
    %28 = arith.cmpi eq, %27, %2 : vector<128x128xi32>
    %29 = arith.extui %28 : vector<128x128xi1> to vector<128x128xi32>
    %30 = arith.sitofp %29 : vector<128x128xi32> to vector<128x128xf32>
    %cst_15 = arith.constant dense<0.000000e+00> : vector<128x128xf32>
    %31 = tpu.matmul %30, %0, %cst_15 {dimension_numbers = #tpu.dot_dimension_numbers<[1], [0], [0], [1], [0, 0, 1, 1], [], []>} : vector<128x128xf32>, vector<128x128xf32>, vector<128x128xf32> -> vector<128x128xf32>
    %32 = arith.truncf %31 : vector<128x128xf32> to vector<128x128xbf16>
    %c256 = arith.constant 256 : index
    %c0_16 = arith.constant 0 : index
    %33 = vector.load %arg3[%c256, %c0_16] : memref<640x256xbf16, #tpu.memory_space<vmem>>, vector<128x256xbf16>
    %cst_17 = arith.constant dense<0.000000e+00> : vector<128x256xf32>
    %34 = tpu.matmul %32, %33, %cst_17 {dimension_numbers = #tpu.dot_dimension_numbers<[1], [0], [0], [1], [0, 0, 1, 1], [], []>} : vector<128x128xbf16>, vector<128x256xbf16>, vector<128x256xf32> -> vector<128x256xf32>
    %35 = arith.addf %24, %34 : vector<128x256xf32>
    %c3 = arith.constant 3 : index
    %c0_18 = arith.constant 0 : index
    %c0_19 = arith.constant 0 : index
    %36 = vector.load %arg1[%c3, %c0_18, %c0_19] : memref<5x128x1xi32, #tpu.memory_space<vmem>>, vector<1x128x1xi32>
    %37 = vector.shape_cast %36 : vector<1x128x1xi32> to vector<128x1xi32>
    %38 = vector.broadcast %37 : vector<128x1xi32> to vector<128x128xi32>
    %39 = arith.cmpi eq, %38, %2 : vector<128x128xi32>
    %40 = arith.extui %39 : vector<128x128xi1> to vector<128x128xi32>
    %41 = arith.sitofp %40 : vector<128x128xi32> to vector<128x128xf32>
    %cst_20 = arith.constant dense<0.000000e+00> : vector<128x128xf32>
    %42 = tpu.matmul %41, %0, %cst_20 {dimension_numbers = #tpu.dot_dimension_numbers<[1], [0], [0], [1], [0, 0, 1, 1], [], []>} : vector<128x128xf32>, vector<128x128xf32>, vector<128x128xf32> -> vector<128x128xf32>
    %43 = arith.truncf %42 : vector<128x128xf32> to vector<128x128xbf16>
    %c384 = arith.constant 384 : index
    %c0_21 = arith.constant 0 : index
    %44 = vector.load %arg3[%c384, %c0_21] : memref<640x256xbf16, #tpu.memory_space<vmem>>, vector<128x256xbf16>
    %cst_22 = arith.constant dense<0.000000e+00> : vector<128x256xf32>
    %45 = tpu.matmul %43, %44, %cst_22 {dimension_numbers = #tpu.dot_dimension_numbers<[1], [0], [0], [1], [0, 0, 1, 1], [], []>} : vector<128x128xbf16>, vector<128x256xbf16>, vector<128x256xf32> -> vector<128x256xf32>
    %46 = arith.addf %35, %45 : vector<128x256xf32>
    %c4 = arith.constant 4 : index
    %c0_23 = arith.constant 0 : index
    %c0_24 = arith.constant 0 : index
    %47 = vector.load %arg1[%c4, %c0_23, %c0_24] : memref<5x128x1xi32, #tpu.memory_space<vmem>>, vector<1x128x1xi32>
    %48 = vector.shape_cast %47 : vector<1x128x1xi32> to vector<128x1xi32>
    %49 = vector.broadcast %48 : vector<128x1xi32> to vector<128x128xi32>
    %50 = arith.cmpi eq, %49, %2 : vector<128x128xi32>
    %51 = arith.extui %50 : vector<128x128xi1> to vector<128x128xi32>
    %52 = arith.sitofp %51 : vector<128x128xi32> to vector<128x128xf32>
    %cst_25 = arith.constant dense<0.000000e+00> : vector<128x128xf32>
    %53 = tpu.matmul %52, %0, %cst_25 {dimension_numbers = #tpu.dot_dimension_numbers<[1], [0], [0], [1], [0, 0, 1, 1], [], []>} : vector<128x128xf32>, vector<128x128xf32>, vector<128x128xf32> -> vector<128x128xf32>
    %54 = arith.truncf %53 : vector<128x128xf32> to vector<128x128xbf16>
    %c512 = arith.constant 512 : index
    %c0_26 = arith.constant 0 : index
    %55 = vector.load %arg3[%c512, %c0_26] : memref<640x256xbf16, #tpu.memory_space<vmem>>, vector<128x256xbf16>
    %cst_27 = arith.constant dense<0.000000e+00> : vector<128x256xf32>
    %56 = tpu.matmul %54, %55, %cst_27 {dimension_numbers = #tpu.dot_dimension_numbers<[1], [0], [0], [1], [0, 0, 1, 1], [], []>} : vector<128x128xbf16>, vector<128x256xbf16>, vector<128x256xf32> -> vector<128x256xf32>
    %57 = arith.addf %46, %56 : vector<128x256xf32>
    %c0_28 = arith.constant 0 : index
    %c0_29 = arith.constant 0 : index
    %58 = vector.load %arg4[%c0_28, %c0_29] : memref<1x256xf32, #tpu.memory_space<vmem>>, vector<1x256xf32>
    %59 = vector.broadcast %58 : vector<1x256xf32> to vector<128x256xf32>
    %60 = arith.addf %57, %59 : vector<128x256xf32>
    %cst_30 = arith.constant 0.000000e+00 : f32
    %61 = vector.broadcast %cst_30 : f32 to vector<128x256xf32>
    %62 = arith.maximumf %60, %61 : vector<128x256xf32>
    %63 = tpu.iota {dimensions = array<i32: 0>} : vector<128x256xi32>
    %64 = tpu.iota {dimensions = array<i32: 1>} : vector<128x256xi32>
    %c31_i32 = arith.constant 31 : i32
    %65 = vector.broadcast %c31_i32 : i32 to vector<128x256xi32>
    %66 = arith.andi %63, %65 : vector<128x256xi32>
    %c0_i32 = arith.constant 0 : i32
    %67 = vector.broadcast %c0_i32 : i32 to vector<128x256xi32>
    %c0_i32_31 = arith.constant 0 : i32
    %68 = vector.broadcast %c0_i32_31 : i32 to vector<128x256xi32>
    %69 = arith.cmpi sge, %64, %68 : vector<128x256xi32>
    %c64_i32 = arith.constant 64 : i32
    %70 = vector.broadcast %c64_i32 : i32 to vector<128x256xi32>
    %71 = arith.cmpi slt, %64, %70 : vector<128x256xi32>
    %72 = arith.andi %69, %71 : vector<128x256xi1>
    %c30_i32 = arith.constant 30 : i32
    %73 = vector.broadcast %c30_i32 : i32 to vector<128x256xi32>
    %74 = arith.select %72, %73, %67 : vector<128x256xi1>, vector<128x256xi32>
    %c64_i32_32 = arith.constant 64 : i32
    %75 = vector.broadcast %c64_i32_32 : i32 to vector<128x256xi32>
    %76 = arith.cmpi sge, %64, %75 : vector<128x256xi32>
    %c128_i32 = arith.constant 128 : i32
    %77 = vector.broadcast %c128_i32 : i32 to vector<128x256xi32>
    %78 = arith.cmpi slt, %64, %77 : vector<128x256xi32>
    %79 = arith.andi %76, %78 : vector<128x256xi1>
    %c29_i32 = arith.constant 29 : i32
    %80 = vector.broadcast %c29_i32 : i32 to vector<128x256xi32>
    %81 = arith.select %79, %80, %74 : vector<128x256xi1>, vector<128x256xi32>
    %c128_i32_33 = arith.constant 128 : i32
    %82 = vector.broadcast %c128_i32_33 : i32 to vector<128x256xi32>
    %83 = arith.cmpi sge, %64, %82 : vector<128x256xi32>
    %c192_i32 = arith.constant 192 : i32
    %84 = vector.broadcast %c192_i32 : i32 to vector<128x256xi32>
    %85 = arith.cmpi slt, %64, %84 : vector<128x256xi32>
    %86 = arith.andi %83, %85 : vector<128x256xi1>
    %c28_i32 = arith.constant 28 : i32
    %87 = vector.broadcast %c28_i32 : i32 to vector<128x256xi32>
    %88 = arith.select %86, %87, %81 : vector<128x256xi1>, vector<128x256xi32>
    %89 = arith.cmpi slt, %66, %88 : vector<128x256xi32>
    %cst_34 = arith.constant 0.000000e+00 : f32
    %90 = vector.broadcast %cst_34 : f32 to vector<128x256xf32>
    %91 = arith.select %89, %62, %90 : vector<128x256xi1>, vector<128x256xf32>
    %92 = vector.shape_cast %91 : vector<128x256xf32> to vector<4x32x256xf32>
    %cst_35 = arith.constant dense<0xFF800000> : vector<4x256xf32>
    %93 = vector.multi_reduction <maximumf>, %92, %cst_35 [1] : vector<4x32x256xf32> to vector<4x256xf32>
    %c0_36 = arith.constant 0 : index
    %c0_37 = arith.constant 0 : index
    %94 = vector.load %arg5[%c0_36, %c0_37] : memref<256x10xf32, #tpu.memory_space<vmem>>, vector<256x10xf32>
    %cst_38 = arith.constant dense<0.000000e+00> : vector<4x10xf32>
    %95 = tpu.matmul %93, %94, %cst_38 {dimension_numbers = #tpu.dot_dimension_numbers<[1], [0], [0], [1], [0, 0, 1, 1], [], []>} : vector<4x256xf32>, vector<256x10xf32>, vector<4x10xf32> -> vector<4x10xf32>
    %c0_39 = arith.constant 0 : index
    %c0_40 = arith.constant 0 : index
    %96 = vector.load %arg6[%c0_39, %c0_40] : memref<1x10xf32, #tpu.memory_space<vmem>>, vector<1x10xf32>
    %97 = vector.broadcast %96 : vector<1x10xf32> to vector<4x10xf32>
    %98 = arith.addf %95, %97 : vector<4x10xf32>
    %c0_41 = arith.constant 0 : index
    %c0_42 = arith.constant 0 : index
    %99 = vector.load %arg7[%c0_41, %c0_42] : memref<4x10xf32, #tpu.memory_space<vmem>>, vector<4x10xf32>
    tpu.vector_store %arg7[%c0_41, %c0_42], %98 {strides = array<i32>} : memref<4x10xf32, #tpu.memory_space<vmem>>, vector<4x10xf32>,
    return
  }
  func.func @transform_0(%arg0: i32) -> (i32, i32, i32) {
    %c0_i32 = arith.constant 0 : i32
    %c0_i32_0 = arith.constant 0 : i32
    %c0_i32_1 = arith.constant 0 : i32
    %c0_i32_2 = arith.constant 0 : i32
    return %c0_i32, %c0_i32_0, %c0_i32_1 : i32, i32, i32
  }
  func.func @transform_1(%arg0: i32) -> (i32, i32) {
    %c0_i32 = arith.constant 0 : i32
    %c0_i32_0 = arith.constant 0 : i32
    %c0_i32_1 = arith.constant 0 : i32
    return %c0_i32, %c0_i32_0 : i32, i32
  }
  func.func @transform_2(%arg0: i32) -> (i32, i32) {
    %c0_i32 = arith.constant 0 : i32
    %c0_i32_0 = arith.constant 0 : i32
    %c0_i32_1 = arith.constant 0 : i32
    return %c0_i32, %c0_i32_0 : i32, i32
  }
  func.func @transform_3(%arg0: i32) -> (i32, i32) {
    %c0_i32 = arith.constant 0 : i32
    %c0_i32_0 = arith.constant 0 : i32
    %c0_i32_1 = arith.constant 0 : i32
    return %c0_i32, %c0_i32_0 : i32, i32
  }
  func.func @transform_4(%arg0: i32) -> (i32, i32) {
    %c0_i32 = arith.constant 0 : i32
    %c0_i32_0 = arith.constant 0 : i32
    %c0_i32_1 = arith.constant 0 : i32
    return %c0_i32, %c0_i32_0 : i32, i32
  }
  func.func @transform_5(%arg0: i32) -> (i32, i32) {
    %c0_i32 = arith.constant 0 : i32
    %c0_i32_0 = arith.constant 0 : i32
    %c0_i32_1 = arith.constant 0 : i32
    return %c0_i32, %c0_i32_0 : i32, i32
  }
  func.func @transform_6(%arg0: i32) -> (i32, i32) {
    %c0_i32 = arith.constant 0 : i32
    %c0_i32_0 = arith.constant 0 : i32
    %c0_i32_1 = arith.constant 0 : i32
    return %c0_i32, %c0_i32_0 : i32, i32
  }
}

</mosaic_0001>

<llo_original>
// kernel: textcnn_pallas.1
$region0: #{textcnn_pallas.1}
  #allocation0 [shape = 'u32[]', space=smem, size = 0x4, offset = 0x4, fixed_abs, tag = 'smem constant byte address 0x4 - core index']
  #allocation1 [shape = 'u32[144,128]{1,0:T(1,128)}', space=vmem, size = 0x12000, scoped, tag = 'internal scratch']
  %s0 = inlined_call_operand.vmem [shape: s32[5,128,1], index: 0, kind: input, shape index: {}]
  %s1 = inlined_call_operand.vmem [shape: f32[128,128], index: 1, kind: input, shape index: {}]
  %s2 = inlined_call_operand.vmem [shape: bf16[640,256], index: 2, kind: input, shape index: {}]
  %s3 = inlined_call_operand.vmem [shape: f32[1,256], index: 3, kind: input, shape index: {}]
  %s4 = inlined_call_operand.vmem [shape: f32[256,10], index: 4, kind: input, shape index: {}]
  %s5 = inlined_call_operand.vmem [shape: f32[1,10], index: 5, kind: input, shape index: {}]
  %s6 = inlined_call_operand.hbm [shape: f32[4,10], index: 6, kind: output, shape index: {}]
  %s7 = sld [smem:[#allocation0]]
  $region34: #{textcnn_pallas.1} parent=0
    _
  %s9 = ssub.s32 1, %s7
  %s10 = scalar_select 0, %s9, %s7
  $region1: #{textcnn_pallas.1} parent=0
    #allocation2 [shape = 'u8[2048]{0}', space=vmem, size = 0x800, scoped, tag = 'output window, operand 0, single buffered']
    #allocation3 [shape = 's32[1]{0}', space=sflag, size = 0x4, scoped, tag = 'scoped memory for textcnn_pallas.1']
    %11 = vsyncpa [#allocation3], 0
    // Predicated region
    $region2: #{textcnn_pallas.1} parent=1 // pred_check
      _
    $region3: #{textcnn_pallas.1} parent=1 // pred_check_branch
      %13 = sbr.rel (0) target = $region5
    $region4: #{textcnn_pallas.1} parent=1 // pred_region
      _
    $region5: #{textcnn_pallas.1} parent=1 // pred_fallthru
      _
    // Predicated region
    $region6: #{textcnn_pallas.1} parent=1 // pred_check
      _
    $region7: #{textcnn_pallas.1} parent=1 // pred_check_branch
      %15 = sbr.rel (0) target = $region9
    $region8: #{textcnn_pallas.1} parent=1 // pred_region
      _
    $region9: #{textcnn_pallas.1} parent=1 // pred_fallthru
      _
    // Predicated region
    $region10: #{textcnn_pallas.1} parent=1 // pred_check
      _
    $region11: #{textcnn_pallas.1} parent=1 // pred_check_branch
      %17 = sbr.rel (0) target = $region13
    $region12: #{textcnn_pallas.1} parent=1 // pred_region
      _
    $region13: #{textcnn_pallas.1} parent=1 // pred_fallthru
      _
    // Predicated region
    $region14: #{textcnn_pallas.1} parent=1 // pred_check
      _
    $region15: #{textcnn_pallas.1} parent=1 // pred_check_branch
      %19 = sbr.rel (0) target = $region17
    $region16: #{textcnn_pallas.1} parent=1 // pred_region
      _
    $region17: #{textcnn_pallas.1} parent=1 // pred_fallthru
      _
    // Predicated region
    $region18: #{textcnn_pallas.1} parent=1 // pred_check
      _
    $region19: #{textcnn_pallas.1} parent=1 // pred_check_branch
      %21 = sbr.rel (0) target = $region21
    $region20: #{textcnn_pallas.1} parent=1 // pred_region
      _
    $region21: #{textcnn_pallas.1} parent=1 // pred_fallthru
      _
    // Predicated region
    $region22: #{textcnn_pallas.1} parent=1 // pred_check
      _
    $region23: #{textcnn_pallas.1} parent=1 // pred_check_branch
      %23 = sbr.rel (0) target = $region25
    $region24: #{textcnn_pallas.1} parent=1 // pred_region
      _
    $region25: #{textcnn_pallas.1} parent=1 // pred_fallthru
      _
    %v25 = vld [vmem:[%s1] sm:$0xff]
    %v26 = vld [vmem:[%s1 + $0x8] sm:$0xff]
    %v27 = vld [vmem:[%s1 + $0x10] sm:$0xff]
    %v28 = vld [vmem:[%s1 + $0x18] sm:$0xff]
    %v29 = vld [vmem:[%s1 + $0x20] sm:$0xff]
    %v30 = vld [vmem:[%s1 + $0x28] sm:$0xff]
    %v31 = vld [vmem:[%s1 + $0x30] sm:$0xff]
    %v32 = vld [vmem:[%s1 + $0x38] sm:$0xff]
    %v33 = vld [vmem:[%s1 + $0x40] sm:$0xff]
    %v34 = vld [vmem:[%s1 + $0x48] sm:$0xff]
    %v35 = vld [vmem:[%s1 + $0x50] sm:$0xff]
    %v36 = vld [vmem:[%s1 + $0x58] sm:$0xff]
    %v37 = vld [vmem:[%s1 + $0x60] sm:$0xff]
    %v38 = vld [vmem:[%s1 + $0x68] sm:$0xff]
    %v39 = vld [vmem:[%s1 + $0x70] sm:$0xff]
    %v40 = vld [vmem:[%s1 + $0x78] sm:$0xff]
    %v41 = vlaneseq
    %v42 = vand.u32 %v41, 127
    %v43 = vld [vmem:[%s0] sm:$0xff]
    %v44 = vld [vmem:[%s0 + $0x8] sm:$0xff]
    %v45 = vld [vmem:[%s0 + $0x10] sm:$0xff]
    %v46 = vld [vmem:[%s0 + $0x18] sm:$0xff]
    %v47 = vld [vmem:[%s0 + $0x20] sm:$0xff]
    %v48 = vld [vmem:[%s0 + $0x28] sm:$0xff]
    %v49 = vld [vmem:[%s0 + $0x30] sm:$0xff]
    %v50 = vld [vmem:[%s0 + $0x38] sm:$0xff]
    %v51 = vld [vmem:[%s0 + $0x40] sm:$0xff]
    %v52 = vld [vmem:[%s0 + $0x48] sm:$0xff]
    %v53 = vld [vmem:[%s0 + $0x50] sm:$0xff]
    %v54 = vld [vmem:[%s0 + $0x58] sm:$0xff]
    %v55 = vld [vmem:[%s0 + $0x60] sm:$0xff]
    %v56 = vld [vmem:[%s0 + $0x68] sm:$0xff]
    %v57 = vld [vmem:[%s0 + $0x70] sm:$0xff]
    %v58 = vld [vmem:[%s0 + $0x78] sm:$0xff]
    %59 = vset.pattern.permute.xlu0 0
    %60 = vperm.xlu0 %59, %v43
    %v61 = vpop.permute.xlu0 %60
    %62 = vset.pattern.permute.xlu0 0
    %63 = vperm.xlu0 %62, %v44
    %v64 = vpop.permute.xlu0 %63
    %65 = vset.pattern.permute.xlu0 0
    %66 = vperm.xlu0 %65, %v45
    %v67 = vpop.permute.xlu0 %66
    %68 = vset.pattern.permute.xlu0 0
    %69 = vperm.xlu0 %68, %v46
    %v70 = vpop.permute.xlu0 %69
    %71 = vset.pattern.permute.xlu0 0
    %72 = vperm.xlu0 %71, %v47
    %v73 = vpop.permute.xlu0 %72
    %74 = vset.pattern.permute.xlu0 0
    %75 = vperm.xlu0 %74, %v48
    %v76 = vpop.permute.xlu0 %75
    %77 = vset.pattern.permute.xlu0 0
    %78 = vperm.xlu0 %77, %v49
    %v79 = vpop.permute.xlu0 %78
    %80 = vset.pattern.permute.xlu0 0
    %81 = vperm.xlu0 %80, %v50
    %v82 = vpop.permute.xlu0 %81
    %83 = vset.pattern.permute.xlu0 0
    %84 = vperm.xlu0 %83, %v51
    %v85 = vpop.permute.xlu0 %84
    %86 = vset.pattern.permute.xlu0 0
    %87 = vperm.xlu0 %86, %v52
    %v88 = vpop.permute.xlu0 %87
    %89 = vset.pattern.permute.xlu0 0
    %90 = vperm.xlu0 %89, %v53
    %v91 = vpop.permute.xlu0 %90
    %92 = vset.pattern.permute.xlu0 0
    %93 = vperm.xlu0 %92, %v54
    %v94 = vpop.permute.xlu0 %93
    %95 = vset.pattern.permute.xlu0 0
    %96 = vperm.xlu0 %95, %v55
    %v97 = vpop.permute.xlu0 %96
    %98 = vset.pattern.permute.xlu0 0
    %99 = vperm.xlu0 %98, %v56
    %v100 = vpop.permute.xlu0 %99
    %101 = vset.pattern.permute.xlu0 0
    %102 = vperm.xlu0 %101, %v57
    %v103 = vpop.permute.xlu0 %102
    %104 = vset.pattern.permute.xlu0 0
    %105 = vperm.xlu0 %104, %v58
    %v106 = vpop.permute.xlu0 %105
    %vm107 = vcmp.eq.s32.totalorder %v61, %v42
    %vm108 = vcmp.eq.s32.totalorder %v64, %v42
    %vm109 = vcmp.eq.s32.totalorder %v67, %v42
    %vm110 = vcmp.eq.s32.totalorder %v70, %v42
    %vm111 = vcmp.eq.s32.totalorder %v73, %v42
    %vm112 = vcmp.eq.s32.totalorder %v76, %v42
    %vm113 = vcmp.eq.s32.totalorder %v79, %v42
    %vm114 = vcmp.eq.s32.totalorder %v82, %v42
    %vm115 = vcmp.eq.s32.totalorder %v85, %v42
    %vm116 = vcmp.eq.s32.totalorder %v88, %v42
    %vm117 = vcmp.eq.s32.totalorder %v91, %v42
    %vm118 = vcmp.eq.s32.totalorder %v94, %v42
    %vm119 = vcmp.eq.s32.totalorder %v97, %v42
    %vm120 = vcmp.eq.s32.totalorder %v100, %v42
    %vm121 = vcmp.eq.s32.totalorder %v103, %v42
    %vm122 = vcmp.eq.s32.totalorder %v106, %v42
    %v123 = vsel %vm107, 1, 0
    %v124 = vsel %vm108, 1, 0
    %v125 = vsel %vm109, 1, 0
    %v126 = vsel %vm110, 1, 0
    %v127 = vsel %vm111, 1, 0
    %v128 = vsel %vm112, 1, 0
    %v129 = vsel %vm113, 1, 0
    %v130 = vsel %vm114, 1, 0
    %v131 = vsel %vm115, 1, 0
    %v132 = vsel %vm116, 1, 0
    %v133 = vsel %vm117, 1, 0
    %v134 = vsel %vm118, 1, 0
    %v135 = vsel %vm119, 1, 0
    %v136 = vsel %vm120, 1, 0
    %v137 = vsel %vm121, 1, 0
    %v138 = vsel %vm122, 1, 0
    %v139 = vcvt.s32.f32 %v123
    %v140 = vcvt.s32.f32 %v124
    %v141 = vcvt.s32.f32 %v125
    %v142 = vcvt.s32.f32 %v126
    %v143 = vcvt.s32.f32 %v127
    %v144 = vcvt.s32.f32 %v128
    %v145 = vcvt.s32.f32 %v129
    %v146 = vcvt.s32.f32 %v130
    %v147 = vcvt.s32.f32 %v131
    %v148 = vcvt.s32.f32 %v132
    %v149 = vcvt.s32.f32 %v133
    %v150 = vcvt.s32.f32 %v134
    %v151 = vcvt.s32.f32 %v135
    %v152 = vcvt.s32.f32 %v136
    %v153 = vcvt.s32.f32 %v137
    %v154 = vcvt.s32.f32 %v138
    %155 = vmatprep.subr.mxu0 0.0
    %156 = vmatpush1.msra.mxu0 %v25
    %157 = vmatprep.subr.mxu0 0.0
    %158 = vmatpush1.msra.mxu0 %v26
    %159 = vmatprep.subr.mxu0 0.0
    %160 = vmatpush1.msra.mxu0 %v27
    %161 = vmatprep.subr.mxu0 0.0
    %162 = vmatpush1.msra.mxu0 %v28
    %163 = vmatprep.subr.mxu0 0.0
    %164 = vmatpush1.msra.mxu0 %v29
    %165 = vmatprep.subr.mxu0 0.0
    %166 = vmatpush1.msra.mxu0 %v30
    %167 = vmatprep.subr.mxu0 0.0
    %168 = vmatpush1.msra.mxu0 %v31
    %169 = vmatprep.subr.mxu0 0.0
    %170 = vmatpush1.msra.mxu0 %v32
    %171 = vmatprep.subr.mxu0 0.0
    %172 = vmatpush1.msra.mxu0 %v33
    %173 = vmatprep.subr.mxu0 0.0
    %174 = vmatpush1.msra.mxu0 %v34
    %175 = vmatprep.subr.mxu0 0.0
    %176 = vmatpush1.msra.mxu0 %v35
    %177 = vmatprep.subr.mxu0 0.0
    %178 = vmatpush1.msra.mxu0 %v36
    %179 = vmatprep.subr.mxu0 0.0
    %180 = vmatpush1.msra.mxu0 %v37
    %181 = vmatprep.subr.mxu0 0.0
    %182 = vmatpush1.msra.mxu0 %v38
    %183 = vmatprep.subr.mxu0 0.0
    %184 = vmatpush1.msra.mxu0 %v39
    %185 = vmatprep.subr.mxu0 0.0
    %186 = vmatpush1.msra.mxu0 %v40
    %187 = vmatprep.subr.mxu0 0.0
    %188 = vmatpush1.msra.mxu0 0.0
    %189 = vmatprep.subr.mxu0 0.0
    %190 = vmatpush1.msra.mxu0 0.0
    %191 = vmatprep.subr.mxu0 0.0
    %192 = vmatpush1.msra.mxu0 0.0
    %193 = vmatprep.subr.mxu0 0.0
    %194 = vmatpush1.msra.mxu0 0.0
    %195 = vmatprep.subr.mxu0 0.0
    %196 = vmatpush1.msra.mxu0 0.0
    %197 = vmatprep.subr.mxu0 0.0
    %198 = vmatpush1.msra.mxu0 0.0
    %199 = vmatprep.subr.mxu0 0.0
    %200 = vmatpush1.msra.mxu0 0.0
    %201 = vmatprep.subr.mxu0 0.0
    %202 = vmatpush1.msra.mxu0 0.0
    %203 = vmatprep.subr.mxu0 0.0
    %204 = vmatpush1.msra.mxu0 0.0
    %205 = vmatprep.subr.mxu0 0.0
    %206 = vmatpush1.msra.mxu0 0.0
    %207 = vmatprep.subr.mxu0 0.0
    %208 = vmatpush1.msra.mxu0 0.0
    %209 = vmatprep.subr.mxu0 0.0
    %210 = vmatpush1.msra.mxu0 0.0
    %211 = vmatprep.subr.mxu0 0.0
    %212 = vmatpush1.msra.mxu0 0.0
    %213 = vmatprep.subr.mxu0 0.0
    %214 = vmatpush1.msra.mxu0 0.0
    %215 = vmatprep.subr.mxu0 0.0
    %216 = vmatpush1.msra.mxu0 0.0
    %217 = vmatprep.subr.mxu0 0.0
    %218 = vmatpush1.msra.mxu0 0.0
    %219 = vmatprep.mubr.f32.mxu0 0.0
    %220 = vmatmul.mubr.f32.gmra.mrb[0].mxu0 %v139
    %v221 = vpop.f32.mrb[0].mxu0
    %v222 = vadd.f32 0.0, %v221
    %v223 = vpop.f32.mrb[0].mxu0
    %224 = vmatprep.mubr.f32.mxu0 0.0
    %225 = vmatmul.mubr.f32.gmra.mrb[0].mxu0 %v140
    %v226 = vpop.f32.mrb[0].mxu0
    %v227 = vadd.f32 0.0, %v226
    %v228 = vpop.f32.mrb[0].mxu0
    %229 = vmatprep.mubr.f32.mxu0 0.0
    %230 = vmatmul.mubr.f32.gmra.mrb[0].mxu0 %v141
    %v231 = vpop.f32.mrb[0].mxu0
    %v232 = vadd.f32 0.0, %v231
    %v233 = vpop.f32.mrb[0].mxu0
    %234 = vmatprep.mubr.f32.mxu0 0.0
    %235 = vmatmul.mubr.f32.gmra.mrb[0].mxu0 %v142
    %v236 = vpop.f32.mrb[0].mxu0
    %v237 = vadd.f32 0.0, %v236
    %v238 = vpop.f32.mrb[0].mxu0
    %239 = vmatprep.mubr.f32.mxu0 0.0
    %240 = vmatmul.mubr.f32.gmra.mrb[0].mxu0 %v143
    %v241 = vpop.f32.mrb[0].mxu0
    %v242 = vadd.f32 0.0, %v241
    %v243 = vpop.f32.mrb[0].mxu0
    %244 = vmatprep.mubr.f32.mxu0 0.0
    %245 = vmatmul.mubr.f32.gmra.mrb[0].mxu0 %v144
    %v246 = vpop.f32.mrb[0].mxu0
    %v247 = vadd.f32 0.0, %v246
    %v248 = vpop.f32.mrb[0].mxu0
    %249 = vmatprep.mubr.f32.mxu0 0.0
    %250 = vmatmul.mubr.f32.gmra.mrb[0].mxu0 %v145
    %v251 = vpop.f32.mrb[0].mxu0
    %v252 = vadd.f32 0.0, %v251
    %v253 = vpop.f32.mrb[0].mxu0
    %254 = vmatprep.mubr.f32.mxu0 0.0
    %255 = vmatmul.mubr.f32.gmra.mrb[0].mxu0 %v146
    %v256 = vpop.f32.mrb[0].mxu0
    %v257 = vadd.f32 0.0, %v256
    %v258 = vpop.f32.mrb[0].mxu0
    %259 = vmatprep.mubr.f32.mxu0 0.0
    %260 = vmatmul.mubr.f32.gmra.mrb[0].mxu0 %v147
    %v261 = vpop.f32.mrb[0].mxu0
    %v262 = vadd.f32 0.0, %v261
    %v263 = vpop.f32.mrb[0].mxu0
    %264 = vmatprep.mubr.f32.mxu0 0.0
    %265 = vmatmul.mubr.f32.gmra.mrb[0].mxu0 %v148
    %v266 = vpop.f32.mrb[0].mxu0
    %v267 = vadd.f32 0.0, %v266
    %v268 = vpop.f32.mrb[0].mxu0
    %269 = vmatprep.mubr.f32.mxu0 0.0
    %270 = vmatmul.mubr.f32.gmra.mrb[0].mxu0 %v149
    %v271 = vpop.f32.mrb[0].mxu0
    %v272 = vadd.f32 0.0, %v271
    %v273 = vpop.f32.mrb[0].mxu0
    %274 = vmatprep.mubr.f32.mxu0 0.0
    %275 = vmatmul.mubr.f32.gmra.mrb[0].mxu0 %v150
    %v276 = vpop.f32.mrb[0].mxu0
    %v277 = vadd.f32 0.0, %v276
    %v278 = vpop.f32.mrb[0].mxu0
    %279 = vmatprep.mubr.f32.mxu0 0.0
    %280 = vmatmul.mubr.f32.gmra.mrb[0].mxu0 %v151
    %v281 = vpop.f32.mrb[0].mxu0
    %v282 = vadd.f32 0.0, %v281
    %v283 = vpop.f32.mrb[0].mxu0
    %284 = vmatprep.mubr.f32.mxu0 0.0
    %285 = vmatmul.mubr.f32.gmra.mrb[0].mxu0 %v152
    %v286 = vpop.f32.mrb[0].mxu0
    %v287 = vadd.f32 0.0, %v286
    %v288 = vpop.f32.mrb[0].mxu0
    %289 = vmatprep.mubr.f32.mxu0 0.0
    %290 = vmatmul.mubr.f32.gmra.mrb[0].mxu0 %v153
    %v291 = vpop.f32.mrb[0].mxu0
    %v292 = vadd.f32 0.0, %v291
    %v293 = vpop.f32.mrb[0].mxu0
    %294 = vmatprep.mubr.f32.mxu0 0.0
    %295 = vmatmul.mubr.f32.gmra.mrb[0].mxu0 %v154
    %v296 = vpop.f32.mrb[0].mxu0
    %v297 = vadd.f32 0.0, %v296
    %v298 = vpop.f32.mrb[0].mxu0
    %299 = vdwg.mxu0
    %v300 = vpack.c.bf16 %v227, %v222
    %v301 = vpack.c.bf16 %v237, %v232
    %v302 = vpack.c.bf16 %v247, %v242
    %v303 = vpack.c.bf16 %v257, %v252
    %v304 = vpack.c.bf16 %v267, %v262
    %v305 = vpack.c.bf16 %v277, %v272
    %v306 = vpack.c.bf16 %v287, %v282
    %v307 = vpack.c.bf16 %v297, %v292
    %v308 = vld [vmem:[%s2] sm:$0xff]
    %v309 = vld [vmem:[%s2 + $0x8] sm:$0xff]
    %v310 = vld [vmem:[%s2 + $0x10] sm:$0xff]
    %v311 = vld [vmem:[%s2 + $0x18] sm:$0xff]
    %v312 = vld [vmem:[%s2 + $0x20] sm:$0xff]
    %v313 = vld [vmem:[%s2 + $0x28] sm:$0xff]
    %v314 = vld [vmem:[%s2 + $0x30] sm:$0xff]
    %v315 = vld [vmem:[%s2 + $0x38] sm:$0xff]
    %v316 = vld [vmem:[%s2 + $0x40] sm:$0xff]
    %v317 = vld [vmem:[%s2 + $0x48] sm:$0xff]
    %v318 = vld [vmem:[%s2 + $0x50] sm:$0xff]
    %v319 = vld [vmem:[%s2 + $0x58] sm:$0xff]
    %v320 = vld [vmem:[%s2 + $0x60] sm:$0xff]
    %v321 = vld [vmem:[%s2 + $0x68] sm:$0xff]
    %v322 = vld [vmem:[%s2 + $0x70] sm:$0xff]
    %v323 = vld [vmem:[%s2 + $0x78] sm:$0xff]
    %s324 = scalar_lea.vmem %s0, 128
    %v325 = vld [vmem:[%s324] sm:$0xff]
    %v326 = vld [vmem:[%s324 + $0x8] sm:$0xff]
    %v327 = vld [vmem:[%s324 + $0x10] sm:$0xff]
    %v328 = vld [vmem:[%s324 + $0x18] sm:$0xff]
    %v329 = vld [vmem:[%s324 + $0x20] sm:$0xff]
    %v330 = vld [vmem:[%s324 + $0x28] sm:$0xff]
    %v331 = vld [vmem:[%s324 + $0x30] sm:$0xff]
    %v332 = vld [vmem:[%s324 + $0x38] sm:$0xff]
    %v333 = vld [vmem:[%s324 + $0x40] sm:$0xff]
    %v334 = vld [vmem:[%s324 + $0x48] sm:$0xff]
    %v335 = vld [vmem:[%s324 + $0x50] sm:$0xff]
    %v336 = vld [vmem:[%s324 + $0x58] sm:$0xff]
    %v337 = vld [vmem:[%s324 + $0x60] sm:$0xff]
    %v338 = vld [vmem:[%s324 + $0x68] sm:$0xff]
    %v339 = vld [vmem:[%s324 + $0x70] sm:$0xff]
    %v340 = vld [vmem:[%s324 + $0x78] sm:$0xff]
    %341 = vset.pattern.permute.xlu0 0
    %342 = vperm.xlu0 %341, %v325
    %v343 = vpop.permute.xlu0 %342
    %344 = vset.pattern.permute.xlu0 0
    %345 = vperm.xlu0 %344, %v326
    %v346 = vpop.permute.xlu0 %345
    %347 = vset.pattern.permute.xlu0 0
    %348 = vperm.xlu0 %347, %v327
    %v349 = vpop.permute.xlu0 %348
    %350 = vset.pattern.permute.xlu0 0
    %351 = vperm.xlu0 %350, %v328
    %v352 = vpop.permute.xlu0 %351
    %353 = vset.pattern.permute.xlu0 0
    %354 = vperm.xlu0 %353, %v329
    %v355 = vpop.permute.xlu0 %354
    %356 = vset.pattern.permute.xlu0 0
    %357 = vperm.xlu0 %356, %v330
    %v358 = vpop.permute.xlu0 %357
    %359 = vset.pattern.permute.xlu0 0
    %360 = vperm.xlu0 %359, %v331
    %v361 = vpop.permute.xlu0 %360
    %362 = vset.pattern.permute.xlu0 0
    %363 = vperm.xlu0 %362, %v332
    %v364 = vpop.permute.xlu0 %363
    %365 = vset.pattern.permute.xlu0 0
    %366 = vperm.xlu0 %365, %v333
    %v367 = vpop.permute.xlu0 %366
    %368 = vset.pattern.permute.xlu0 0
    %369 = vperm.xlu0 %368, %v334
    %v370 = vpop.permute.xlu0 %369
    %371 = vset.pattern.permute.xlu0 0
    %372 = vperm.xlu0 %371, %v335
    %v373 = vpop.permute.xlu0 %372
    %374 = vset.pattern.permute.xlu0 0
    %375 = vperm.xlu0 %374, %v336
    %v376 = vpop.permute.xlu0 %375
    %377 = vset.pattern.permute.xlu0 0
    %378 = vperm.xlu0 %377, %v337
    %v379 = vpop.permute.xlu0 %378
    %380 = vset.pattern.permute.xlu0 0
    %381 = vperm.xlu0 %380, %v338
    %v382 = vpop.permute.xlu0 %381
    %383 = vset.pattern.permute.xlu0 0
    %384 = vperm.xlu0 %383, %v339
    %v385 = vpop.permute.xlu0 %384
    %386 = vset.pattern.permute.xlu0 0
    %387 = vperm.xlu0 %386, %v340
    %v388 = vpop.permute.xlu0 %387
    %vm389 = vcmp.eq.s32.totalorder %v343, %v42
    %vm390 = vcmp.eq.s32.totalorder %v346, %v42
    %vm391 = vcmp.eq.s32.totalorder %v349, %v42
    %vm392 = vcmp.eq.s32.totalorder %v352, %v42
    %vm393 = vcmp.eq.s32.totalorder %v355, %v42
    %vm394 = vcmp.eq.s32.totalorder %v358, %v42
    %vm395 = vcmp.eq.s32.totalorder %v361, %v42
    %vm396 = vcmp.eq.s32.totalorder %v364, %v42
    %vm397 = vcmp.eq.s32.totalorder %v367, %v42
    %vm398 = vcmp.eq.s32.totalorder %v370, %v42
    %vm399 = vcmp.eq.s32.totalorder %v373, %v42
    %vm400 = vcmp.eq.s32.totalorder %v376, %v42
    %vm401 = vcmp.eq.s32.totalorder %v379, %v42
    %vm402 = vcmp.eq.s32.totalorder %v382, %v42
    %vm403 = vcmp.eq.s32.totalorder %v385, %v42
    %vm404 = vcmp.eq.s32.totalorder %v388, %v42
    %v405 = vsel %vm389, 1, 0
    %v406 = vsel %vm390, 1, 0
    %v407 = vsel %vm391, 1, 0
    %v408 = vsel %vm392, 1, 0
    %v409 = vsel %vm393, 1, 0
    %v410 = vsel %vm394, 1, 0
    %v411 = vsel %vm395, 1, 0
    %v412 = vsel %vm396, 1, 0
    %v413 = vsel %vm397, 1, 0
    %v414 = vsel %vm398, 1, 0
    %v415 = vsel %vm399, 1, 0
    %v416 = vsel %vm400, 1, 0
    %v417 = vsel %vm401, 1, 0
    %v418 = vsel %vm402, 1, 0
    %v419 = vsel %vm403, 1, 0
    %v420 = vsel %vm404, 1, 0
    %v421 = vcvt.s32.f32 %v405
    %v422 = vcvt.s32.f32 %v406
    %v423 = vcvt.s32.f32 %v407
    %v424 = vcvt.s32.f32 %v408
    %v425 = vcvt.s32.f32 %v409
    %v426 = vcvt.s32.f32 %v410
    %v427 = vcvt.s32.f32 %v411
    %v428 = vcvt.s32.f32 %v412
    %v429 = vcvt.s32.f32 %v413
    %v430 = vcvt.s32.f32 %v414
    %v431 = vcvt.s32.f32 %v415
    %v432 = vcvt.s32.f32 %v416
    %v433 = vcvt.s32.f32 %v417
    %v434 = vcvt.s32.f32 %v418
    %v435 = vcvt.s32.f32 %v419
    %v436 = vcvt.s32.f32 %v420
    %437 = vmatprep.subr.mxu0 0.0
    %438 = vmatpush1.msra.mxu0 %v25
    %439 = vmatprep.subr.mxu0 0.0
    %440 = vmatpush1.msra.mxu0 %v26
    %441 = vmatprep.subr.mxu0 0.0
    %442 = vmatpush1.msra.mxu0 %v27
    %443 = vmatprep.subr.mxu0 0.0
    %444 = vmatpush1.msra.mxu0 %v28
    %445 = vmatprep.subr.mxu0 0.0
    %446 = vmatpush1.msra.mxu0 %v29
    %447 = vmatprep.subr.mxu0 0.0
    %448 = vmatpush1.msra.mxu0 %v30
    %449 = vmatprep.subr.mxu0 0.0
    %450 = vmatpush1.msra.mxu0 %v31
    %451 = vmatprep.subr.mxu0 0.0
    %452 = vmatpush1.msra.mxu0 %v32
    %453 = vmatprep.subr.mxu0 0.0
    %454 = vmatpush1.msra.mxu0 %v33
    %455 = vmatprep.subr.mxu0 0.0
    %456 = vmatpush1.msra.mxu0 %v34
    %457 = vmatprep.subr.mxu0 0.0
    %458 = vmatpush1.msra.mxu0 %v35
    %459 = vmatprep.subr.mxu0 0.0
    %460 = vmatpush1.msra.mxu0 %v36
    %461 = vmatprep.subr.mxu0 0.0
    %462 = vmatpush1.msra.mxu0 %v37
    %463 = vmatprep.subr.mxu0 0.0
    %464 = vmatpush1.msra.mxu0 %v38
    %465 = vmatprep.subr.mxu0 0.0
    %466 = vmatpush1.msra.mxu0 %v39
    %467 = vmatprep.subr.mxu0 0.0
    %468 = vmatpush1.msra.mxu0 %v40
    %469 = vmatprep.subr.mxu0 0.0
    %470 = vmatpush1.msra.mxu0 0.0
    %471 = vmatprep.subr.mxu0 0.0
    %472 = vmatpush1.msra.mxu0 0.0
    %473 = vmatprep.subr.mxu0 0.0
    %474 = vmatpush1.msra.mxu0 0.0
    %475 = vmatprep.subr.mxu0 0.0
    %476 = vmatpush1.msra.mxu0 0.0
    %477 = vmatprep.subr.mxu0 0.0
    %478 = vmatpush1.msra.mxu0 0.0
    %479 = vmatprep.subr.mxu0 0.0
    %480 = vmatpush1.msra.mxu0 0.0
    %481 = vmatprep.subr.mxu0 0.0
    %482 = vmatpush1.msra.mxu0 0.0
    %483 = vmatprep.subr.mxu0 0.0
    %484 = vmatpush1.msra.mxu0 0.0
    %485 = vmatprep.subr.mxu0 0.0
    %486 = vmatpush1.msra.mxu0 0.0
    %487 = vmatprep.subr.mxu0 0.0
    %488 = vmatpush1.msra.mxu0 0.0
    %489 = vmatprep.subr.mxu0 0.0
    %490 = vmatpush1.msra.mxu0 0.0
    %491 = vmatprep.subr.mxu0 0.0
    %492 = vmatpush1.msra.mxu0 0.0
    %493 = vmatprep.subr.mxu0 0.0
    %494 = vmatpush1.msra.mxu0 0.0
    %495 = vmatprep.subr.mxu0 0.0
    %496 = vmatpush1.msra.mxu0 0.0
    %497 = vmatprep.subr.mxu0 0.0
    %498 = vmatpush1.msra.mxu0 0.0
    %499 = vmatprep.subr.mxu0 0.0
    %500 = vmatpush1.msra.mxu0 0.0
    %501 = vmatprep.mubr.f32.mxu0 0.0
    %502 = vmatmul.mubr.f32.gmra.mrb[0].mxu0 %v421
    %v503 = vpop.f32.mrb[0].mxu0
    %v504 = vadd.f32 0.0, %v503
    %v505 = vpop.f32.mrb[0].mxu0
    %506 = vmatprep.mubr.f32.mxu0 0.0
    %507 = vmatmul.mubr.f32.gmra.mrb[0].mxu0 %v422
    %v508 = vpop.f32.mrb[0].mxu0
    %v509 = vadd.f32 0.0, %v508
    %v510 = vpop.f32.mrb[0].mxu0
    %511 = vmatprep.mubr.f32.mxu0 0.0
    %512 = vmatmul.mubr.f32.gmra.mrb[0].mxu0 %v423
    %v513 = vpop.f32.mrb[0].mxu0
    %v514 = vadd.f32 0.0, %v513
    %v515 = vpop.f32.mrb[0].mxu0
    %516 = vmatprep.mubr.f32.mxu0 0.0
    %517 = vmatmul.mubr.f32.gmra.mrb[0].mxu0 %v424
    %v518 = vpop.f32.mrb[0].mxu0
    %v519 = vadd.f32 0.0, %v518
    %v520 = vpop.f32.mrb[0].mxu0
    %521 = vmatprep.mubr.f32.mxu0 0.0
    %522 = vmatmul.mubr.f32.gmra.mrb[0].mxu0 %v425
    %v523 = vpop.f32.mrb[0].mxu0
    %v524 = vadd.f32 0.0, %v523
    %v525 = vpop.f32.mrb[0].mxu0
    %526 = vmatprep.mubr.f32.mxu0 0.0
    %527 = vmatmul.mubr.f32.gmra.mrb[0].mxu0 %v426
    %v528 = vpop.f32.mrb[0].mxu0
    %v529 = vadd.f32 0.0, %v528
    %v530 = vpop.f32.mrb[0].mxu0
    %531 = vmatprep.mubr.f32.mxu0 0.0
    %532 = vmatmul.mubr.f32.gmra.mrb[0].mxu0 %v427
    %v533 = vpop.f32.mrb[0].mxu0
    %v534 = vadd.f32 0.0, %v533
    %v535 = vpop.f32.mrb[0].mxu0
    %536 = vmatprep.mubr.f32.mxu0 0.0
    %537 = vmatmul.mubr.f32.gmra.mrb[0].mxu0 %v428
    %v538 = vpop.f32.mrb[0].mxu0
    %v539 = vadd.f32 0.0, %v538
    %v540 = vpop.f32.mrb[0].mxu0
    %541 = vmatprep.mubr.f32.mxu0 0.0
    %542 = vmatmul.mubr.f32.gmra.mrb[0].mxu0 %v429
    %v543 = vpop.f32.mrb[0].mxu0
    %v544 = vadd.f32 0.0, %v543
    %v545 = vpop.f32.mrb[0].mxu0
    %546 = vmatprep.mubr.f32.mxu0 0.0
    %547 = vmatmul.mubr.f32.gmra.mrb[0].mxu0 %v430
    %v548 = vpop.f32.mrb[0].mxu0
    %v549 = vadd.f32 0.0, %v548
    %v550 = vpop.f32.mrb[0].mxu0
    %551 = vmatprep.mubr.f32.mxu0 0.0
    %552 = vmatmul.mubr.f32.gmra.mrb[0].mxu0 %v431
    %v553 = vpop.f32.mrb[0].mxu0
    %v554 = vadd.f32 0.0, %v553
    %v555 = vpop.f32.mrb[0].mxu0
    %556 = vmatprep.mubr.f32.mxu0 0.0
    %557 = vmatmul.mubr.f32.gmra.mrb[0].mxu0 %v432
    %v558 = vpop.f32.mrb[0].mxu0
    %v559 = vadd.f32 0.0, %v558
    %v560 = vpop.f32.mrb[0].mxu0
    %561 = vmatprep.mubr.f32.mxu0 0.0
    %562 = vmatmul.mubr.f32.gmra.mrb[0].mxu0 %v433
    %v563 = vpop.f32.mrb[0].mxu0
    %v564 = vadd.f32 0.0, %v563
    %v565 = vpop.f32.mrb[0].mxu0
    %566 = vmatprep.mubr.f32.mxu0 0.0
    %567 = vmatmul.mubr.f32.gmra.mrb[0].mxu0 %v434
    %v568 = vpop.f32.mrb[0].mxu0
    %v569 = vadd.f32 0.0, %v568
    %v570 = vpop.f32.mrb[0].mxu0
    %571 = vmatprep.mubr.f32.mxu0 0.0
    %572 = vmatmul.mubr.f32.gmra.mrb[0].mxu0 %v435
    %v573 = vpop.f32.mrb[0].mxu0
    %v574 = vadd.f32 0.0, %v573
    %v575 = vpop.f32.mrb[0].mxu0
    %576 = vmatprep.mubr.f32.mxu0 0.0
    %577 = vmatmul.mubr.f32.gmra.mrb[0].mxu0 %v436
    %v578 = vpop.f32.mrb[0].mxu0
    %v579 = vadd.f32 0.0, %v578
    %v580 = vpop.f32.mrb[0].mxu0
    %581 = vdwg.mxu0
    %v582 = vpack.c.bf16 %v509, %v504
    %v583 = vpack.c.bf16 %v519, %v514
    %v584 = vpack.c.bf16 %v529, %v524
    %v585 = vpack.c.bf16 %v539, %v534
    %v586 = vpack.c.bf16 %v549, %v544
    %v587 = vpack.c.bf16 %v559, %v554
    %v588 = vpack.c.bf16 %v569, %v564
    %v589 = vpack.c.bf16 %v579, %v574
    %v590 = vld [vmem:[%s2 + $0x80] sm:$0xff]
    %v591 = vld [vmem:[%s2 + $0x88] sm:$0xff]
    %v592 = vld [vmem:[%s2 + $0x90] sm:$0xff]
    %v593 = vld [vmem:[%s2 + $0x98] sm:$0xff]
    %v594 = vld [vmem:[%s2 + $0xa0] sm:$0xff]
    %v595 = vld [vmem:[%s2 + $0xa8] sm:$0xff]
    %v596 = vld [vmem:[%s2 + $0xb0] sm:$0xff]
    %v597 = vld [vmem:[%s2 + $0xb8] sm:$0xff]
    %v598 = vld [vmem:[%s2 + $0xc0] sm:$0xff]
    %v599 = vld [vmem:[%s2 + $0xc8] sm:$0xff]
    %v600 = vld [vmem:[%s2 + $0xd0] sm:$0xff]
    %v601 = vld [vmem:[%s2 + $0xd8] sm:$0xff]
    %v602 = vld [vmem:[%s2 + $0xe0] sm:$0xff]
    %v603 = vld [vmem:[%s2 + $0xe8] sm:$0xff]
    %v604 = vld [vmem:[%s2 + $0xf0] sm:$0xff]
    %v605 = vld [vmem:[%s2 + $0xf8] sm:$0xff]
    %v622 = vunpack.c.l.b16 %v590
    %v623 = vunpack.c.h.b16 %v590
    %v624 = vunpack.c.l.b16 %v591
    %v625 = vunpack.c.h.b16 %v591
    %v626 = vunpack.c.l.b16 %v592
    %v627 = vunpack.c.h.b16 %v592
    %v628 = vunpack.c.l.b16 %v593
    %v629 = vunpack.c.h.b16 %v593
    %v630 = vunpack.c.l.b16 %v594
    %v631 = vunpack.c.h.b16 %v594
    %v632 = vunpack.c.l.b16 %v595
    %v633 = vunpack.c.h.b16 %v595
    %v634 = vunpack.c.l.b16 %v596
    %v635 = vunpack.c.h.b16 %v596
    %v636 = vunpack.c.l.b16 %v597
    %v637 = vunpack.c.h.b16 %v597
    %v638 = vunpack.c.l.b16 %v598
    %v639 = vunpack.c.h.b16 %v598
    %v640 = vunpack.c.l.b16 %v599
    %v641 = vunpack.c.h.b16 %v599
    %v642 = vunpack.c.l.b16 %v600
    %v643 = vunpack.c.h.b16 %v600
    %v644 = vunpack.c.l.b16 %v601
    %v645 = vunpack.c.h.b16 %v601
    %v646 = vunpack.c.l.b16 %v602
    %v647 = vunpack.c.h.b16 %v602
    %v648 = vunpack.c.l.b16 %v603
    %v649 = vunpack.c.h.b16 %v603
    %v650 = vunpack.c.l.b16 %v604
    %v651 = vunpack.c.h.b16 %v604
    %v652 = vunpack.c.l.b16 %v605
    %v653 = vunpack.c.h.b16 %v605
    %v654 = vpack.c.b16 %v624, %v622
    %v655 = vpack.c.b16 %v625, %v623
    %v656 = vpack.c.b16 %v628, %v626
    %v657 = vpack.c.b16 %v629, %v627
    %v658 = vpack.c.b16 %v632, %v630
    %v659 = vpack.c.b16 %v633, %v631
    %v660 = vpack.c.b16 %v636, %v634
    %v661 = vpack.c.b16 %v637, %v635
    %v662 = vpack.c.b16 %v640, %v638
    %v663 = vpack.c.b16 %v641, %v639
    %v664 = vpack.c.b16 %v644, %v642
    %v665 = vpack.c.b16 %v645, %v643
    %v666 = vpack.c.b16 %v648, %v646
    %v667 = vpack.c.b16 %v649, %v647
    %v668 = vpack.c.b16 %v652, %v650
    %v669 = vpack.c.b16 %v653, %v651
    %686 = vmatprep.subr.bf16.mxu0 %v655
    %687 = vmatpush1.bf16.msra.mxu0 %v654
    %688 = vmatprep.subr.bf16.mxu0 %v657
    %689 = vmatpush1.bf16.msra.mxu0 %v656
    %690 = vmatprep.subr.bf16.mxu0 %v659
    %691 = vmatpush1.bf16.msra.mxu0 %v658
    %692 = vmatprep.subr.bf16.mxu0 %v661
    %693 = vmatpush1.bf16.msra.mxu0 %v660
    %694 = vmatprep.subr.bf16.mxu0 %v663
    %695 = vmatpush1.bf16.msra.mxu0 %v662
    %696 = vmatprep.subr.bf16.mxu0 %v665
    %697 = vmatpush1.bf16.msra.mxu0 %v664
    %698 = vmatprep.subr.bf16.mxu0 %v667
    %699 = vmatpush1.bf16.msra.mxu0 %v666
    %700 = vmatprep.subr.bf16.mxu0 %v669
    %701 = vmatpush1.bf16.msra.mxu0 %v668
    %702 = vmatprep.subr.bf16.mxu0 0
    %703 = vmatpush1.bf16.msra.mxu0 0
    %704 = vmatprep.subr.bf16.mxu0 0
    %705 = vmatpush1.bf16.msra.mxu0 0
    %706 = vmatprep.subr.bf16.mxu0 0
    %707 = vmatpush1.bf16.msra.mxu0 0
    %708 = vmatprep.subr.bf16.mxu0 0
    %709 = vmatpush1.bf16.msra.mxu0 0
    %710 = vmatprep.subr.bf16.mxu0 0
    %711 = vmatpush1.bf16.msra.mxu0 0
    %712 = vmatprep.subr.bf16.mxu0 0
    %713 = vmatpush1.bf16.msra.mxu0 0
    %714 = vmatprep.subr.bf16.mxu0 0
    %715 = vmatpush1.bf16.msra.mxu0 0
    %716 = vmatprep.subr.bf16.mxu0 0
    %717 = vmatpush1.bf16.msra.mxu0 0
    %718 = vmatprep.mubr.bf16.mxu0 0
    %719 = vmatmul.mubr.bf16.gmra.mrb[0].mxu0 %v582
    %v720 = vpop.f32.mrb[0].mxu0
    %v721 = vadd.f32 0.0, %v720
    %v722 = vpop.f32.mrb[0].mxu0
    %v723 = vadd.f32 0.0, %v722
    %v724 = vpop.f32.mrb[0].mxu0
    %v725 = vadd.f32 0.0, %v724
    %v726 = vpop.f32.mrb[0].mxu0
    %v727 = vadd.f32 0.0, %v726
    %728 = vmatprep.mubr.bf16.mxu0 0
    %729 = vmatmul.mubr.bf16.gmra.mrb[0].mxu0 %v583
    %v730 = vpop.f32.mrb[0].mxu0
    %v731 = vadd.f32 0.0, %v730
    %v732 = vpop.f32.mrb[0].mxu0
    %v733 = vadd.f32 0.0, %v732
    %v734 = vpop.f32.mrb[0].mxu0
    %v735 = vadd.f32 0.0, %v734
    %v736 = vpop.f32.mrb[0].mxu0
    %v737 = vadd.f32 0.0, %v736
    %738 = vmatprep.mubr.bf16.mxu0 0
    %739 = vmatmul.mubr.bf16.gmra.mrb[0].mxu0 %v584
    %v740 = vpop.f32.mrb[0].mxu0
    %v741 = vadd.f32 0.0, %v740
    %v742 = vpop.f32.mrb[0].mxu0
    %v743 = vadd.f32 0.0, %v742
    %v744 = vpop.f32.mrb[0].mxu0
    %v745 = vadd.f32 0.0, %v744
    %v746 = vpop.f32.mrb[0].mxu0
    %v747 = vadd.f32 0.0, %v746
    %748 = vmatprep.mubr.bf16.mxu0 0
    %749 = vmatmul.mubr.bf16.gmra.mrb[0].mxu0 %v585
    %v750 = vpop.f32.mrb[0].mxu0
    %v751 = vadd.f32 0.0, %v750
    %v752 = vpop.f32.mrb[0].mxu0
    %v753 = vadd.f32 0.0, %v752
    %v754 = vpop.f32.mrb[0].mxu0
    %v755 = vadd.f32 0.0, %v754
    %v756 = vpop.f32.mrb[0].mxu0
    %v757 = vadd.f32 0.0, %v756
    %758 = vmatprep.mubr.bf16.mxu0 0
    %759 = vmatmul.mubr.bf16.gmra.mrb[0].mxu0 %v586
    %v760 = vpop.f32.mrb[0].mxu0
    %v761 = vadd.f32 0.0, %v760
    %v762 = vpop.f32.mrb[0].mxu0
    %v763 = vadd.f32 0.0, %v762
    %v764 = vpop.f32.mrb[0].mxu0
    %v765 = vadd.f32 0.0, %v764
    %v766 = vpop.f32.mrb[0].mxu0
    %v767 = vadd.f32 0.0, %v766
    %768 = vmatprep.mubr.bf16.mxu0 0
    %769 = vmatmul.mubr.bf16.gmra.mrb[0].mxu0 %v587
    %v770 = vpop.f32.mrb[0].mxu0
    %v771 = vadd.f32 0.0, %v770
    %v772 = vpop.f32.mrb[0].mxu0
    %v773 = vadd.f32 0.0, %v772
    %v774 = vpop.f32.mrb[0].mxu0
    %v775 = vadd.f32 0.0, %v774
    %v776 = vpop.f32.mrb[0].mxu0
    %v777 = vadd.f32 0.0, %v776
    %778 = vmatprep.mubr.bf16.mxu0 0
    %779 = vmatmul.mubr.bf16.gmra.mrb[0].mxu0 %v588
    %v780 = vpop.f32.mrb[0].mxu0
    %v781 = vadd.f32 0.0, %v780
    %v782 = vpop.f32.mrb[0].mxu0
    %v783 = vadd.f32 0.0, %v782
    %v784 = vpop.f32.mrb[0].mxu0
    %v785 = vadd.f32 0.0, %v784
    %v786 = vpop.f32.mrb[0].mxu0
    %v787 = vadd.f32 0.0, %v786
    %788 = vmatprep.mubr.bf16.mxu0 0
    %789 = vmatmul.mubr.bf16.gmra.mrb[0].mxu0 %v589
    %v790 = vpop.f32.mrb[0].mxu0
    %v791 = vadd.f32 0.0, %v790
    %v792 = vpop.f32.mrb[0].mxu0
    %v793 = vadd.f32 0.0, %v792
    %v794 = vpop.f32.mrb[0].mxu0
    %v795 = vadd.f32 0.0, %v794
    %v796 = vpop.f32.mrb[0].mxu0
    %v797 = vadd.f32 0.0, %v796
    %798 = vdwg.mxu0
    %v815 = vunpack.c.l.b16 %v308
    %v816 = vunpack.c.h.b16 %v308
    %v817 = vunpack.c.l.b16 %v309
    %v818 = vunpack.c.h.b16 %v309
    %v819 = vunpack.c.l.b16 %v310
    %v820 = vunpack.c.h.b16 %v310
    %v821 = vunpack.c.l.b16 %v311
    %v822 = vunpack.c.h.b16 %v311
    %v823 = vunpack.c.l.b16 %v312
    %v824 = vunpack.c.h.b16 %v312
    %v825 = vunpack.c.l.b16 %v313
    %v826 = vunpack.c.h.b16 %v313
    %v827 = vunpack.c.l.b16 %v314
    %v828 = vunpack.c.h.b16 %v314
    %v829 = vunpack.c.l.b16 %v315
    %v830 = vunpack.c.h.b16 %v315
    %v831 = vunpack.c.l.b16 %v316
    %v832 = vunpack.c.h.b16 %v316
    %v833 = vunpack.c.l.b16 %v317
    %v834 = vunpack.c.h.b16 %v317
    %v835 = vunpack.c.l.b16 %v318
    %v836 = vunpack.c.h.b16 %v318
    %v837 = vunpack.c.l.b16 %v319
    %v838 = vunpack.c.h.b16 %v319
    %v839 = vunpack.c.l.b16 %v320
    %v840 = vunpack.c.h.b16 %v320
    %v841 = vunpack.c.l.b16 %v321
    %v842 = vunpack.c.h.b16 %v321
    %v843 = vunpack.c.l.b16 %v322
    %v844 = vunpack.c.h.b16 %v322
    %v845 = vunpack.c.l.b16 %v323
    %v846 = vunpack.c.h.b16 %v323
    %v847 = vpack.c.b16 %v817, %v815
    %v848 = vpack.c.b16 %v818, %v816
    %v849 = vpack.c.b16 %v821, %v819
    %v850 = vpack.c.b16 %v822, %v820
    %v851 = vpack.c.b16 %v825, %v823
    %v852 = vpack.c.b16 %v826, %v824
    %v853 = vpack.c.b16 %v829, %v827
    %v854 = vpack.c.b16 %v830, %v828
    %v855 = vpack.c.b16 %v833, %v831
    %v856 = vpack.c.b16 %v834, %v832
    %v857 = vpack.c.b16 %v837, %v835
    %v858 = vpack.c.b16 %v838, %v836
    %v859 = vpack.c.b16 %v841, %v839
    %v860 = vpack.c.b16 %v842, %v840
    %v861 = vpack.c.b16 %v845, %v843
    %v862 = vpack.c.b16 %v846, %v844
    %879 = vmatprep.subr.bf16.mxu0 %v848
    %880 = vmatpush1.bf16.msra.mxu0 %v847
    %881 = vmatprep.subr.bf16.mxu0 %v850
    %882 = vmatpush1.bf16.msra.mxu0 %v849
    %883 = vmatprep.subr.bf16.mxu0 %v852
    %884 = vmatpush1.bf16.msra.mxu0 %v851
    %885 = vmatprep.subr.bf16.mxu0 %v854
    %886 = vmatpush1.bf16.msra.mxu0 %v853
    %887 = vmatprep.subr.bf16.mxu0 %v856
    %888 = vmatpush1.bf16.msra.mxu0 %v855
    %889 = vmatprep.subr.bf16.mxu0 %v858
    %890 = vmatpush1.bf16.msra.mxu0 %v857
    %891 = vmatprep.subr.bf16.mxu0 %v860
    %892 = vmatpush1.bf16.msra.mxu0 %v859
    %893 = vmatprep.subr.bf16.mxu0 %v862
    %894 = vmatpush1.bf16.msra.mxu0 %v861
    %895 = vmatprep.subr.bf16.mxu0 0
    %896 = vmatpush1.bf16.msra.mxu0 0
    %897 = vmatprep.subr.bf16.mxu0 0
    %898 = vmatpush1.bf16.msra.mxu0 0
    %899 = vmatprep.subr.bf16.mxu0 0
    %900 = vmatpush1.bf16.msra.mxu0 0
    %901 = vmatprep.subr.bf16.mxu0 0
    %902 = vmatpush1.bf16.msra.mxu0 0
    %903 = vmatprep.subr.bf16.mxu0 0
    %904 = vmatpush1.bf16.msra.mxu0 0
    %905 = vmatprep.subr.bf16.mxu0 0
    %906 = vmatpush1.bf16.msra.mxu0 0
    %907 = vmatprep.subr.bf16.mxu0 0
    %908 = vmatpush1.bf16.msra.mxu0 0
    %909 = vmatprep.subr.bf16.mxu0 0
    %910 = vmatpush1.bf16.msra.mxu0 0
    %911 = vmatprep.mubr.bf16.mxu0 0
    %912 = vmatmul.mubr.bf16.gmra.mrb[0].mxu0 %v300
    %v913 = vpop.f32.mrb[0].mxu0
    %v914 = vadd.f32 %v721, %v913
    %v915 = vpop.f32.mrb[0].mxu0
    %v916 = vadd.f32 %v723, %v915
    %v917 = vpop.f32.mrb[0].mxu0
    %v918 = vadd.f32 %v725, %v917
    %v919 = vpop.f32.mrb[0].mxu0
    %v920 = vadd.f32 %v727, %v919
    %921 = vmatprep.mubr.bf16.mxu0 0
    %922 = vmatmul.mubr.bf16.gmra.mrb[0].mxu0 %v301
    %v923 = vpop.f32.mrb[0].mxu0
    %v924 = vadd.f32 %v731, %v923
    %v925 = vpop.f32.mrb[0].mxu0
    %v926 = vadd.f32 %v733, %v925
    %v927 = vpop.f32.mrb[0].mxu0
    %v928 = vadd.f32 %v735, %v927
    %v929 = vpop.f32.mrb[0].mxu0
    %v930 = vadd.f32 %v737, %v929
    %931 = vmatprep.mubr.bf16.mxu0 0
    %932 = vmatmul.mubr.bf16.gmra.mrb[0].mxu0 %v302
    %v933 = vpop.f32.mrb[0].mxu0
    %v934 = vadd.f32 %v741, %v933
    %v935 = vpop.f32.mrb[0].mxu0
    %v936 = vadd.f32 %v743, %v935
    %v937 = vpop.f32.mrb[0].mxu0
    %v938 = vadd.f32 %v745, %v937
    %v939 = vpop.f32.mrb[0].mxu0
    %v940 = vadd.f32 %v747, %v939
    %941 = vmatprep.mubr.bf16.mxu0 0
    %942 = vmatmul.mubr.bf16.gmra.mrb[0].mxu0 %v303
    %v943 = vpop.f32.mrb[0].mxu0
    %v944 = vadd.f32 %v751, %v943
    %v945 = vpop.f32.mrb[0].mxu0
    %v946 = vadd.f32 %v753, %v945
    %v947 = vpop.f32.mrb[0].mxu0
    %v948 = vadd.f32 %v755, %v947
    %v949 = vpop.f32.mrb[0].mxu0
    %v950 = vadd.f32 %v757, %v949
    %951 = vmatprep.mubr.bf16.mxu0 0
    %952 = vmatmul.mubr.bf16.gmra.mrb[0].mxu0 %v304
    %v953 = vpop.f32.mrb[0].mxu0
    %v954 = vadd.f32 %v761, %v953
    %v955 = vpop.f32.mrb[0].mxu0
    %v956 = vadd.f32 %v763, %v955
    %v957 = vpop.f32.mrb[0].mxu0
    %v958 = vadd.f32 %v765, %v957
    %v959 = vpop.f32.mrb[0].mxu0
    %v960 = vadd.f32 %v767, %v959
    %961 = vmatprep.mubr.bf16.mxu0 0
    %962 = vmatmul.mubr.bf16.gmra.mrb[0].mxu0 %v305
    %v963 = vpop.f32.mrb[0].mxu0
    %v964 = vadd.f32 %v771, %v963
    %v965 = vpop.f32.mrb[0].mxu0
    %v966 = vadd.f32 %v773, %v965
    %v967 = vpop.f32.mrb[0].mxu0
    %v968 = vadd.f32 %v775, %v967
    %v969 = vpop.f32.mrb[0].mxu0
    %v970 = vadd.f32 %v777, %v969
    %971 = vmatprep.mubr.bf16.mxu0 0
    %972 = vmatmul.mubr.bf16.gmra.mrb[0].mxu0 %v306
    %v973 = vpop.f32.mrb[0].mxu0
    %v974 = vadd.f32 %v781, %v973
    %v975 = vpop.f32.mrb[0].mxu0
    %v976 = vadd.f32 %v783, %v975
    %v977 = vpop.f32.mrb[0].mxu0
    %v978 = vadd.f32 %v785, %v977
    %v979 = vpop.f32.mrb[0].mxu0
    %v980 = vadd.f32 %v787, %v979
    %981 = vmatprep.mubr.bf16.mxu0 0
    %982 = vmatmul.mubr.bf16.gmra.mrb[0].mxu0 %v307
    %v983 = vpop.f32.mrb[0].mxu0
    %v984 = vadd.f32 %v791, %v983
    %v985 = vpop.f32.mrb[0].mxu0
    %v986 = vadd.f32 %v793, %v985
    %v987 = vpop.f32.mrb[0].mxu0
    %v988 = vadd.f32 %v795, %v987
    %v989 = vpop.f32.mrb[0].mxu0
    %v990 = vadd.f32 %v797, %v989
    %991 = vdwg.mxu0
    %s992 = scalar_lea.vmem %s0, 256
    %v993 = vld [vmem:[%s992] sm:$0xff]
    %v994 = vld [vmem:[%s992 + $0x8] sm:$0xff]
    %v995 = vld [vmem:[%s992 + $0x10] sm:$0xff]
    %v996 = vld [vmem:[%s992 + $0x18] sm:$0xff]
    %v997 = vld [vmem:[%s992 + $0x20] sm:$0xff]
    %v998 = vld [vmem:[%s992 + $0x28] sm:$0xff]
    %v999 = vld [vmem:[%s992 + $0x30] sm:$0xff]
    %v1000 = vld [vmem:[%s992 + $0x38] sm:$0xff]
    %v1001 = vld [vmem:[%s992 + $0x40] sm:$0xff]
    %v1002 = vld [vmem:[%s992 + $0x48] sm:$0xff]
    %v1003 = vld [vmem:[%s992 + $0x50] sm:$0xff]
    %v1004 = vld [vmem:[%s992 + $0x58] sm:$0xff]
    %v1005 = vld [vmem:[%s992 + $0x60] sm:$0xff]
    %v1006 = vld [vmem:[%s992 + $0x68] sm:$0xff]
    %v1007 = vld [vmem:[%s992 + $0x70] sm:$0xff]
    %v1008 = vld [vmem:[%s992 + $0x78] sm:$0xff]
    %1009 = vset.pattern.permute.xlu0 0
    %1010 = vperm.xlu0 %1009, %v993
    %v1011 = vpop.permute.xlu0 %1010
    %1012 = vset.pattern.permute.xlu0 0
    %1013 = vperm.xlu0 %1012, %v994
    %v1014 = vpop.permute.xlu0 %1013
    %1015 = vset.pattern.permute.xlu0 0
    %1016 = vperm.xlu0 %1015, %v995
    %v1017 = vpop.permute.xlu0 %1016
    %1018 = vset.pattern.permute.xlu0 0
    %1019 = vperm.xlu0 %1018, %v996
    %v1020 = vpop.permute.xlu0 %1019
    %1021 = vset.pattern.permute.xlu0 0
    %1022 = vperm.xlu0 %1021, %v997
    %v1023 = vpop.permute.xlu0 %1022
    %1024 = vset.pattern.permute.xlu0 0
    %1025 = vperm.xlu0 %1024, %v998
    %v1026 = vpop.permute.xlu0 %1025
    %1027 = vset.pattern.permute.xlu0 0
    %1028 = vperm.xlu0 %1027, %v999
    %v1029 = vpop.permute.xlu0 %1028
    %1030 = vset.pattern.permute.xlu0 0
    %1031 = vperm.xlu0 %1030, %v1000
    %v1032 = vpop.permute.xlu0 %1031
    %1033 = vset.pattern.permute.xlu0 0
    %1034 = vperm.xlu0 %1033, %v1001
    %v1035 = vpop.permute.xlu0 %1034
    %1036 = vset.pattern.permute.xlu0 0
    %1037 = vperm.xlu0 %1036, %v1002
    %v1038 = vpop.permute.xlu0 %1037
    %1039 = vset.pattern.permute.xlu0 0
    %1040 = vperm.xlu0 %1039, %v1003
    %v1041 = vpop.permute.xlu0 %1040
    %1042 = vset.pattern.permute.xlu0 0
    %1043 = vperm.xlu0 %1042, %v1004
    %v1044 = vpop.permute.xlu0 %1043
    %1045 = vset.pattern.permute.xlu0 0
    %1046 = vperm.xlu0 %1045, %v1005
    %v1047 = vpop.permute.xlu0 %1046
    %1048 = vset.pattern.permute.xlu0 0
    %1049 = vperm.xlu0 %1048, %v1006
    %v1050 = vpop.permute.xlu0 %1049
    %1051 = vset.pattern.permute.xlu0 0
    %1052 = vperm.xlu0 %1051, %v1007
    %v1053 = vpop.permute.xlu0 %1052
    %1054 = vset.pattern.permute.xlu0 0
    %1055 = vperm.xlu0 %1054, %v1008
    %v1056 = vpop.permute.xlu0 %1055
    %vm1057 = vcmp.eq.s32.totalorder %v1011, %v42
    %vm1058 = vcmp.eq.s32.totalorder %v1014, %v42
    %vm1059 = vcmp.eq.s32.totalorder %v1017, %v42
    %vm1060 = vcmp.eq.s32.totalorder %v1020, %v42
    %vm1061 = vcmp.eq.s32.totalorder %v1023, %v42
    %vm1062 = vcmp.eq.s32.totalorder %v1026, %v42
    %vm1063 = vcmp.eq.s32.totalorder %v1029, %v42
    %vm1064 = vcmp.eq.s32.totalorder %v1032, %v42
    %vm1065 = vcmp.eq.s32.totalorder %v1035, %v42
    %vm1066 = vcmp.eq.s32.totalorder %v1038, %v42
    %vm1067 = vcmp.eq.s32.totalorder %v1041, %v42
    %vm1068 = vcmp.eq.s32.totalorder %v1044, %v42
    %vm1069 = vcmp.eq.s32.totalorder %v1047, %v42
    %vm1070 = vcmp.eq.s32.totalorder %v1050, %v42
    %vm1071 = vcmp.eq.s32.totalorder %v1053, %v42
    %vm1072 = vcmp.eq.s32.totalorder %v1056, %v42
    %v1073 = vsel %vm1057, 1, 0
    %v1074 = vsel %vm1058, 1, 0
    %v1075 = vsel %vm1059, 1, 0
    %v1076 = vsel %vm1060, 1, 0
    %v1077 = vsel %vm1061, 1, 0
    %v1078 = vsel %vm1062, 1, 0
    %v1079 = vsel %vm1063, 1, 0
    %v1080 = vsel %vm1064, 1, 0
    %v1081 = vsel %vm1065, 1, 0
    %v1082 = vsel %vm1066, 1, 0
    %v1083 = vsel %vm1067, 1, 0
    %v1084 = vsel %vm1068, 1, 0
    %v1085 = vsel %vm1069, 1, 0
    %v1086 = vsel %vm1070, 1, 0
    %v1087 = vsel %vm1071, 1, 0
    %v1088 = vsel %vm1072, 1, 0
    %v1089 = vcvt.s32.f32 %v1073
    %v1090 = vcvt.s32.f32 %v1074
    %v1091 = vcvt.s32.f32 %v1075
    %v1092 = vcvt.s32.f32 %v1076
    %v1093 = vcvt.s32.f32 %v1077
    %v1094 = vcvt.s32.f32 %v1078
    %v1095 = vcvt.s32.f32 %v1079
    %v1096 = vcvt.s32.f32 %v1080
    %v1097 = vcvt.s32.f32 %v1081
    %v1098 = vcvt.s32.f32 %v1082
    %v1099 = vcvt.s32.f32 %v1083
    %v1100 = vcvt.s32.f32 %v1084
    %v1101 = vcvt.s32.f32 %v1085
    %v1102 = vcvt.s32.f32 %v1086
    %v1103 = vcvt.s32.f32 %v1087
    %v1104 = vcvt.s32.f32 %v1088
    %1105 = vmatprep.subr.mxu0 0.0
    %1106 = vmatpush1.msra.mxu0 %v25
    %1107 = vmatprep.subr.mxu0 0.0
    %1108 = vmatpush1.msra.mxu0 %v26
    %1109 = vmatprep.subr.mxu0 0.0
    %1110 = vmatpush1.msra.mxu0 %v27
    %1111 = vmatprep.subr.mxu0 0.0
    %1112 = vmatpush1.msra.mxu0 %v28
    %1113 = vmatprep.subr.mxu0 0.0
    %1114 = vmatpush1.msra.mxu0 %v29
    %1115 = vmatprep.subr.mxu0 0.0
    %1116 = vmatpush1.msra.mxu0 %v30
    %1117 = vmatprep.subr.mxu0 0.0
    %1118 = vmatpush1.msra.mxu0 %v31
    %1119 = vmatprep.subr.mxu0 0.0
    %1120 = vmatpush1.msra.mxu0 %v32
    %1121 = vmatprep.subr.mxu0 0.0
    %1122 = vmatpush1.msra.mxu0 %v33
    %1123 = vmatprep.subr.mxu0 0.0
    %1124 = vmatpush1.msra.mxu0 %v34
    %1125 = vmatprep.subr.mxu0 0.0
    %1126 = vmatpush1.msra.mxu0 %v35
    %1127 = vmatprep.subr.mxu0 0.0
    %1128 = vmatpush1.msra.mxu0 %v36
    %1129 = vmatprep.subr.mxu0 0.0
    %1130 = vmatpush1.msra.mxu0 %v37
    %1131 = vmatprep.subr.mxu0 0.0
    %1132 = vmatpush1.msra.mxu0 %v38
    %1133 = vmatprep.subr.mxu0 0.0
    %1134 = vmatpush1.msra.mxu0 %v39
    %1135 = vmatprep.subr.mxu0 0.0
    %1136 = vmatpush1.msra.mxu0 %v40
    %1137 = vmatprep.subr.mxu0 0.0
    %1138 = vmatpush1.msra.mxu0 0.0
    %1139 = vmatprep.subr.mxu0 0.0
    %1140 = vmatpush1.msra.mxu0 0.0
    %1141 = vmatprep.subr.mxu0 0.0
    %1142 = vmatpush1.msra.mxu0 0.0
    %1143 = vmatprep.subr.mxu0 0.0
    %1144 = vmatpush1.msra.mxu0 0.0
    %1145 = vmatprep.subr.mxu0 0.0
    %1146 = vmatpush1.msra.mxu0 0.0
    %1147 = vmatprep.subr.mxu0 0.0
    %1148 = vmatpush1.msra.mxu0 0.0
    %1149 = vmatprep.subr.mxu0 0.0
    %1150 = vmatpush1.msra.mxu0 0.0
    %1151 = vmatprep.subr.mxu0 0.0
    %1152 = vmatpush1.msra.mxu0 0.0
    %1153 = vmatprep.subr.mxu0 0.0
    %1154 = vmatpush1.msra.mxu0 0.0
    %1155 = vmatprep.subr.mxu0 0.0
    %1156 = vmatpush1.msra.mxu0 0.0
    %1157 = vmatprep.subr.mxu0 0.0
    %1158 = vmatpush1.msra.mxu0 0.0
    %1159 = vmatprep.subr.mxu0 0.0
    %1160 = vmatpush1.msra.mxu0 0.0
    %1161 = vmatprep.subr.mxu0 0.0
    %1162 = vmatpush1.msra.mxu0 0.0
    %1163 = vmatprep.subr.mxu0 0.0
    %1164 = vmatpush1.msra.mxu0 0.0
    %1165 = vmatprep.subr.mxu0 0.0
    %1166 = vmatpush1.msra.mxu0 0.0
    %1167 = vmatprep.subr.mxu0 0.0
    %1168 = vmatpush1.msra.mxu0 0.0
    %1169 = vmatprep.mubr.f32.mxu0 0.0
    %1170 = vmatmul.mubr.f32.gmra.mrb[0].mxu0 %v1089
    %v1171 = vpop.f32.mrb[0].mxu0
    %v1172 = vadd.f32 0.0, %v1171
    %v1173 = vpop.f32.mrb[0].mxu0
    %1174 = vmatprep.mubr.f32.mxu0 0.0
    %1175 = vmatmul.mubr.f32.gmra.mrb[0].mxu0 %v1090
    %v1176 = vpop.f32.mrb[0].mxu0
    %v1177 = vadd.f32 0.0, %v1176
    %v1178 = vpop.f32.mrb[0].mxu0
    %1179 = vmatprep.mubr.f32.mxu0 0.0
    %1180 = vmatmul.mubr.f32.gmra.mrb[0].mxu0 %v1091
    %v1181 = vpop.f32.mrb[0].mxu0
    %v1182 = vadd.f32 0.0, %v1181
    %v1183 = vpop.f32.mrb[0].mxu0
    %1184 = vmatprep.mubr.f32.mxu0 0.0
    %1185 = vmatmul.mubr.f32.gmra.mrb[0].mxu0 %v1092
    %v1186 = vpop.f32.mrb[0].mxu0
    %v1187 = vadd.f32 0.0, %v1186
    %v1188 = vpop.f32.mrb[0].mxu0
    %1189 = vmatprep.mubr.f32.mxu0 0.0
    %1190 = vmatmul.mubr.f32.gmra.mrb[0].mxu0 %v1093
    %v1191 = vpop.f32.mrb[0].mxu0
    %v1192 = vadd.f32 0.0, %v1191
    %v1193 = vpop.f32.mrb[0].mxu0
    %1194 = vmatprep.mubr.f32.mxu0 0.0
    %1195 = vmatmul.mubr.f32.gmra.mrb[0].mxu0 %v1094
    %v1196 = vpop.f32.mrb[0].mxu0
    %v1197 = vadd.f32 0.0, %v1196
    %v1198 = vpop.f32.mrb[0].mxu0
    %1199 = vmatprep.mubr.f32.mxu0 0.0
    %1200 = vmatmul.mubr.f32.gmra.mrb[0].mxu0 %v1095
    %v1201 = vpop.f32.mrb[0].mxu0
    %v1202 = vadd.f32 0.0, %v1201
    %v1203 = vpop.f32.mrb[0].mxu0
    %1204 = vmatprep.mubr.f32.mxu0 0.0
    %1205 = vmatmul.mubr.f32.gmra.mrb[0].mxu0 %v1096
    %v1206 = vpop.f32.mrb[0].mxu0
    %v1207 = vadd.f32 0.0, %v1206
    %v1208 = vpop.f32.mrb[0].mxu0
    %1209 = vmatprep.mubr.f32.mxu0 0.0
    %1210 = vmatmul.mubr.f32.gmra.mrb[0].mxu0 %v1097
    %v1211 = vpop.f32.mrb[0].mxu0
    %v1212 = vadd.f32 0.0, %v1211
    %v1213 = vpop.f32.mrb[0].mxu0
    %1214 = vmatprep.mubr.f32.mxu0 0.0
    %1215 = vmatmul.mubr.f32.gmra.mrb[0].mxu0 %v1098
    %v1216 = vpop.f32.mrb[0].mxu0
    %v1217 = vadd.f32 0.0, %v1216
    %v1218 = vpop.f32.mrb[0].mxu0
    %1219 = vmatprep.mubr.f32.mxu0 0.0
    %1220 = vmatmul.mubr.f32.gmra.mrb[0].mxu0 %v1099
    %v1221 = vpop.f32.mrb[0].mxu0
    %v1222 = vadd.f32 0.0, %v1221
    %v1223 = vpop.f32.mrb[0].mxu0
    %1224 = vmatprep.mubr.f32.mxu0 0.0
    %1225 = vmatmul.mubr.f32.gmra.mrb[0].mxu0 %v1100
    %v1226 = vpop.f32.mrb[0].mxu0
    %v1227 = vadd.f32 0.0, %v1226
    %v1228 = vpop.f32.mrb[0].mxu0
    %1229 = vmatprep.mubr.f32.mxu0 0.0
    %1230 = vmatmul.mubr.f32.gmra.mrb[0].mxu0 %v1101
    %v1231 = vpop.f32.mrb[0].mxu0
    %v1232 = vadd.f32 0.0, %v1231
    %v1233 = vpop.f32.mrb[0].mxu0
    %1234 = vmatprep.mubr.f32.mxu0 0.0
    %1235 = vmatmul.mubr.f32.gmra.mrb[0].mxu0 %v1102
    %v1236 = vpop.f32.mrb[0].mxu0
    %v1237 = vadd.f32 0.0, %v1236
    %v1238 = vpop.f32.mrb[0].mxu0
    %1239 = vmatprep.mubr.f32.mxu0 0.0
    %1240 = vmatmul.mubr.f32.gmra.mrb[0].mxu0 %v1103
    %v1241 = vpop.f32.mrb[0].mxu0
    %v1242 = vadd.f32 0.0, %v1241
    %v1243 = vpop.f32.mrb[0].mxu0
    %1244 = vmatprep.mubr.f32.mxu0 0.0
    %1245 = vmatmul.mubr.f32.gmra.mrb[0].mxu0 %v1104
    %v1246 = vpop.f32.mrb[0].mxu0
    %v1247 = vadd.f32 0.0, %v1246
    %v1248 = vpop.f32.mrb[0].mxu0
    %1249 = vdwg.mxu0
    %v1250 = vpack.c.bf16 %v1177, %v1172
    %v1251 = vpack.c.bf16 %v1187, %v1182
    %v1252 = vpack.c.bf16 %v1197, %v1192
    %v1253 = vpack.c.bf16 %v1207, %v1202
    %v1254 = vpack.c.bf16 %v1217, %v1212
    %v1255 = vpack.c.bf16 %v1227, %v1222
    %v1256 = vpack.c.bf16 %v1237, %v1232
    %v1257 = vpack.c.bf16 %v1247, %v1242
    %v1258 = vld [vmem:[%s2 + $0x100] sm:$0xff]
    %v1259 = vld [vmem:[%s2 + $0x108] sm:$0xff]
    %v1260 = vld [vmem:[%s2 + $0x110] sm:$0xff]
    %v1261 = vld [vmem:[%s2 + $0x118] sm:$0xff]
    %v1262 = vld [vmem:[%s2 + $0x120] sm:$0xff]
    %v1263 = vld [vmem:[%s2 + $0x128] sm:$0xff]
    %v1264 = vld [vmem:[%s2 + $0x130] sm:$0xff]
    %v1265 = vld [vmem:[%s2 + $0x138] sm:$0xff]
    %v1266 = vld [vmem:[%s2 + $0x140] sm:$0xff]
    %v1267 = vld [vmem:[%s2 + $0x148] sm:$0xff]
    %v1268 = vld [vmem:[%s2 + $0x150] sm:$0xff]
    %v1269 = vld [vmem:[%s2 + $0x158] sm:$0xff]
    %v1270 = vld [vmem:[%s2 + $0x160] sm:$0xff]
    %v1271 = vld [vmem:[%s2 + $0x168] sm:$0xff]
    %v1272 = vld [vmem:[%s2 + $0x170] sm:$0xff]
    %v1273 = vld [vmem:[%s2 + $0x178] sm:$0xff]
    %v1290 = vunpack.c.l.b16 %v1258
    %v1291 = vunpack.c.h.b16 %v1258
    %v1292 = vunpack.c.l.b16 %v1259
    %v1293 = vunpack.c.h.b16 %v1259
    %v1294 = vunpack.c.l.b16 %v1260
    %v1295 = vunpack.c.h.b16 %v1260
    %v1296 = vunpack.c.l.b16 %v1261
    %v1297 = vunpack.c.h.b16 %v1261
    %v1298 = vunpack.c.l.b16 %v1262
    %v1299 = vunpack.c.h.b16 %v1262
    %v1300 = vunpack.c.l.b16 %v1263
    %v1301 = vunpack.c.h.b16 %v1263
    %v1302 = vunpack.c.l.b16 %v1264
    %v1303 = vunpack.c.h.b16 %v1264
    %v1304 = vunpack.c.l.b16 %v1265
    %v1305 = vunpack.c.h.b16 %v1265
    %v1306 = vunpack.c.l.b16 %v1266
    %v1307 = vunpack.c.h.b16 %v1266
    %v1308 = vunpack.c.l.b16 %v1267
    %v1309 = vunpack.c.h.b16 %v1267
    %v1310 = vunpack.c.l.b16 %v1268
    %v1311 = vunpack.c.h.b16 %v1268
    %v1312 = vunpack.c.l.b16 %v1269
    %v1313 = vunpack.c.h.b16 %v1269
    %v1314 = vunpack.c.l.b16 %v1270
    %v1315 = vunpack.c.h.b16 %v1270
    %v1316 = vunpack.c.l.b16 %v1271
    %v1317 = vunpack.c.h.b16 %v1271
    %v1318 = vunpack.c.l.b16 %v1272
    %v1319 = vunpack.c.h.b16 %v1272
    %v1320 = vunpack.c.l.b16 %v1273
    %v1321 = vunpack.c.h.b16 %v1273
    %v1322 = vpack.c.b16 %v1292, %v1290
    %v1323 = vpack.c.b16 %v1293, %v1291
    %v1324 = vpack.c.b16 %v1296, %v1294
    %v1325 = vpack.c.b16 %v1297, %v1295
    %v1326 = vpack.c.b16 %v1300, %v1298
    %v1327 = vpack.c.b16 %v1301, %v1299
    %v1328 = vpack.c.b16 %v1304, %v1302
    %v1329 = vpack.c.b16 %v1305, %v1303
    %v1330 = vpack.c.b16 %v1308, %v1306
    %v1331 = vpack.c.b16 %v1309, %v1307
    %v1332 = vpack.c.b16 %v1312, %v1310
    %v1333 = vpack.c.b16 %v1313, %v1311
    %v1334 = vpack.c.b16 %v1316, %v1314
    %v1335 = vpack.c.b16 %v1317, %v1315
    %v1336 = vpack.c.b16 %v1320, %v1318
    %v1337 = vpack.c.b16 %v1321, %v1319
    %1354 = vmatprep.subr.bf16.mxu0 %v1323
    %1355 = vmatpush1.bf16.msra.mxu0 %v1322
    %1356 = vmatprep.subr.bf16.mxu0 %v1325
    %1357 = vmatpush1.bf16.msra.mxu0 %v1324
    %1358 = vmatprep.subr.bf16.mxu0 %v1327
    %1359 = vmatpush1.bf16.msra.mxu0 %v1326
    %1360 = vmatprep.subr.bf16.mxu0 %v1329
    %1361 = vmatpush1.bf16.msra.mxu0 %v1328
    %1362 = vmatprep.subr.bf16.mxu0 %v1331
    %1363 = vmatpush1.bf16.msra.mxu0 %v1330
    %1364 = vmatprep.subr.bf16.mxu0 %v1333
    %1365 = vmatpush1.bf16.msra.mxu0 %v1332
    %1366 = vmatprep.subr.bf16.mxu0 %v1335
    %1367 = vmatpush1.bf16.msra.mxu0 %v1334
    %1368 = vmatprep.subr.bf16.mxu0 %v1337
    %1369 = vmatpush1.bf16.msra.mxu0 %v1336
    %1370 = vmatprep.subr.bf16.mxu0 0
    %1371 = vmatpush1.bf16.msra.mxu0 0
    %1372 = vmatprep.subr.bf16.mxu0 0
    %1373 = vmatpush1.bf16.msra.mxu0 0
    %1374 = vmatprep.subr.bf16.mxu0 0
    %1375 = vmatpush1.bf16.msra.mxu0 0
    %1376 = vmatprep.subr.bf16.mxu0 0
    %1377 = vmatpush1.bf16.msra.mxu0 0
    %1378 = vmatprep.subr.bf16.mxu0 0
    %1379 = vmatpush1.bf16.msra.mxu0 0
    %1380 = vmatprep.subr.bf16.mxu0 0
    %1381 = vmatpush1.bf16.msra.mxu0 0
    %1382 = vmatprep.subr.bf16.mxu0 0
    %1383 = vmatpush1.bf16.msra.mxu0 0
    %1384 = vmatprep.subr.bf16.mxu0 0
    %1385 = vmatpush1.bf16.msra.mxu0 0
    %1386 = vmatprep.mubr.bf16.mxu0 0
    %1387 = vmatmul.mubr.bf16.gmra.mrb[0].mxu0 %v1250
    %v1388 = vpop.f32.mrb[0].mxu0
    %v1389 = vadd.f32 0.0, %v1388
    %v1390 = vpop.f32.mrb[0].mxu0
    %v1391 = vadd.f32 0.0, %v1390
    %v1392 = vpop.f32.mrb[0].mxu0
    %v1393 = vadd.f32 0.0, %v1392
    %v1394 = vpop.f32.mrb[0].mxu0
    %v1395 = vadd.f32 0.0, %v1394
    %1396 = vmatprep.mubr.bf16.mxu0 0
    %1397 = vmatmul.mubr.bf16.gmra.mrb[0].mxu0 %v1251
    %v1398 = vpop.f32.mrb[0].mxu0
    %v1399 = vadd.f32 0.0, %v1398
    %v1400 = vpop.f32.mrb[0].mxu0
    %v1401 = vadd.f32 0.0, %v1400
    %v1402 = vpop.f32.mrb[0].mxu0
    %v1403 = vadd.f32 0.0, %v1402
    %v1404 = vpop.f32.mrb[0].mxu0
    %v1405 = vadd.f32 0.0, %v1404
    %1406 = vmatprep.mubr.bf16.mxu0 0
    %1407 = vmatmul.mubr.bf16.gmra.mrb[0].mxu0 %v1252
    %v1408 = vpop.f32.mrb[0].mxu0
    %v1409 = vadd.f32 0.0, %v1408
    %v1410 = vpop.f32.mrb[0].mxu0
    %v1411 = vadd.f32 0.0, %v1410
    %v1412 = vpop.f32.mrb[0].mxu0
    %v1413 = vadd.f32 0.0, %v1412
    %v1414 = vpop.f32.mrb[0].mxu0
    %v1415 = vadd.f32 0.0, %v1414
    %1416 = vmatprep.mubr.bf16.mxu0 0
    %1417 = vmatmul.mubr.bf16.gmra.mrb[0].mxu0 %v1253
    %v1418 = vpop.f32.mrb[0].mxu0
    %v1419 = vadd.f32 0.0, %v1418
    %v1420 = vpop.f32.mrb[0].mxu0
    %v1421 = vadd.f32 0.0, %v1420
    %v1422 = vpop.f32.mrb[0].mxu0
    %v1423 = vadd.f32 0.0, %v1422
    %v1424 = vpop.f32.mrb[0].mxu0
    %v1425 = vadd.f32 0.0, %v1424
    %1426 = vmatprep.mubr.bf16.mxu0 0
    %1427 = vmatmul.mubr.bf16.gmra.mrb[0].mxu0 %v1254
    %v1428 = vpop.f32.mrb[0].mxu0
    %v1429 = vadd.f32 0.0, %v1428
    %v1430 = vpop.f32.mrb[0].mxu0
    %v1431 = vadd.f32 0.0, %v1430
    %v1432 = vpop.f32.mrb[0].mxu0
    %v1433 = vadd.f32 0.0, %v1432
    %v1434 = vpop.f32.mrb[0].mxu0
    %v1435 = vadd.f32 0.0, %v1434
    %1436 = vmatprep.mubr.bf16.mxu0 0
    %1437 = vmatmul.mubr.bf16.gmra.mrb[0].mxu0 %v1255
    %v1438 = vpop.f32.mrb[0].mxu0
    %v1439 = vadd.f32 0.0, %v1438
    %v1440 = vpop.f32.mrb[0].mxu0
    %v1441 = vadd.f32 0.0, %v1440
    %v1442 = vpop.f32.mrb[0].mxu0
    %v1443 = vadd.f32 0.0, %v1442
    %v1444 = vpop.f32.mrb[0].mxu0
    %v1445 = vadd.f32 0.0, %v1444
    %1446 = vmatprep.mubr.bf16.mxu0 0
    %1447 = vmatmul.mubr.bf16.gmra.mrb[0].mxu0 %v1256
    %v1448 = vpop.f32.mrb[0].mxu0
    %v1449 = vadd.f32 0.0, %v1448
    %v1450 = vpop.f32.mrb[0].mxu0
    %v1451 = vadd.f32 0.0, %v1450
    %v1452 = vpop.f32.mrb[0].mxu0
    %v1453 = vadd.f32 0.0, %v1452
    %v1454 = vpop.f32.mrb[0].mxu0
    %v1455 = vadd.f32 0.0, %v1454
    %1456 = vmatprep.mubr.bf16.mxu0 0
    %1457 = vmatmul.mubr.bf16.gmra.mrb[0].mxu0 %v1257
    %v1458 = vpop.f32.mrb[0].mxu0
    %v1459 = vadd.f32 0.0, %v1458
    %v1460 = vpop.f32.mrb[0].mxu0
    %v1461 = vadd.f32 0.0, %v1460
    %v1462 = vpop.f32.mrb[0].mxu0
    %v1463 = vadd.f32 0.0, %v1462
    %v1464 = vpop.f32.mrb[0].mxu0
    %v1465 = vadd.f32 0.0, %v1464
    %1466 = vdwg.mxu0
    %v1467 = vadd.f32 %v914, %v1389
    %v1468 = vadd.f32 %v916, %v1391
    %v1469 = vadd.f32 %v918, %v1393
    %v1470 = vadd.f32 %v920, %v1395
    %v1471 = vadd.f32 %v924, %v1399
    %v1472 = vadd.f32 %v926, %v1401
    %v1473 = vadd.f32 %v928, %v1403
    %v1474 = vadd.f32 %v930, %v1405
    %v1475 = vadd.f32 %v934, %v1409
    %v1476 = vadd.f32 %v936, %v1411
    %v1477 = vadd.f32 %v938, %v1413
    %v1478 = vadd.f32 %v940, %v1415
    %v1479 = vadd.f32 %v944, %v1419
    %v1480 = vadd.f32 %v946, %v1421
    %v1481 = vadd.f32 %v948, %v1423
    %v1482 = vadd.f32 %v950, %v1425
    %v1483 = vadd.f32 %v954, %v1429
    %v1484 = vadd.f32 %v956, %v1431
    %v1485 = vadd.f32 %v958, %v1433
    %v1486 = vadd.f32 %v960, %v1435
    %v1487 = vadd.f32 %v964, %v1439
    %v1488 = vadd.f32 %v966, %v1441
    %v1489 = vadd.f32 %v968, %v1443
    %v1490 = vadd.f32 %v970, %v1445
    %v1491 = vadd.f32 %v974, %v1449
    %v1492 = vadd.f32 %v976, %v1451
    %v1493 = vadd.f32 %v978, %v1453
    %v1494 = vadd.f32 %v980, %v1455
    %v1495 = vadd.f32 %v984, %v1459
    %v1496 = vadd.f32 %v986, %v1461
    %v1497 = vadd.f32 %v988, %v1463
    %v1498 = vadd.f32 %v990, %v1465
    %s1499 = scalar_lea.vmem %s0, 384
    %v1500 = vld [vmem:[%s1499] sm:$0xff]
    %v1501 = vld [vmem:[%s1499 + $0x8] sm:$0xff]
    %v1502 = vld [vmem:[%s1499 + $0x10] sm:$0xff]
    %v1503 = vld [vmem:[%s1499 + $0x18] sm:$0xff]
    %v1504 = vld [vmem:[%s1499 + $0x20] sm:$0xff]
    %v1505 = vld [vmem:[%s1499 + $0x28] sm:$0xff]
    %v1506 = vld [vmem:[%s1499 + $0x30] sm:$0xff]
    %v1507 = vld [vmem:[%s1499 + $0x38] sm:$0xff]
    %v1508 = vld [vmem:[%s1499 + $0x40] sm:$0xff]
    %v1509 = vld [vmem:[%s1499 + $0x48] sm:$0xff]
    %v1510 = vld [vmem:[%s1499 + $0x50] sm:$0xff]
    %v1511 = vld [vmem:[%s1499 + $0x58] sm:$0xff]
    %v1512 = vld [vmem:[%s1499 + $0x60] sm:$0xff]
    %v1513 = vld [vmem:[%s1499 + $0x68] sm:$0xff]
    %v1514 = vld [vmem:[%s1499 + $0x70] sm:$0xff]
    %v1515 = vld [vmem:[%s1499 + $0x78] sm:$0xff]
    %1516 = vset.pattern.permute.xlu0 0
    %1517 = vperm.xlu0 %1516, %v1500
    %v1518 = vpop.permute.xlu0 %1517
    %1519 = vset.pattern.permute.xlu0 0
    %1520 = vperm.xlu0 %1519, %v1501
    %v1521 = vpop.permute.xlu0 %1520
    %1522 = vset.pattern.permute.xlu0 0
    %1523 = vperm.xlu0 %1522, %v1502
    %v1524 = vpop.permute.xlu0 %1523
    %1525 = vset.pattern.permute.xlu0 0
    %1526 = vperm.xlu0 %1525, %v1503
    %v1527 = vpop.permute.xlu0 %1526
    %1528 = vset.pattern.permute.xlu0 0
    %1529 = vperm.xlu0 %1528, %v1504
    %v1530 = vpop.permute.xlu0 %1529
    %1531 = vset.pattern.permute.xlu0 0
    %1532 = vperm.xlu0 %1531, %v1505
    %v1533 = vpop.permute.xlu0 %1532
    %1534 = vset.pattern.permute.xlu0 0
    %1535 = vperm.xlu0 %1534, %v1506
    %v1536 = vpop.permute.xlu0 %1535
    %1537 = vset.pattern.permute.xlu0 0
    %1538 = vperm.xlu0 %1537, %v1507
    %v1539 = vpop.permute.xlu0 %1538
    %1540 = vset.pattern.permute.xlu0 0
    %1541 = vperm.xlu0 %1540, %v1508
    %v1542 = vpop.permute.xlu0 %1541
    %1543 = vset.pattern.permute.xlu0 0
    %1544 = vperm.xlu0 %1543, %v1509
    %v1545 = vpop.permute.xlu0 %1544
    %1546 = vset.pattern.permute.xlu0 0
    %1547 = vperm.xlu0 %1546, %v1510
    %v1548 = vpop.permute.xlu0 %1547
    %1549 = vset.pattern.permute.xlu0 0
    %1550 = vperm.xlu0 %1549, %v1511
    %v1551 = vpop.permute.xlu0 %1550
    %1552 = vset.pattern.permute.xlu0 0
    %1553 = vperm.xlu0 %1552, %v1512
    %v1554 = vpop.permute.xlu0 %1553
    %1555 = vset.pattern.permute.xlu0 0
    %1556 = vperm.xlu0 %1555, %v1513
    %v1557 = vpop.permute.xlu0 %1556
    %1558 = vset.pattern.permute.xlu0 0
    %1559 = vperm.xlu0 %1558, %v1514
    %v1560 = vpop.permute.xlu0 %1559
    %1561 = vset.pattern.permute.xlu0 0
    %1562 = vperm.xlu0 %1561, %v1515
    %v1563 = vpop.permute.xlu0 %1562
    %vm1564 = vcmp.eq.s32.totalorder %v1518, %v42
    %vm1565 = vcmp.eq.s32.totalorder %v1521, %v42
    %vm1566 = vcmp.eq.s32.totalorder %v1524, %v42
    %vm1567 = vcmp.eq.s32.totalorder %v1527, %v42
    %vm1568 = vcmp.eq.s32.totalorder %v1530, %v42
    %vm1569 = vcmp.eq.s32.totalorder %v1533, %v42
    %vm1570 = vcmp.eq.s32.totalorder %v1536, %v42
    %vm1571 = vcmp.eq.s32.totalorder %v1539, %v42
    %vm1572 = vcmp.eq.s32.totalorder %v1542, %v42
    %vm1573 = vcmp.eq.s32.totalorder %v1545, %v42
    %vm1574 = vcmp.eq.s32.totalorder %v1548, %v42
    %vm1575 = vcmp.eq.s32.totalorder %v1551, %v42
    %vm1576 = vcmp.eq.s32.totalorder %v1554, %v42
    %vm1577 = vcmp.eq.s32.totalorder %v1557, %v42
    %vm1578 = vcmp.eq.s32.totalorder %v1560, %v42
    %vm1579 = vcmp.eq.s32.totalorder %v1563, %v42
    %v1580 = vsel %vm1564, 1, 0
    %v1581 = vsel %vm1565, 1, 0
    %v1582 = vsel %vm1566, 1, 0
    %v1583 = vsel %vm1567, 1, 0
    %v1584 = vsel %vm1568, 1, 0
    %v1585 = vsel %vm1569, 1, 0
    %v1586 = vsel %vm1570, 1, 0
    %v1587 = vsel %vm1571, 1, 0
    %v1588 = vsel %vm1572, 1, 0
    %v1589 = vsel %vm1573, 1, 0
    %v1590 = vsel %vm1574, 1, 0
    %v1591 = vsel %vm1575, 1, 0
    %v1592 = vsel %vm1576, 1, 0
    %v1593 = vsel %vm1577, 1, 0
    %v1594 = vsel %vm1578, 1, 0
    %v1595 = vsel %vm1579, 1, 0
    %v1596 = vcvt.s32.f32 %v1580
    %v1597 = vcvt.s32.f32 %v1581
    %v1598 = vcvt.s32.f32 %v1582
    %v1599 = vcvt.s32.f32 %v1583
    %v1600 = vcvt.s32.f32 %v1584
    %v1601 = vcvt.s32.f32 %v1585
    %v1602 = vcvt.s32.f32 %v1586
    %v1603 = vcvt.s32.f32 %v1587
    %v1604 = vcvt.s32.f32 %v1588
    %v1605 = vcvt.s32.f32 %v1589
    %v1606 = vcvt.s32.f32 %v1590
    %v1607 = vcvt.s32.f32 %v1591
    %v1608 = vcvt.s32.f32 %v1592
    %v1609 = vcvt.s32.f32 %v1593
    %v1610 = vcvt.s32.f32 %v1594
    %v1611 = vcvt.s32.f32 %v1595
    %1612 = vmatprep.subr.mxu0 0.0
    %1613 = vmatpush1.msra.mxu0 %v25
    %1614 = vmatprep.subr.mxu0 0.0
    %1615 = vmatpush1.msra.mxu0 %v26
    %1616 = vmatprep.subr.mxu0 0.0
    %1617 = vmatpush1.msra.mxu0 %v27
    %1618 = vmatprep.subr.mxu0 0.0
    %1619 = vmatpush1.msra.mxu0 %v28
    %1620 = vmatprep.subr.mxu0 0.0
    %1621 = vmatpush1.msra.mxu0 %v29
    %1622 = vmatprep.subr.mxu0 0.0
    %1623 = vmatpush1.msra.mxu0 %v30
    %1624 = vmatprep.subr.mxu0 0.0
    %1625 = vmatpush1.msra.mxu0 %v31
    %1626 = vmatprep.subr.mxu0 0.0
    %1627 = vmatpush1.msra.mxu0 %v32
    %1628 = vmatprep.subr.mxu0 0.0
    %1629 = vmatpush1.msra.mxu0 %v33
    %1630 = vmatprep.subr.mxu0 0.0
    %1631 = vmatpush1.msra.mxu0 %v34
    %1632 = vmatprep.subr.mxu0 0.0
    %1633 = vmatpush1.msra.mxu0 %v35
    %1634 = vmatprep.subr.mxu0 0.0
    %1635 = vmatpush1.msra.mxu0 %v36
    %1636 = vmatprep.subr.mxu0 0.0
    %1637 = vmatpush1.msra.mxu0 %v37
    %1638 = vmatprep.subr.mxu0 0.0
    %1639 = vmatpush1.msra.mxu0 %v38
    %1640 = vmatprep.subr.mxu0 0.0
    %1641 = vmatpush1.msra.mxu0 %v39
    %1642 = vmatprep.subr.mxu0 0.0
    %1643 = vmatpush1.msra.mxu0 %v40
    %1644 = vmatprep.subr.mxu0 0.0
    %1645 = vmatpush1.msra.mxu0 0.0
    %1646 = vmatprep.subr.mxu0 0.0
    %1647 = vmatpush1.msra.mxu0 0.0
    %1648 = vmatprep.subr.mxu0 0.0
    %1649 = vmatpush1.msra.mxu0 0.0
    %1650 = vmatprep.subr.mxu0 0.0
    %1651 = vmatpush1.msra.mxu0 0.0
    %1652 = vmatprep.subr.mxu0 0.0
    %1653 = vmatpush1.msra.mxu0 0.0
    %1654 = vmatprep.subr.mxu0 0.0
    %1655 = vmatpush1.msra.mxu0 0.0
    %1656 = vmatprep.subr.mxu0 0.0
    %1657 = vmatpush1.msra.mxu0 0.0
    %1658 = vmatprep.subr.mxu0 0.0
    %1659 = vmatpush1.msra.mxu0 0.0
    %1660 = vmatprep.subr.mxu0 0.0
    %1661 = vmatpush1.msra.mxu0 0.0
    %1662 = vmatprep.subr.mxu0 0.0
    %1663 = vmatpush1.msra.mxu0 0.0
    %1664 = vmatprep.subr.mxu0 0.0
    %1665 = vmatpush1.msra.mxu0 0.0
    %1666 = vmatprep.subr.mxu0 0.0
    %1667 = vmatpush1.msra.mxu0 0.0
    %1668 = vmatprep.subr.mxu0 0.0
    %1669 = vmatpush1.msra.mxu0 0.0
    %1670 = vmatprep.subr.mxu0 0.0
    %1671 = vmatpush1.msra.mxu0 0.0
    %1672 = vmatprep.subr.mxu0 0.0
    %1673 = vmatpush1.msra.mxu0 0.0
    %1674 = vmatprep.subr.mxu0 0.0
    %1675 = vmatpush1.msra.mxu0 0.0
    %1676 = vmatprep.mubr.f32.mxu0 0.0
    %1677 = vmatmul.mubr.f32.gmra.mrb[0].mxu0 %v1596
    %v1678 = vpop.f32.mrb[0].mxu0
    %v1679 = vadd.f32 0.0, %v1678
    %v1680 = vpop.f32.mrb[0].mxu0
    %1681 = vmatprep.mubr.f32.mxu0 0.0
    %1682 = vmatmul.mubr.f32.gmra.mrb[0].mxu0 %v1597
    %v1683 = vpop.f32.mrb[0].mxu0
    %v1684 = vadd.f32 0.0, %v1683
    %v1685 = vpop.f32.mrb[0].mxu0
    %1686 = vmatprep.mubr.f32.mxu0 0.0
    %1687 = vmatmul.mubr.f32.gmra.mrb[0].mxu0 %v1598
    %v1688 = vpop.f32.mrb[0].mxu0
    %v1689 = vadd.f32 0.0, %v1688
    %v1690 = vpop.f32.mrb[0].mxu0
    %1691 = vmatprep.mubr.f32.mxu0 0.0
    %1692 = vmatmul.mubr.f32.gmra.mrb[0].mxu0 %v1599
    %v1693 = vpop.f32.mrb[0].mxu0
    %v1694 = vadd.f32 0.0, %v1693
    %v1695 = vpop.f32.mrb[0].mxu0
    %1696 = vmatprep.mubr.f32.mxu0 0.0
    %1697 = vmatmul.mubr.f32.gmra.mrb[0].mxu0 %v1600
    %v1698 = vpop.f32.mrb[0].mxu0
    %v1699 = vadd.f32 0.0, %v1698
    %v1700 = vpop.f32.mrb[0].mxu0
    %1701 = vmatprep.mubr.f32.mxu0 0.0
    %1702 = vmatmul.mubr.f32.gmra.mrb[0].mxu0 %v1601
    %v1703 = vpop.f32.mrb[0].mxu0
    %v1704 = vadd.f32 0.0, %v1703
    %v1705 = vpop.f32.mrb[0].mxu0
    %1706 = vmatprep.mubr.f32.mxu0 0.0
    %1707 = vmatmul.mubr.f32.gmra.mrb[0].mxu0 %v1602
    %v1708 = vpop.f32.mrb[0].mxu0
    %v1709 = vadd.f32 0.0, %v1708
    %v1710 = vpop.f32.mrb[0].mxu0
    %1711 = vmatprep.mubr.f32.mxu0 0.0
    %1712 = vmatmul.mubr.f32.gmra.mrb[0].mxu0 %v1603
    %v1713 = vpop.f32.mrb[0].mxu0
    %v1714 = vadd.f32 0.0, %v1713
    %v1715 = vpop.f32.mrb[0].mxu0
    %1716 = vmatprep.mubr.f32.mxu0 0.0
    %1717 = vmatmul.mubr.f32.gmra.mrb[0].mxu0 %v1604
    %v1718 = vpop.f32.mrb[0].mxu0
    %v1719 = vadd.f32 0.0, %v1718
    %v1720 = vpop.f32.mrb[0].mxu0
    %1721 = vmatprep.mubr.f32.mxu0 0.0
    %1722 = vmatmul.mubr.f32.gmra.mrb[0].mxu0 %v1605
    %v1723 = vpop.f32.mrb[0].mxu0
    %v1724 = vadd.f32 0.0, %v1723
    %v1725 = vpop.f32.mrb[0].mxu0
    %1726 = vmatprep.mubr.f32.mxu0 0.0
    %1727 = vmatmul.mubr.f32.gmra.mrb[0].mxu0 %v1606
    %v1728 = vpop.f32.mrb[0].mxu0
    %v1729 = vadd.f32 0.0, %v1728
    %v1730 = vpop.f32.mrb[0].mxu0
    %1731 = vmatprep.mubr.f32.mxu0 0.0
    %1732 = vmatmul.mubr.f32.gmra.mrb[0].mxu0 %v1607
    %v1733 = vpop.f32.mrb[0].mxu0
    %v1734 = vadd.f32 0.0, %v1733
    %v1735 = vpop.f32.mrb[0].mxu0
    %1736 = vmatprep.mubr.f32.mxu0 0.0
    %1737 = vmatmul.mubr.f32.gmra.mrb[0].mxu0 %v1608
    %v1738 = vpop.f32.mrb[0].mxu0
    %v1739 = vadd.f32 0.0, %v1738
    %v1740 = vpop.f32.mrb[0].mxu0
    %1741 = vmatprep.mubr.f32.mxu0 0.0
    %1742 = vmatmul.mubr.f32.gmra.mrb[0].mxu0 %v1609
    %v1743 = vpop.f32.mrb[0].mxu0
    %v1744 = vadd.f32 0.0, %v1743
    %v1745 = vpop.f32.mrb[0].mxu0
    %1746 = vmatprep.mubr.f32.mxu0 0.0
    %1747 = vmatmul.mubr.f32.gmra.mrb[0].mxu0 %v1610
    %v1748 = vpop.f32.mrb[0].mxu0
    %v1749 = vadd.f32 0.0, %v1748
    %v1750 = vpop.f32.mrb[0].mxu0
    %1751 = vmatprep.mubr.f32.mxu0 0.0
    %1752 = vmatmul.mubr.f32.gmra.mrb[0].mxu0 %v1611
    %v1753 = vpop.f32.mrb[0].mxu0
    %v1754 = vadd.f32 0.0, %v1753
    %v1755 = vpop.f32.mrb[0].mxu0
    %1756 = vdwg.mxu0
    %v1757 = vpack.c.bf16 %v1684, %v1679
    %v1758 = vpack.c.bf16 %v1694, %v1689
    %v1759 = vpack.c.bf16 %v1704, %v1699
    %v1760 = vpack.c.bf16 %v1714, %v1709
    %v1761 = vpack.c.bf16 %v1724, %v1719
    %v1762 = vpack.c.bf16 %v1734, %v1729
    %v1763 = vpack.c.bf16 %v1744, %v1739
    %v1764 = vpack.c.bf16 %v1754, %v1749
    %v1765 = vld [vmem:[%s2 + $0x180] sm:$0xff]
    %v1766 = vld [vmem:[%s2 + $0x188] sm:$0xff]
    %v1767 = vld [vmem:[%s2 + $0x190] sm:$0xff]
    %v1768 = vld [vmem:[%s2 + $0x198] sm:$0xff]
    %v1769 = vld [vmem:[%s2 + $0x1a0] sm:$0xff]
    %v1770 = vld [vmem:[%s2 + $0x1a8] sm:$0xff]
    %v1771 = vld [vmem:[%s2 + $0x1b0] sm:$0xff]
    %v1772 = vld [vmem:[%s2 + $0x1b8] sm:$0xff]
    %v1773 = vld [vmem:[%s2 + $0x1c0] sm:$0xff]
    %v1774 = vld [vmem:[%s2 + $0x1c8] sm:$0xff]
    %v1775 = vld [vmem:[%s2 + $0x1d0] sm:$0xff]
    %v1776 = vld [vmem:[%s2 + $0x1d8] sm:$0xff]
    %v1777 = vld [vmem:[%s2 + $0x1e0] sm:$0xff]
    %v1778 = vld [vmem:[%s2 + $0x1e8] sm:$0xff]
    %v1779 = vld [vmem:[%s2 + $0x1f0] sm:$0xff]
    %v1780 = vld [vmem:[%s2 + $0x1f8] sm:$0xff]
    %v1797 = vunpack.c.l.b16 %v1765
    %v1798 = vunpack.c.h.b16 %v1765
    %v1799 = vunpack.c.l.b16 %v1766
    %v1800 = vunpack.c.h.b16 %v1766
    %v1801 = vunpack.c.l.b16 %v1767
    %v1802 = vunpack.c.h.b16 %v1767
    %v1803 = vunpack.c.l.b16 %v1768
    %v1804 = vunpack.c.h.b16 %v1768
    %v1805 = vunpack.c.l.b16 %v1769
    %v1806 = vunpack.c.h.b16 %v1769
    %v1807 = vunpack.c.l.b16 %v1770
    %v1808 = vunpack.c.h.b16 %v1770
    %v1809 = vunpack.c.l.b16 %v1771
    %v1810 = vunpack.c.h.b16 %v1771
    %v1811 = vunpack.c.l.b16 %v1772
    %v1812 = vunpack.c.h.b16 %v1772
    %v1813 = vunpack.c.l.b16 %v1773
    %v1814 = vunpack.c.h.b16 %v1773
    %v1815 = vunpack.c.l.b16 %v1774
    %v1816 = vunpack.c.h.b16 %v1774
    %v1817 = vunpack.c.l.b16 %v1775
    %v1818 = vunpack.c.h.b16 %v1775
    %v1819 = vunpack.c.l.b16 %v1776
    %v1820 = vunpack.c.h.b16 %v1776
    %v1821 = vunpack.c.l.b16 %v1777
    %v1822 = vunpack.c.h.b16 %v1777
    %v1823 = vunpack.c.l.b16 %v1778
    %v1824 = vunpack.c.h.b16 %v1778
    %v1825 = vunpack.c.l.b16 %v1779
    %v1826 = vunpack.c.h.b16 %v1779
    %v1827 = vunpack.c.l.b16 %v1780
    %v1828 = vunpack.c.h.b16 %v1780
    %v1829 = vpack.c.b16 %v1799, %v1797
    %v1830 = vpack.c.b16 %v1800, %v1798
    %v1831 = vpack.c.b16 %v1803, %v1801
    %v1832 = vpack.c.b16 %v1804, %v1802
    %v1833 = vpack.c.b16 %v1807, %v1805
    %v1834 = vpack.c.b16 %v1808, %v1806
    %v1835 = vpack.c.b16 %v1811, %v1809
    %v1836 = vpack.c.b16 %v1812, %v1810
    %v1837 = vpack.c.b16 %v1815, %v1813
    %v1838 = vpack.c.b16 %v1816, %v1814
    %v1839 = vpack.c.b16 %v1819, %v1817
    %v1840 = vpack.c.b16 %v1820, %v1818
    %v1841 = vpack.c.b16 %v1823, %v1821
    %v1842 = vpack.c.b16 %v1824, %v1822
    %v1843 = vpack.c.b16 %v1827, %v1825
    %v1844 = vpack.c.b16 %v1828, %v1826
    %1861 = vmatprep.subr.bf16.mxu0 %v1830
    %1862 = vmatpush1.bf16.msra.mxu0 %v1829
    %1863 = vmatprep.subr.bf16.mxu0 %v1832
    %1864 = vmatpush1.bf16.msra.mxu0 %v1831
    %1865 = vmatprep.subr.bf16.mxu0 %v1834
    %1866 = vmatpush1.bf16.msra.mxu0 %v1833
    %1867 = vmatprep.subr.bf16.mxu0 %v1836
    %1868 = vmatpush1.bf16.msra.mxu0 %v1835
    %1869 = vmatprep.subr.bf16.mxu0 %v1838
    %1870 = vmatpush1.bf16.msra.mxu0 %v1837
    %1871 = vmatprep.subr.bf16.mxu0 %v1840
    %1872 = vmatpush1.bf16.msra.mxu0 %v1839
    %1873 = vmatprep.subr.bf16.mxu0 %v1842
    %1874 = vmatpush1.bf16.msra.mxu0 %v1841
    %1875 = vmatprep.subr.bf16.mxu0 %v1844
    %1876 = vmatpush1.bf16.msra.mxu0 %v1843
    %1877 = vmatprep.subr.bf16.mxu0 0
    %1878 = vmatpush1.bf16.msra.mxu0 0
    %1879 = vmatprep.subr.bf16.mxu0 0
    %1880 = vmatpush1.bf16.msra.mxu0 0
    %1881 = vmatprep.subr.bf16.mxu0 0
    %1882 = vmatpush1.bf16.msra.mxu0 0
    %1883 = vmatprep.subr.bf16.mxu0 0
    %1884 = vmatpush1.bf16.msra.mxu0 0
    %1885 = vmatprep.subr.bf16.mxu0 0
    %1886 = vmatpush1.bf16.msra.mxu0 0
    %1887 = vmatprep.subr.bf16.mxu0 0
    %1888 = vmatpush1.bf16.msra.mxu0 0
    %1889 = vmatprep.subr.bf16.mxu0 0
    %1890 = vmatpush1.bf16.msra.mxu0 0
    %1891 = vmatprep.subr.bf16.mxu0 0
    %1892 = vmatpush1.bf16.msra.mxu0 0
    %1893 = vmatprep.mubr.bf16.mxu0 0
    %1894 = vmatmul.mubr.bf16.gmra.mrb[0].mxu0 %v1757
    %v1895 = vpop.f32.mrb[0].mxu0
    %v1896 = vadd.f32 0.0, %v1895
    %v1897 = vpop.f32.mrb[0].mxu0
    %v1898 = vadd.f32 0.0, %v1897
    %v1899 = vpop.f32.mrb[0].mxu0
    %v1900 = vadd.f32 0.0, %v1899
    %v1901 = vpop.f32.mrb[0].mxu0
    %v1902 = vadd.f32 0.0, %v1901
    %1903 = vmatprep.mubr.bf16.mxu0 0
    %1904 = vmatmul.mubr.bf16.gmra.mrb[0].mxu0 %v1758
    %v1905 = vpop.f32.mrb[0].mxu0
    %v1906 = vadd.f32 0.0, %v1905
    %v1907 = vpop.f32.mrb[0].mxu0
    %v1908 = vadd.f32 0.0, %v1907
    %v1909 = vpop.f32.mrb[0].mxu0
    %v1910 = vadd.f32 0.0, %v1909
    %v1911 = vpop.f32.mrb[0].mxu0
    %v1912 = vadd.f32 0.0, %v1911
    %1913 = vmatprep.mubr.bf16.mxu0 0
    %1914 = vmatmul.mubr.bf16.gmra.mrb[0].mxu0 %v1759
    %v1915 = vpop.f32.mrb[0].mxu0
    %v1916 = vadd.f32 0.0, %v1915
    %v1917 = vpop.f32.mrb[0].mxu0
    %v1918 = vadd.f32 0.0, %v1917
    %v1919 = vpop.f32.mrb[0].mxu0
    %v1920 = vadd.f32 0.0, %v1919
    %v1921 = vpop.f32.mrb[0].mxu0
    %v1922 = vadd.f32 0.0, %v1921
    %1923 = vmatprep.mubr.bf16.mxu0 0
    %1924 = vmatmul.mubr.bf16.gmra.mrb[0].mxu0 %v1760
    %v1925 = vpop.f32.mrb[0].mxu0
    %v1926 = vadd.f32 0.0, %v1925
    %v1927 = vpop.f32.mrb[0].mxu0
    %v1928 = vadd.f32 0.0, %v1927
    %v1929 = vpop.f32.mrb[0].mxu0
    %v1930 = vadd.f32 0.0, %v1929
    %v1931 = vpop.f32.mrb[0].mxu0
    %v1932 = vadd.f32 0.0, %v1931
    %1933 = vmatprep.mubr.bf16.mxu0 0
    %1934 = vmatmul.mubr.bf16.gmra.mrb[0].mxu0 %v1761
    %v1935 = vpop.f32.mrb[0].mxu0
    %v1936 = vadd.f32 0.0, %v1935
    %v1937 = vpop.f32.mrb[0].mxu0
    %v1938 = vadd.f32 0.0, %v1937
    %v1939 = vpop.f32.mrb[0].mxu0
    %v1940 = vadd.f32 0.0, %v1939
    %v1941 = vpop.f32.mrb[0].mxu0
    %v1942 = vadd.f32 0.0, %v1941
    %1943 = vmatprep.mubr.bf16.mxu0 0
    %1944 = vmatmul.mubr.bf16.gmra.mrb[0].mxu0 %v1762
    %v1945 = vpop.f32.mrb[0].mxu0
    %v1946 = vadd.f32 0.0, %v1945
    %v1947 = vpop.f32.mrb[0].mxu0
    %v1948 = vadd.f32 0.0, %v1947
    %v1949 = vpop.f32.mrb[0].mxu0
    %v1950 = vadd.f32 0.0, %v1949
    %v1951 = vpop.f32.mrb[0].mxu0
    %v1952 = vadd.f32 0.0, %v1951
    %1953 = vmatprep.mubr.bf16.mxu0 0
    %1954 = vmatmul.mubr.bf16.gmra.mrb[0].mxu0 %v1763
    %v1955 = vpop.f32.mrb[0].mxu0
    %v1956 = vadd.f32 0.0, %v1955
    %v1957 = vpop.f32.mrb[0].mxu0
    %v1958 = vadd.f32 0.0, %v1957
    %v1959 = vpop.f32.mrb[0].mxu0
    %v1960 = vadd.f32 0.0, %v1959
    %v1961 = vpop.f32.mrb[0].mxu0
    %v1962 = vadd.f32 0.0, %v1961
    %1963 = vmatprep.mubr.bf16.mxu0 0
    %1964 = vmatmul.mubr.bf16.gmra.mrb[0].mxu0 %v1764
    %v1965 = vpop.f32.mrb[0].mxu0
    %v1966 = vadd.f32 0.0, %v1965
    %v1967 = vpop.f32.mrb[0].mxu0
    %v1968 = vadd.f32 0.0, %v1967
    %v1969 = vpop.f32.mrb[0].mxu0
    %v1970 = vadd.f32 0.0, %v1969
    %v1971 = vpop.f32.mrb[0].mxu0
    %v1972 = vadd.f32 0.0, %v1971
    %1973 = vdwg.mxu0
    %v1974 = vadd.f32 %v1467, %v1896
    %v1975 = vadd.f32 %v1468, %v1898
    %v1976 = vadd.f32 %v1469, %v1900
    %v1977 = vadd.f32 %v1470, %v1902
    %v1978 = vadd.f32 %v1471, %v1906
    %v1979 = vadd.f32 %v1472, %v1908
    %v1980 = vadd.f32 %v1473, %v1910
    %v1981 = vadd.f32 %v1474, %v1912
    %v1982 = vadd.f32 %v1475, %v1916
    %v1983 = vadd.f32 %v1476, %v1918
    %v1984 = vadd.f32 %v1477, %v1920
    %v1985 = vadd.f32 %v1478, %v1922
    %v1986 = vadd.f32 %v1479, %v1926
    %v1987 = vadd.f32 %v1480, %v1928
    %v1988 = vadd.f32 %v1481, %v1930
    %v1989 = vadd.f32 %v1482, %v1932
    %v1990 = vadd.f32 %v1483, %v1936
    %v1991 = vadd.f32 %v1484, %v1938
    %v1992 = vadd.f32 %v1485, %v1940
    %v1993 = vadd.f32 %v1486, %v1942
    %v1994 = vadd.f32 %v1487, %v1946
    %v1995 = vadd.f32 %v1488, %v1948
    %v1996 = vadd.f32 %v1489, %v1950
    %v1997 = vadd.f32 %v1490, %v1952
    %v1998 = vadd.f32 %v1491, %v1956
    %v1999 = vadd.f32 %v1492, %v1958
    %v2000 = vadd.f32 %v1493, %v1960
    %v2001 = vadd.f32 %v1494, %v1962
    %v2002 = vadd.f32 %v1495, %v1966
    %v2003 = vadd.f32 %v1496, %v1968
    %v2004 = vadd.f32 %v1497, %v1970
    %v2005 = vadd.f32 %v1498, %v1972
    %s2006 = scalar_lea.vmem %s0, 512
    %v2007 = vld [vmem:[%s2006] sm:$0xff]
    %v2008 = vld [vmem:[%s2006 + $0x8] sm:$0xff]
    %v2009 = vld [vmem:[%s2006 + $0x10] sm:$0xff]
    %v2010 = vld [vmem:[%s2006 + $0x18] sm:$0xff]
    %v2011 = vld [vmem:[%s2006 + $0x20] sm:$0xff]
    %v2012 = vld [vmem:[%s2006 + $0x28] sm:$0xff]
    %v2013 = vld [vmem:[%s2006 + $0x30] sm:$0xff]
    %v2014 = vld [vmem:[%s2006 + $0x38] sm:$0xff]
    %v2015 = vld [vmem:[%s2006 + $0x40] sm:$0xff]
    %v2016 = vld [vmem:[%s2006 + $0x48] sm:$0xff]
    %v2017 = vld [vmem:[%s2006 + $0x50] sm:$0xff]
    %v2018 = vld [vmem:[%s2006 + $0x58] sm:$0xff]
    %v2019 = vld [vmem:[%s2006 + $0x60] sm:$0xff]
    %v2020 = vld [vmem:[%s2006 + $0x68] sm:$0xff]
    %v2021 = vld [vmem:[%s2006 + $0x70] sm:$0xff]
    %v2022 = vld [vmem:[%s2006 + $0x78] sm:$0xff]
    %2023 = vset.pattern.permute.xlu0 0
    %2024 = vperm.xlu0 %2023, %v2007
    %v2025 = vpop.permute.xlu0 %2024
    %2026 = vset.pattern.permute.xlu0 0
    %2027 = vperm.xlu0 %2026, %v2008
    %v2028 = vpop.permute.xlu0 %2027
    %2029 = vset.pattern.permute.xlu0 0
    %2030 = vperm.xlu0 %2029, %v2009
    %v2031 = vpop.permute.xlu0 %2030
    %2032 = vset.pattern.permute.xlu0 0
    %2033 = vperm.xlu0 %2032, %v2010
    %v2034 = vpop.permute.xlu0 %2033
    %2035 = vset.pattern.permute.xlu0 0
    %2036 = vperm.xlu0 %2035, %v2011
    %v2037 = vpop.permute.xlu0 %2036
    %2038 = vset.pattern.permute.xlu0 0
    %2039 = vperm.xlu0 %2038, %v2012
    %v2040 = vpop.permute.xlu0 %2039
    %2041 = vset.pattern.permute.xlu0 0
    %2042 = vperm.xlu0 %2041, %v2013
    %v2043 = vpop.permute.xlu0 %2042
    %2044 = vset.pattern.permute.xlu0 0
    %2045 = vperm.xlu0 %2044, %v2014
    %v2046 = vpop.permute.xlu0 %2045
    %2047 = vset.pattern.permute.xlu0 0
    %2048 = vperm.xlu0 %2047, %v2015
    %v2049 = vpop.permute.xlu0 %2048
    %2050 = vset.pattern.permute.xlu0 0
    %2051 = vperm.xlu0 %2050, %v2016
    %v2052 = vpop.permute.xlu0 %2051
    %2053 = vset.pattern.permute.xlu0 0
    %2054 = vperm.xlu0 %2053, %v2017
    %v2055 = vpop.permute.xlu0 %2054
    %2056 = vset.pattern.permute.xlu0 0
    %2057 = vperm.xlu0 %2056, %v2018
    %v2058 = vpop.permute.xlu0 %2057
    %2059 = vset.pattern.permute.xlu0 0
    %2060 = vperm.xlu0 %2059, %v2019
    %v2061 = vpop.permute.xlu0 %2060
    %2062 = vset.pattern.permute.xlu0 0
    %2063 = vperm.xlu0 %2062, %v2020
    %v2064 = vpop.permute.xlu0 %2063
    %2065 = vset.pattern.permute.xlu0 0
    %2066 = vperm.xlu0 %2065, %v2021
    %v2067 = vpop.permute.xlu0 %2066
    %2068 = vset.pattern.permute.xlu0 0
    %2069 = vperm.xlu0 %2068, %v2022
    %v2070 = vpop.permute.xlu0 %2069
    %vm2071 = vcmp.eq.s32.totalorder %v2025, %v42
    %vm2072 = vcmp.eq.s32.totalorder %v2028, %v42
    %vm2073 = vcmp.eq.s32.totalorder %v2031, %v42
    %vm2074 = vcmp.eq.s32.totalorder %v2034, %v42
    %vm2075 = vcmp.eq.s32.totalorder %v2037, %v42
    %vm2076 = vcmp.eq.s32.totalorder %v2040, %v42
    %vm2077 = vcmp.eq.s32.totalorder %v2043, %v42
    %vm2078 = vcmp.eq.s32.totalorder %v2046, %v42
    %vm2079 = vcmp.eq.s32.totalorder %v2049, %v42
    %vm2080 = vcmp.eq.s32.totalorder %v2052, %v42
    %vm2081 = vcmp.eq.s32.totalorder %v2055, %v42
    %vm2082 = vcmp.eq.s32.totalorder %v2058, %v42
    %vm2083 = vcmp.eq.s32.totalorder %v2061, %v42
    %vm2084 = vcmp.eq.s32.totalorder %v2064, %v42
    %vm2085 = vcmp.eq.s32.totalorder %v2067, %v42
    %vm2086 = vcmp.eq.s32.totalorder %v2070, %v42
    %v2087 = vsel %vm2071, 1, 0
    %v2088 = vsel %vm2072, 1, 0
    %v2089 = vsel %vm2073, 1, 0
    %v2090 = vsel %vm2074, 1, 0
    %v2091 = vsel %vm2075, 1, 0
    %v2092 = vsel %vm2076, 1, 0
    %v2093 = vsel %vm2077, 1, 0
    %v2094 = vsel %vm2078, 1, 0
    %v2095 = vsel %vm2079, 1, 0
    %v2096 = vsel %vm2080, 1, 0
    %v2097 = vsel %vm2081, 1, 0
    %v2098 = vsel %vm2082, 1, 0
    %v2099 = vsel %vm2083, 1, 0
    %v2100 = vsel %vm2084, 1, 0
    %v2101 = vsel %vm2085, 1, 0
    %v2102 = vsel %vm2086, 1, 0
    %v2103 = vcvt.s32.f32 %v2087
    %v2104 = vcvt.s32.f32 %v2088
    %v2105 = vcvt.s32.f32 %v2089
    %v2106 = vcvt.s32.f32 %v2090
    %v2107 = vcvt.s32.f32 %v2091
    %v2108 = vcvt.s32.f32 %v2092
    %v2109 = vcvt.s32.f32 %v2093
    %v2110 = vcvt.s32.f32 %v2094
    %v2111 = vcvt.s32.f32 %v2095
    %v2112 = vcvt.s32.f32 %v2096
    %v2113 = vcvt.s32.f32 %v2097
    %v2114 = vcvt.s32.f32 %v2098
    %v2115 = vcvt.s32.f32 %v2099
    %v2116 = vcvt.s32.f32 %v2100
    %v2117 = vcvt.s32.f32 %v2101
    %v2118 = vcvt.s32.f32 %v2102
    %2119 = vmatprep.subr.mxu0 0.0
    %2120 = vmatpush1.msra.mxu0 %v25
    %2121 = vmatprep.subr.mxu0 0.0
    %2122 = vmatpush1.msra.mxu0 %v26
    %2123 = vmatprep.subr.mxu0 0.0
    %2124 = vmatpush1.msra.mxu0 %v27
    %2125 = vmatprep.subr.mxu0 0.0
    %2126 = vmatpush1.msra.mxu0 %v28
    %2127 = vmatprep.subr.mxu0 0.0
    %2128 = vmatpush1.msra.mxu0 %v29
    %2129 = vmatprep.subr.mxu0 0.0
    %2130 = vmatpush1.msra.mxu0 %v30
    %2131 = vmatprep.subr.mxu0 0.0
    %2132 = vmatpush1.msra.mxu0 %v31
    %2133 = vmatprep.subr.mxu0 0.0
    %2134 = vmatpush1.msra.mxu0 %v32
    %2135 = vmatprep.subr.mxu0 0.0
    %2136 = vmatpush1.msra.mxu0 %v33
    %2137 = vmatprep.subr.mxu0 0.0
    %2138 = vmatpush1.msra.mxu0 %v34
    %2139 = vmatprep.subr.mxu0 0.0
    %2140 = vmatpush1.msra.mxu0 %v35
    %2141 = vmatprep.subr.mxu0 0.0
    %2142 = vmatpush1.msra.mxu0 %v36
    %2143 = vmatprep.subr.mxu0 0.0
    %2144 = vmatpush1.msra.mxu0 %v37
    %2145 = vmatprep.subr.mxu0 0.0
    %2146 = vmatpush1.msra.mxu0 %v38
    %2147 = vmatprep.subr.mxu0 0.0
    %2148 = vmatpush1.msra.mxu0 %v39
    %2149 = vmatprep.subr.mxu0 0.0
    %2150 = vmatpush1.msra.mxu0 %v40
    %2151 = vmatprep.subr.mxu0 0.0
    %2152 = vmatpush1.msra.mxu0 0.0
    %2153 = vmatprep.subr.mxu0 0.0
    %2154 = vmatpush1.msra.mxu0 0.0
    %2155 = vmatprep.subr.mxu0 0.0
    %2156 = vmatpush1.msra.mxu0 0.0
    %2157 = vmatprep.subr.mxu0 0.0
    %2158 = vmatpush1.msra.mxu0 0.0
    %2159 = vmatprep.subr.mxu0 0.0
    %2160 = vmatpush1.msra.mxu0 0.0
    %2161 = vmatprep.subr.mxu0 0.0
    %2162 = vmatpush1.msra.mxu0 0.0
    %2163 = vmatprep.subr.mxu0 0.0
    %2164 = vmatpush1.msra.mxu0 0.0
    %2165 = vmatprep.subr.mxu0 0.0
    %2166 = vmatpush1.msra.mxu0 0.0
    %2167 = vmatprep.subr.mxu0 0.0
    %2168 = vmatpush1.msra.mxu0 0.0
    %2169 = vmatprep.subr.mxu0 0.0
    %2170 = vmatpush1.msra.mxu0 0.0
    %2171 = vmatprep.subr.mxu0 0.0
    %2172 = vmatpush1.msra.mxu0 0.0
    %2173 = vmatprep.subr.mxu0 0.0
    %2174 = vmatpush1.msra.mxu0 0.0
    %2175 = vmatprep.subr.mxu0 0.0
    %2176 = vmatpush1.msra.mxu0 0.0
    %2177 = vmatprep.subr.mxu0 0.0
    %2178 = vmatpush1.msra.mxu0 0.0
    %2179 = vmatprep.subr.mxu0 0.0
    %2180 = vmatpush1.msra.mxu0 0.0
    %2181 = vmatprep.subr.mxu0 0.0
    %2182 = vmatpush1.msra.mxu0 0.0
    %2183 = vmatprep.mubr.f32.mxu0 0.0
    %2184 = vmatmul.mubr.f32.gmra.mrb[0].mxu0 %v2103
    %v2185 = vpop.f32.mrb[0].mxu0
    %v2186 = vadd.f32 0.0, %v2185
    %v2187 = vpop.f32.mrb[0].mxu0
    %2188 = vmatprep.mubr.f32.mxu0 0.0
    %2189 = vmatmul.mubr.f32.gmra.mrb[0].mxu0 %v2104
    %v2190 = vpop.f32.mrb[0].mxu0
    %v2191 = vadd.f32 0.0, %v2190
    %v2192 = vpop.f32.mrb[0].mxu0
    %2193 = vmatprep.mubr.f32.mxu0 0.0
    %2194 = vmatmul.mubr.f32.gmra.mrb[0].mxu0 %v2105
    %v2195 = vpop.f32.mrb[0].mxu0
    %v2196 = vadd.f32 0.0, %v2195
    %v2197 = vpop.f32.mrb[0].mxu0
    %2198 = vmatprep.mubr.f32.mxu0 0.0
    %2199 = vmatmul.mubr.f32.gmra.mrb[0].mxu0 %v2106
    %v2200 = vpop.f32.mrb[0].mxu0
    %v2201 = vadd.f32 0.0, %v2200
    %v2202 = vpop.f32.mrb[0].mxu0
    %2203 = vmatprep.mubr.f32.mxu0 0.0
    %2204 = vmatmul.mubr.f32.gmra.mrb[0].mxu0 %v2107
    %v2205 = vpop.f32.mrb[0].mxu0
    %v2206 = vadd.f32 0.0, %v2205
    %v2207 = vpop.f32.mrb[0].mxu0
    %2208 = vmatprep.mubr.f32.mxu0 0.0
    %2209 = vmatmul.mubr.f32.gmra.mrb[0].mxu0 %v2108
    %v2210 = vpop.f32.mrb[0].mxu0
    %v2211 = vadd.f32 0.0, %v2210
    %v2212 = vpop.f32.mrb[0].mxu0
    %2213 = vmatprep.mubr.f32.mxu0 0.0
    %2214 = vmatmul.mubr.f32.gmra.mrb[0].mxu0 %v2109
    %v2215 = vpop.f32.mrb[0].mxu0
    %v2216 = vadd.f32 0.0, %v2215
    %v2217 = vpop.f32.mrb[0].mxu0
    %2218 = vmatprep.mubr.f32.mxu0 0.0
    %2219 = vmatmul.mubr.f32.gmra.mrb[0].mxu0 %v2110
    %v2220 = vpop.f32.mrb[0].mxu0
    %v2221 = vadd.f32 0.0, %v2220
    %v2222 = vpop.f32.mrb[0].mxu0
    %2223 = vmatprep.mubr.f32.mxu0 0.0
    %2224 = vmatmul.mubr.f32.gmra.mrb[0].mxu0 %v2111
    %v2225 = vpop.f32.mrb[0].mxu0
    %v2226 = vadd.f32 0.0, %v2225
    %v2227 = vpop.f32.mrb[0].mxu0
    %2228 = vmatprep.mubr.f32.mxu0 0.0
    %2229 = vmatmul.mubr.f32.gmra.mrb[0].mxu0 %v2112
    %v2230 = vpop.f32.mrb[0].mxu0
    %v2231 = vadd.f32 0.0, %v2230
    %v2232 = vpop.f32.mrb[0].mxu0
    %2233 = vmatprep.mubr.f32.mxu0 0.0
    %2234 = vmatmul.mubr.f32.gmra.mrb[0].mxu0 %v2113
    %v2235 = vpop.f32.mrb[0].mxu0
    %v2236 = vadd.f32 0.0, %v2235
    %v2237 = vpop.f32.mrb[0].mxu0
    %2238 = vmatprep.mubr.f32.mxu0 0.0
    %2239 = vmatmul.mubr.f32.gmra.mrb[0].mxu0 %v2114
    %v2240 = vpop.f32.mrb[0].mxu0
    %v2241 = vadd.f32 0.0, %v2240
    %v2242 = vpop.f32.mrb[0].mxu0
    %2243 = vmatprep.mubr.f32.mxu0 0.0
    %2244 = vmatmul.mubr.f32.gmra.mrb[0].mxu0 %v2115
    %v2245 = vpop.f32.mrb[0].mxu0
    %v2246 = vadd.f32 0.0, %v2245
    %v2247 = vpop.f32.mrb[0].mxu0
    %2248 = vmatprep.mubr.f32.mxu0 0.0
    %2249 = vmatmul.mubr.f32.gmra.mrb[0].mxu0 %v2116
    %v2250 = vpop.f32.mrb[0].mxu0
    %v2251 = vadd.f32 0.0, %v2250
    %v2252 = vpop.f32.mrb[0].mxu0
    %2253 = vmatprep.mubr.f32.mxu0 0.0
    %2254 = vmatmul.mubr.f32.gmra.mrb[0].mxu0 %v2117
    %v2255 = vpop.f32.mrb[0].mxu0
    %v2256 = vadd.f32 0.0, %v2255
    %v2257 = vpop.f32.mrb[0].mxu0
    %2258 = vmatprep.mubr.f32.mxu0 0.0
    %2259 = vmatmul.mubr.f32.gmra.mrb[0].mxu0 %v2118
    %v2260 = vpop.f32.mrb[0].mxu0
    %v2261 = vadd.f32 0.0, %v2260
    %v2262 = vpop.f32.mrb[0].mxu0
    %2263 = vdwg.mxu0
    %v2264 = vpack.c.bf16 %v2191, %v2186
    %v2265 = vpack.c.bf16 %v2201, %v2196
    %v2266 = vpack.c.bf16 %v2211, %v2206
    %v2267 = vpack.c.bf16 %v2221, %v2216
    %v2268 = vpack.c.bf16 %v2231, %v2226
    %v2269 = vpack.c.bf16 %v2241, %v2236
    %v2270 = vpack.c.bf16 %v2251, %v2246
    %v2271 = vpack.c.bf16 %v2261, %v2256
    %v2272 = vld [vmem:[%s2 + $0x200] sm:$0xff]
    %v2273 = vld [vmem:[%s2 + $0x208] sm:$0xff]
    %v2274 = vld [vmem:[%s2 + $0x210] sm:$0xff]
    %v2275 = vld [vmem:[%s2 + $0x218] sm:$0xff]
    %v2276 = vld [vmem:[%s2 + $0x220] sm:$0xff]
    %v2277 = vld [vmem:[%s2 + $0x228] sm:$0xff]
    %v2278 = vld [vmem:[%s2 + $0x230] sm:$0xff]
    %v2279 = vld [vmem:[%s2 + $0x238] sm:$0xff]
    %v2280 = vld [vmem:[%s2 + $0x240] sm:$0xff]
    %v2281 = vld [vmem:[%s2 + $0x248] sm:$0xff]
    %v2282 = vld [vmem:[%s2 + $0x250] sm:$0xff]
    %v2283 = vld [vmem:[%s2 + $0x258] sm:$0xff]
    %v2284 = vld [vmem:[%s2 + $0x260] sm:$0xff]
    %v2285 = vld [vmem:[%s2 + $0x268] sm:$0xff]
    %v2286 = vld [vmem:[%s2 + $0x270] sm:$0xff]
    %v2287 = vld [vmem:[%s2 + $0x278] sm:$0xff]
    %v2304 = vunpack.c.l.b16 %v2272
    %v2305 = vunpack.c.h.b16 %v2272
    %v2306 = vunpack.c.l.b16 %v2273
    %v2307 = vunpack.c.h.b16 %v2273
    %v2308 = vunpack.c.l.b16 %v2274
    %v2309 = vunpack.c.h.b16 %v2274
    %v2310 = vunpack.c.l.b16 %v2275
    %v2311 = vunpack.c.h.b16 %v2275
    %v2312 = vunpack.c.l.b16 %v2276
    %v2313 = vunpack.c.h.b16 %v2276
    %v2314 = vunpack.c.l.b16 %v2277
    %v2315 = vunpack.c.h.b16 %v2277
    %v2316 = vunpack.c.l.b16 %v2278
    %v2317 = vunpack.c.h.b16 %v2278
    %v2318 = vunpack.c.l.b16 %v2279
    %v2319 = vunpack.c.h.b16 %v2279
    %v2320 = vunpack.c.l.b16 %v2280
    %v2321 = vunpack.c.h.b16 %v2280
    %v2322 = vunpack.c.l.b16 %v2281
    %v2323 = vunpack.c.h.b16 %v2281
    %v2324 = vunpack.c.l.b16 %v2282
    %v2325 = vunpack.c.h.b16 %v2282
    %v2326 = vunpack.c.l.b16 %v2283
    %v2327 = vunpack.c.h.b16 %v2283
    %v2328 = vunpack.c.l.b16 %v2284
    %v2329 = vunpack.c.h.b16 %v2284
    %v2330 = vunpack.c.l.b16 %v2285
    %v2331 = vunpack.c.h.b16 %v2285
    %v2332 = vunpack.c.l.b16 %v2286
    %v2333 = vunpack.c.h.b16 %v2286
    %v2334 = vunpack.c.l.b16 %v2287
    %v2335 = vunpack.c.h.b16 %v2287
    %v2336 = vpack.c.b16 %v2306, %v2304
    %v2337 = vpack.c.b16 %v2307, %v2305
    %v2338 = vpack.c.b16 %v2310, %v2308
    %v2339 = vpack.c.b16 %v2311, %v2309
    %v2340 = vpack.c.b16 %v2314, %v2312
    %v2341 = vpack.c.b16 %v2315, %v2313
    %v2342 = vpack.c.b16 %v2318, %v2316
    %v2343 = vpack.c.b16 %v2319, %v2317
    %v2344 = vpack.c.b16 %v2322, %v2320
    %v2345 = vpack.c.b16 %v2323, %v2321
    %v2346 = vpack.c.b16 %v2326, %v2324
    %v2347 = vpack.c.b16 %v2327, %v2325
    %v2348 = vpack.c.b16 %v2330, %v2328
    %v2349 = vpack.c.b16 %v2331, %v2329
    %v2350 = vpack.c.b16 %v2334, %v2332
    %v2351 = vpack.c.b16 %v2335, %v2333
    %2368 = vmatprep.subr.bf16.mxu0 %v2337
    %2369 = vmatpush1.bf16.msra.mxu0 %v2336
    %2370 = vmatprep.subr.bf16.mxu0 %v2339
    %2371 = vmatpush1.bf16.msra.mxu0 %v2338
    %2372 = vmatprep.subr.bf16.mxu0 %v2341
    %2373 = vmatpush1.bf16.msra.mxu0 %v2340
    %2374 = vmatprep.subr.bf16.mxu0 %v2343
    %2375 = vmatpush1.bf16.msra.mxu0 %v2342
    %2376 = vmatprep.subr.bf16.mxu0 %v2345
    %2377 = vmatpush1.bf16.msra.mxu0 %v2344
    %2378 = vmatprep.subr.bf16.mxu0 %v2347
    %2379 = vmatpush1.bf16.msra.mxu0 %v2346
    %2380 = vmatprep.subr.bf16.mxu0 %v2349
    %2381 = vmatpush1.bf16.msra.mxu0 %v2348
    %2382 = vmatprep.subr.bf16.mxu0 %v2351
    %2383 = vmatpush1.bf16.msra.mxu0 %v2350
    %2384 = vmatprep.subr.bf16.mxu0 0
    %2385 = vmatpush1.bf16.msra.mxu0 0
    %2386 = vmatprep.subr.bf16.mxu0 0
    %2387 = vmatpush1.bf16.msra.mxu0 0
    %2388 = vmatprep.subr.bf16.mxu0 0
    %2389 = vmatpush1.bf16.msra.mxu0 0
    %2390 = vmatprep.subr.bf16.mxu0 0
    %2391 = vmatpush1.bf16.msra.mxu0 0
    %2392 = vmatprep.subr.bf16.mxu0 0
    %2393 = vmatpush1.bf16.msra.mxu0 0
    %2394 = vmatprep.subr.bf16.mxu0 0
    %2395 = vmatpush1.bf16.msra.mxu0 0
    %2396 = vmatprep.subr.bf16.mxu0 0
    %2397 = vmatpush1.bf16.msra.mxu0 0
    %2398 = vmatprep.subr.bf16.mxu0 0
    %2399 = vmatpush1.bf16.msra.mxu0 0
    %2400 = vmatprep.mubr.bf16.mxu0 0
    %2401 = vmatmul.mubr.bf16.gmra.mrb[0].mxu0 %v2264
    %v2402 = vpop.f32.mrb[0].mxu0
    %v2403 = vadd.f32 0.0, %v2402
    %v2404 = vpop.f32.mrb[0].mxu0
    %v2405 = vadd.f32 0.0, %v2404
    %v2406 = vpop.f32.mrb[0].mxu0
    %v2407 = vadd.f32 0.0, %v2406
    %v2408 = vpop.f32.mrb[0].mxu0
    %v2409 = vadd.f32 0.0, %v2408
    %2410 = vmatprep.mubr.bf16.mxu0 0
    %2411 = vmatmul.mubr.bf16.gmra.mrb[0].mxu0 %v2265
    %v2412 = vpop.f32.mrb[0].mxu0
    %v2413 = vadd.f32 0.0, %v2412
    %v2414 = vpop.f32.mrb[0].mxu0
    %v2415 = vadd.f32 0.0, %v2414
    %v2416 = vpop.f32.mrb[0].mxu0
    %v2417 = vadd.f32 0.0, %v2416
    %v2418 = vpop.f32.mrb[0].mxu0
    %v2419 = vadd.f32 0.0, %v2418
    %2420 = vmatprep.mubr.bf16.mxu0 0
    %2421 = vmatmul.mubr.bf16.gmra.mrb[0].mxu0 %v2266
    %v2422 = vpop.f32.mrb[0].mxu0
    %v2423 = vadd.f32 0.0, %v2422
    %v2424 = vpop.f32.mrb[0].mxu0
    %v2425 = vadd.f32 0.0, %v2424
    %v2426 = vpop.f32.mrb[0].mxu0
    %v2427 = vadd.f32 0.0, %v2426
    %v2428 = vpop.f32.mrb[0].mxu0
    %v2429 = vadd.f32 0.0, %v2428
    %2430 = vmatprep.mubr.bf16.mxu0 0
    %2431 = vmatmul.mubr.bf16.gmra.mrb[0].mxu0 %v2267
    %v2432 = vpop.f32.mrb[0].mxu0
    %v2433 = vadd.f32 0.0, %v2432
    %v2434 = vpop.f32.mrb[0].mxu0
    %v2435 = vadd.f32 0.0, %v2434
    %v2436 = vpop.f32.mrb[0].mxu0
    %v2437 = vadd.f32 0.0, %v2436
    %v2438 = vpop.f32.mrb[0].mxu0
    %v2439 = vadd.f32 0.0, %v2438
    %2440 = vmatprep.mubr.bf16.mxu0 0
    %2441 = vmatmul.mubr.bf16.gmra.mrb[0].mxu0 %v2268
    %v2442 = vpop.f32.mrb[0].mxu0
    %v2443 = vadd.f32 0.0, %v2442
    %v2444 = vpop.f32.mrb[0].mxu0
    %v2445 = vadd.f32 0.0, %v2444
    %v2446 = vpop.f32.mrb[0].mxu0
    %v2447 = vadd.f32 0.0, %v2446
    %v2448 = vpop.f32.mrb[0].mxu0
    %v2449 = vadd.f32 0.0, %v2448
    %2450 = vmatprep.mubr.bf16.mxu0 0
    %2451 = vmatmul.mubr.bf16.gmra.mrb[0].mxu0 %v2269
    %v2452 = vpop.f32.mrb[0].mxu0
    %v2453 = vadd.f32 0.0, %v2452
    %v2454 = vpop.f32.mrb[0].mxu0
    %v2455 = vadd.f32 0.0, %v2454
    %v2456 = vpop.f32.mrb[0].mxu0
    %v2457 = vadd.f32 0.0, %v2456
    %v2458 = vpop.f32.mrb[0].mxu0
    %v2459 = vadd.f32 0.0, %v2458
    %2460 = vmatprep.mubr.bf16.mxu0 0
    %2461 = vmatmul.mubr.bf16.gmra.mrb[0].mxu0 %v2270
    %v2462 = vpop.f32.mrb[0].mxu0
    %v2463 = vadd.f32 0.0, %v2462
    %v2464 = vpop.f32.mrb[0].mxu0
    %v2465 = vadd.f32 0.0, %v2464
    %v2466 = vpop.f32.mrb[0].mxu0
    %v2467 = vadd.f32 0.0, %v2466
    %v2468 = vpop.f32.mrb[0].mxu0
    %v2469 = vadd.f32 0.0, %v2468
    %2470 = vmatprep.mubr.bf16.mxu0 0
    %2471 = vmatmul.mubr.bf16.gmra.mrb[0].mxu0 %v2271
    %v2472 = vpop.f32.mrb[0].mxu0
    %v2473 = vadd.f32 0.0, %v2472
    %v2474 = vpop.f32.mrb[0].mxu0
    %v2475 = vadd.f32 0.0, %v2474
    %v2476 = vpop.f32.mrb[0].mxu0
    %v2477 = vadd.f32 0.0, %v2476
    %v2478 = vpop.f32.mrb[0].mxu0
    %v2479 = vadd.f32 0.0, %v2478
    %2480 = vdwg.mxu0
    %v2481 = vadd.f32 %v1974, %v2403
    %v2482 = vadd.f32 %v1975, %v2405
    %v2483 = vadd.f32 %v1976, %v2407
    %v2484 = vadd.f32 %v1977, %v2409
    %v2485 = vadd.f32 %v1978, %v2413
    %v2486 = vadd.f32 %v1979, %v2415
    %v2487 = vadd.f32 %v1980, %v2417
    %v2488 = vadd.f32 %v1981, %v2419
    %v2489 = vadd.f32 %v1982, %v2423
    %v2490 = vadd.f32 %v1983, %v2425
    %v2491 = vadd.f32 %v1984, %v2427
    %v2492 = vadd.f32 %v1985, %v2429
    %v2493 = vadd.f32 %v1986, %v2433
    %v2494 = vadd.f32 %v1987, %v2435
    %v2495 = vadd.f32 %v1988, %v2437
    %v2496 = vadd.f32 %v1989, %v2439
    %v2497 = vadd.f32 %v1990, %v2443
    %v2498 = vadd.f32 %v1991, %v2445
    %v2499 = vadd.f32 %v1992, %v2447
    %v2500 = vadd.f32 %v1993, %v2449
    %v2501 = vadd.f32 %v1994, %v2453
    %v2502 = vadd.f32 %v1995, %v2455
    %v2503 = vadd.f32 %v1996, %v2457
    %v2504 = vadd.f32 %v1997, %v2459
    %v2505 = vadd.f32 %v1998, %v2463
    %v2506 = vadd.f32 %v1999, %v2465
    %v2507 = vadd.f32 %v2000, %v2467
    %v2508 = vadd.f32 %v2001, %v2469
    %v2509 = vadd.f32 %v2002, %v2473
    %v2510 = vadd.f32 %v2003, %v2475
    %v2511 = vadd.f32 %v2004, %v2477
    %v2512 = vadd.f32 %v2005, %v2479
    %v2513 = vld [vmem:[%s3] sm:$0x3]
    %v2515 = vlaneseq
    %v2516 = vshrl.u32 %v2515, 7
    %v2517 = vsub.s32 0, %v2516
    %v2518 = vrot.slane %v2513, %v2517
    %v2519 = vlaneseq
    %v2520 = vshrl.u32 %v2519, 7
    %v2521 = vsub.s32 1, %v2520
    %v2522 = vrot.slane %v2513, %v2521
    %v2525 = vadd.f32 %v2481, %v2518
    %v2526 = vadd.f32 %v2482, %v2522
    %v2527 = vadd.f32 %v2483, %v2518
    %v2528 = vadd.f32 %v2484, %v2522
    %v2529 = vadd.f32 %v2485, %v2518
    %v2530 = vadd.f32 %v2486, %v2522
    %v2531 = vadd.f32 %v2487, %v2518
    %v2532 = vadd.f32 %v2488, %v2522
    %v2533 = vadd.f32 %v2489, %v2518
    %v2534 = vadd.f32 %v2490, %v2522
    %v2535 = vadd.f32 %v2491, %v2518
    %v2536 = vadd.f32 %v2492, %v2522
    %v2537 = vadd.f32 %v2493, %v2518
    %v2538 = vadd.f32 %v2494, %v2522
    %v2539 = vadd.f32 %v2495, %v2518
    %v2540 = vadd.f32 %v2496, %v2522
    %v2541 = vadd.f32 %v2497, %v2518
    %v2542 = vadd.f32 %v2498, %v2522
    %v2543 = vadd.f32 %v2499, %v2518
    %v2544 = vadd.f32 %v2500, %v2522
    %v2545 = vadd.f32 %v2501, %v2518
    %v2546 = vadd.f32 %v2502, %v2522
    %v2547 = vadd.f32 %v2503, %v2518
    %v2548 = vadd.f32 %v2504, %v2522
    %v2549 = vadd.f32 %v2505, %v2518
    %v2550 = vadd.f32 %v2506, %v2522
    %v2551 = vadd.f32 %v2507, %v2518
    %v2552 = vadd.f32 %v2508, %v2522
    %v2553 = vadd.f32 %v2509, %v2518
    %v2554 = vadd.f32 %v2510, %v2522
    %v2555 = vadd.f32 %v2511, %v2518
    %v2556 = vadd.f32 %v2512, %v2522
    %v2557 = vmax.f32 %v2525, 0.0
    %v2558 = vmax.f32 %v2526, 0.0
    %v2559 = vmax.f32 %v2527, 0.0
    %v2560 = vmax.f32 %v2528, 0.0
    %v2561 = vmax.f32 %v2529, 0.0
    %v2562 = vmax.f32 %v2530, 0.0
    %v2563 = vmax.f32 %v2531, 0.0
    %v2564 = vmax.f32 %v2532, 0.0
    %v2565 = vmax.f32 %v2533, 0.0
    %v2566 = vmax.f32 %v2534, 0.0
    %v2567 = vmax.f32 %v2535, 0.0
    %v2568 = vmax.f32 %v2536, 0.0
    %v2569 = vmax.f32 %v2537, 0.0
    %v2570 = vmax.f32 %v2538, 0.0
    %v2571 = vmax.f32 %v2539, 0.0
    %v2572 = vmax.f32 %v2540, 0.0
    %v2573 = vmax.f32 %v2541, 0.0
    %v2574 = vmax.f32 %v2542, 0.0
    %v2575 = vmax.f32 %v2543, 0.0
    %v2576 = vmax.f32 %v2544, 0.0
    %v2577 = vmax.f32 %v2545, 0.0
    %v2578 = vmax.f32 %v2546, 0.0
    %v2579 = vmax.f32 %v2547, 0.0
    %v2580 = vmax.f32 %v2548, 0.0
    %v2581 = vmax.f32 %v2549, 0.0
    %v2582 = vmax.f32 %v2550, 0.0
    %v2583 = vmax.f32 %v2551, 0.0
    %v2584 = vmax.f32 %v2552, 0.0
    %v2585 = vmax.f32 %v2553, 0.0
    %v2586 = vmax.f32 %v2554, 0.0
    %v2587 = vmax.f32 %v2555, 0.0
    %v2588 = vmax.f32 %v2556, 0.0
    %v2589 = vlaneseq
    %v2590 = vshrl.u32 %v2589, 7
    %v2591 = vadd.s32 %v2590, 8
    %v2592 = vadd.s32 %v2590, 16
    %v2593 = vadd.s32 %v2590, 24
    %v2594 = vadd.s32 %v2590, 32
    %v2595 = vadd.s32 %v2590, 40
    %v2596 = vadd.s32 %v2590, 48
    %v2597 = vadd.s32 %v2590, 56
    %v2598 = vadd.s32 %v2590, 64
    %v2599 = vadd.s32 %v2590, 72
    %v2600 = vadd.s32 %v2590, 80
    %v2601 = vadd.s32 %v2590, 88
    %v2602 = vadd.s32 %v2590, 96
    %v2603 = vadd.s32 %v2590, 104
    %v2604 = vadd.s32 %v2590, 112
    %v2605 = vadd.s32 %v2590, 120
    %v2606 = vadd.s32 %v42, 128
    %v2607 = vand.u32 %v2590, 31
    %v2608 = vand.u32 %v2591, 31
    %v2609 = vand.u32 %v2592, 31
    %v2610 = vand.u32 %v2593, 31
    %v2611 = vand.u32 %v2594, 31
    %v2612 = vand.u32 %v2595, 31
    %v2613 = vand.u32 %v2596, 31
    %v2614 = vand.u32 %v2597, 31
    %v2615 = vand.u32 %v2598, 31
    %v2616 = vand.u32 %v2599, 31
    %v2617 = vand.u32 %v2600, 31
    %v2618 = vand.u32 %v2601, 31
    %v2619 = vand.u32 %v2602, 31
    %v2620 = vand.u32 %v2603, 31
    %v2621 = vand.u32 %v2604, 31
    %v2622 = vand.u32 %v2605, 31
    %vm2623 = vcmp.ge.s32.totalorder %v42, 0
    %vm2624 = vcmp.ge.s32.totalorder %v2606, 0
    %vm2625 = vcmp.lt.s32.totalorder %v42, 64
    %vm2626 = vcmp.lt.s32.totalorder %v2606, 64
    %vm2627 = vmand %vm2623, %vm2625
    %vm2628 = vmand %vm2624, %vm2626
    %v2629 = vsel %vm2627, 30, 0
    %v2630 = vsel %vm2628, 30, 0
    %vm2631 = vcmp.ge.s32.totalorder %v42, 64
    %vm2632 = vcmp.ge.s32.totalorder %v2606, 64
    %vm2633 = vcmp.lt.s32.totalorder %v42, 128
    %vm2634 = vcmp.lt.s32.totalorder %v2606, 128
    %vm2635 = vmand %vm2631, %vm2633
    %vm2636 = vmand %vm2632, %vm2634
    %v2637 = vsel %vm2635, 29, %v2629
    %v2638 = vsel %vm2636, 29, %v2630
    %vm2639 = vcmp.ge.s32.totalorder %v42, 128
    %vm2640 = vcmp.ge.s32.totalorder %v2606, 128
    %vm2641 = vcmp.lt.s32.totalorder %v42, 192
    %vm2642 = vcmp.lt.s32.totalorder %v2606, 192
    %vm2643 = vmand %vm2639, %vm2641
    %vm2644 = vmand %vm2640, %vm2642
    %v2645 = vsel %vm2643, 28, %v2637
    %v2646 = vsel %vm2644, 28, %v2638
    %vm2647 = vcmp.lt.s32.totalorder %v2607, %v2645
    %vm2648 = vcmp.lt.s32.totalorder %v2607, %v2646
    %vm2649 = vcmp.lt.s32.totalorder %v2608, %v2645
    %vm2650 = vcmp.lt.s32.totalorder %v2608, %v2646
    %vm2651 = vcmp.lt.s32.totalorder %v2609, %v2645
    %vm2652 = vcmp.lt.s32.totalorder %v2609, %v2646
    %vm2653 = vcmp.lt.s32.totalorder %v2610, %v2645
    %vm2654 = vcmp.lt.s32.totalorder %v2610, %v2646
    %vm2655 = vcmp.lt.s32.totalorder %v2611, %v2645
    %vm2656 = vcmp.lt.s32.totalorder %v2611, %v2646
    %vm2657 = vcmp.lt.s32.totalorder %v2612, %v2645
    %vm2658 = vcmp.lt.s32.totalorder %v2612, %v2646
    %vm2659 = vcmp.lt.s32.totalorder %v2613, %v2645
    %vm2660 = vcmp.lt.s32.totalorder %v2613, %v2646
    %vm2661 = vcmp.lt.s32.totalorder %v2614, %v2645
    %vm2662 = vcmp.lt.s32.totalorder %v2614, %v2646
    %vm2663 = vcmp.lt.s32.totalorder %v2615, %v2645
    %vm2664 = vcmp.lt.s32.totalorder %v2615, %v2646
    %vm2665 = vcmp.lt.s32.totalorder %v2616, %v2645
    %vm2666 = vcmp.lt.s32.totalorder %v2616, %v2646
    %vm2667 = vcmp.lt.s32.totalorder %v2617, %v2645
    %vm2668 = vcmp.lt.s32.totalorder %v2617, %v2646
    %vm2669 = vcmp.lt.s32.totalorder %v2618, %v2645
    %vm2670 = vcmp.lt.s32.totalorder %v2618, %v2646
    %vm2671 = vcmp.lt.s32.totalorder %v2619, %v2645
    %vm2672 = vcmp.lt.s32.totalorder %v2619, %v2646
    %vm2673 = vcmp.lt.s32.totalorder %v2620, %v2645
    %vm2674 = vcmp.lt.s32.totalorder %v2620, %v2646
    %vm2675 = vcmp.lt.s32.totalorder %v2621, %v2645
    %vm2676 = vcmp.lt.s32.totalorder %v2621, %v2646
    %vm2677 = vcmp.lt.s32.totalorder %v2622, %v2645
    %vm2678 = vcmp.lt.s32.totalorder %v2622, %v2646
    %v2679 = vsel %vm2647, %v2557, 0.0
    %v2680 = vsel %vm2648, %v2558, 0.0
    %v2681 = vsel %vm2649, %v2559, 0.0
    %v2682 = vsel %vm2650, %v2560, 0.0
    %v2683 = vsel %vm2651, %v2561, 0.0
    %v2684 = vsel %vm2652, %v2562, 0.0
    %v2685 = vsel %vm2653, %v2563, 0.0
    %v2686 = vsel %vm2654, %v2564, 0.0
    %v2687 = vsel %vm2655, %v2565, 0.0
    %v2688 = vsel %vm2656, %v2566, 0.0
    %v2689 = vsel %vm2657, %v2567, 0.0
    %v2690 = vsel %vm2658, %v2568, 0.0
    %v2691 = vsel %vm2659, %v2569, 0.0
    %v2692 = vsel %vm2660, %v2570, 0.0
    %v2693 = vsel %vm2661, %v2571, 0.0
    %v2694 = vsel %vm2662, %v2572, 0.0
    %v2695 = vsel %vm2663, %v2573, 0.0
    %v2696 = vsel %vm2664, %v2574, 0.0
    %v2697 = vsel %vm2665, %v2575, 0.0
    %v2698 = vsel %vm2666, %v2576, 0.0
    %v2699 = vsel %vm2667, %v2577, 0.0
    %v2700 = vsel %vm2668, %v2578, 0.0
    %v2701 = vsel %vm2669, %v2579, 0.0
    %v2702 = vsel %vm2670, %v2580, 0.0
    %v2703 = vsel %vm2671, %v2581, 0.0
    %v2704 = vsel %vm2672, %v2582, 0.0
    %v2705 = vsel %vm2673, %v2583, 0.0
    %v2706 = vsel %vm2674, %v2584, 0.0
    %v2707 = vsel %vm2675, %v2585, 0.0
    %v2708 = vsel %vm2676, %v2586, 0.0
    %v2709 = vsel %vm2677, %v2587, 0.0
    %v2710 = vsel %vm2678, %v2588, 0.0
    %v2711 = vmax.f32 %v2679, %v2681
    %v2712 = vmax.f32 %v2711, %v2683
    %v2713 = vmax.f32 %v2712, %v2685
    %v2714 = vrot.slane %v2713, 4
    %v2715 = vmax.f32 %v2713, %v2714
    %v2716 = vrot.slane %v2715, 2
    %v2717 = vmax.f32 %v2715, %v2716
    %v2718 = vrot.slane %v2717, 1
    %v2719 = vmax.f32 %v2717, %v2718
    %v2720 = vmax.f32 %v2680, %v2682
    %v2721 = vmax.f32 %v2720, %v2684
    %v2722 = vmax.f32 %v2721, %v2686
    %v2723 = vrot.slane %v2722, 4
    %v2724 = vmax.f32 %v2722, %v2723
    %v2725 = vrot.slane %v2724, 2
    %v2726 = vmax.f32 %v2724, %v2725
    %v2727 = vrot.slane %v2726, 1
    %v2728 = vmax.f32 %v2726, %v2727
    %v2729 = vmax.f32 %v2687, %v2689
    %v2730 = vmax.f32 %v2729, %v2691
    %v2731 = vmax.f32 %v2730, %v2693
    %v2732 = vrot.slane %v2731, 4
    %v2733 = vmax.f32 %v2731, %v2732
    %v2734 = vrot.slane %v2733, 2
    %v2735 = vmax.f32 %v2733, %v2734
    %v2736 = vrot.slane %v2735, 1
    %v2737 = vmax.f32 %v2735, %v2736
    %v2738 = vmax.f32 %v2688, %v2690
    %v2739 = vmax.f32 %v2738, %v2692
    %v2740 = vmax.f32 %v2739, %v2694
    %v2741 = vrot.slane %v2740, 4
    %v2742 = vmax.f32 %v2740, %v2741
    %v2743 = vrot.slane %v2742, 2
    %v2744 = vmax.f32 %v2742, %v2743
    %v2745 = vrot.slane %v2744, 1
    %v2746 = vmax.f32 %v2744, %v2745
    %v2747 = vmax.f32 %v2695, %v2697
    %v2748 = vmax.f32 %v2747, %v2699
    %v2749 = vmax.f32 %v2748, %v2701
    %v2750 = vrot.slane %v2749, 4
    %v2751 = vmax.f32 %v2749, %v2750
    %v2752 = vrot.slane %v2751, 2
    %v2753 = vmax.f32 %v2751, %v2752
    %v2754 = vrot.slane %v2753, 1
    %v2755 = vmax.f32 %v2753, %v2754
    %v2756 = vmax.f32 %v2696, %v2698
    %v2757 = vmax.f32 %v2756, %v2700
    %v2758 = vmax.f32 %v2757, %v2702
    %v2759 = vrot.slane %v2758, 4
    %v2760 = vmax.f32 %v2758, %v2759
    %v2761 = vrot.slane %v2760, 2
    %v2762 = vmax.f32 %v2760, %v2761
    %v2763 = vrot.slane %v2762, 1
    %v2764 = vmax.f32 %v2762, %v2763
    %v2765 = vmax.f32 %v2703, %v2705
    %v2766 = vmax.f32 %v2765, %v2707
    %v2767 = vmax.f32 %v2766, %v2709
    %v2768 = vrot.slane %v2767, 4
    %v2769 = vmax.f32 %v2767, %v2768
    %v2770 = vrot.slane %v2769, 2
    %v2771 = vmax.f32 %v2769, %v2770
    %v2772 = vrot.slane %v2771, 1
    %v2773 = vmax.f32 %v2771, %v2772
    %v2774 = vmax.f32 %v2704, %v2706
    %v2775 = vmax.f32 %v2774, %v2708
    %v2776 = vmax.f32 %v2775, %v2710
    %v2777 = vrot.slane %v2776, 4
    %v2778 = vmax.f32 %v2776, %v2777
    %v2779 = vrot.slane %v2778, 2
    %v2780 = vmax.f32 %v2778, %v2779
    %v2781 = vrot.slane %v2780, 1
    %v2782 = vmax.f32 %v2780, %v2781
    %v2783 = vld [vmem:[%s4] sm:$0xff]
    %v2784 = vld [vmem:[%s4 + $0x8] sm:$0xff]
    %v2785 = vld [vmem:[%s4 + $0x10] sm:$0xff]
    %v2786 = vld [vmem:[%s4 + $0x18] sm:$0xff]
    %v2787 = vld [vmem:[%s4 + $0x20] sm:$0xff]
    %v2788 = vld [vmem:[%s4 + $0x28] sm:$0xff]
    %v2789 = vld [vmem:[%s4 + $0x30] sm:$0xff]
    %v2790 = vld [vmem:[%s4 + $0x38] sm:$0xff]
    %v2791 = vld [vmem:[%s4 + $0x40] sm:$0xff]
    %v2792 = vld [vmem:[%s4 + $0x48] sm:$0xff]
    %v2793 = vld [vmem:[%s4 + $0x50] sm:$0xff]
    %v2794 = vld [vmem:[%s4 + $0x58] sm:$0xff]
    %v2795 = vld [vmem:[%s4 + $0x60] sm:$0xff]
    %v2796 = vld [vmem:[%s4 + $0x68] sm:$0xff]
    %v2797 = vld [vmem:[%s4 + $0x70] sm:$0xff]
    %v2798 = vld [vmem:[%s4 + $0x78] sm:$0xff]
    %v2799 = vld [vmem:[%s4 + $0x80] sm:$0xff]
    %v2800 = vld [vmem:[%s4 + $0x88] sm:$0xff]
    %v2801 = vld [vmem:[%s4 + $0x90] sm:$0xff]
    %v2802 = vld [vmem:[%s4 + $0x98] sm:$0xff]
    %v2803 = vld [vmem:[%s4 + $0xa0] sm:$0xff]
    %v2804 = vld [vmem:[%s4 + $0xa8] sm:$0xff]
    %v2805 = vld [vmem:[%s4 + $0xb0] sm:$0xff]
    %v2806 = vld [vmem:[%s4 + $0xb8] sm:$0xff]
    %v2807 = vld [vmem:[%s4 + $0xc0] sm:$0xff]
    %v2808 = vld [vmem:[%s4 + $0xc8] sm:$0xff]
    %v2809 = vld [vmem:[%s4 + $0xd0] sm:$0xff]
    %v2810 = vld [vmem:[%s4 + $0xd8] sm:$0xff]
    %v2811 = vld [vmem:[%s4 + $0xe0] sm:$0xff]
    %v2812 = vld [vmem:[%s4 + $0xe8] sm:$0xff]
    %v2813 = vld [vmem:[%s4 + $0xf0] sm:$0xff]
    %v2814 = vld [vmem:[%s4 + $0xf8] sm:$0xff]
    %v2815 = vld [vmem:[%s5] sm:$0x1]
    %v2817 = vlaneseq
    %v2818 = vshrl.u32 %v2817, 7
    %v2819 = vsub.s32 0, %v2818
    %v2820 = vrot.slane %v2815, %v2819
    %vm2830 = vcmask 1041409
    %v2831 = vsel %vm2830, %v2737, %v2719
    %vm2832 = vcmask 1042434
    %v2833 = vsel %vm2832, %v2755, %v2831
    %vm2834 = vcmask 1043459
    %v2835 = vsel %vm2834, %v2773, %v2833
    %v2836 = vsel %vm2830, %v2746, %v2728
    %v2837 = vsel %vm2832, %v2764, %v2836
    %v2838 = vsel %vm2834, %v2782, %v2837
    %2841 = vmatprep.subr.mxu0 0.0
    %2842 = vmatpush1.msra.mxu0 %v2783
    %2843 = vmatprep.subr.mxu0 0.0
    %2844 = vmatpush1.msra.mxu0 %v2784
    %2845 = vmatprep.subr.mxu0 0.0
    %2846 = vmatpush1.msra.mxu0 %v2785
    %2847 = vmatprep.subr.mxu0 0.0
    %2848 = vmatpush1.msra.mxu0 %v2786
    %2849 = vmatprep.subr.mxu0 0.0
    %2850 = vmatpush1.msra.mxu0 %v2787
    %2851 = vmatprep.subr.mxu0 0.0
    %2852 = vmatpush1.msra.mxu0 %v2788
    %2853 = vmatprep.subr.mxu0 0.0
    %2854 = vmatpush1.msra.mxu0 %v2789
    %2855 = vmatprep.subr.mxu0 0.0
    %2856 = vmatpush1.msra.mxu0 %v2790
    %2857 = vmatprep.subr.mxu0 0.0
    %2858 = vmatpush1.msra.mxu0 %v2791
    %2859 = vmatprep.subr.mxu0 0.0
    %2860 = vmatpush1.msra.mxu0 %v2792
    %2861 = vmatprep.subr.mxu0 0.0
    %2862 = vmatpush1.msra.mxu0 %v2793
    %2863 = vmatprep.subr.mxu0 0.0
    %2864 = vmatpush1.msra.mxu0 %v2794
    %2865 = vmatprep.subr.mxu0 0.0
    %2866 = vmatpush1.msra.mxu0 %v2795
    %2867 = vmatprep.subr.mxu0 0.0
    %2868 = vmatpush1.msra.mxu0 %v2796
    %2869 = vmatprep.subr.mxu0 0.0
    %2870 = vmatpush1.msra.mxu0 %v2797
    %2871 = vmatprep.subr.mxu0 0.0
    %2872 = vmatpush1.msra.mxu0 %v2798
    %2873 = vmatprep.subr.mxu0 0.0
    %2874 = vmatpush1.msra.mxu0 %v2799
    %2875 = vmatprep.subr.mxu0 0.0
    %2876 = vmatpush1.msra.mxu0 %v2800
    %2877 = vmatprep.subr.mxu0 0.0
    %2878 = vmatpush1.msra.mxu0 %v2801
    %2879 = vmatprep.subr.mxu0 0.0
    %2880 = vmatpush1.msra.mxu0 %v2802
    %2881 = vmatprep.subr.mxu0 0.0
    %2882 = vmatpush1.msra.mxu0 %v2803
    %2883 = vmatprep.subr.mxu0 0.0
    %2884 = vmatpush1.msra.mxu0 %v2804
    %2885 = vmatprep.subr.mxu0 0.0
    %2886 = vmatpush1.msra.mxu0 %v2805
    %2887 = vmatprep.subr.mxu0 0.0
    %2888 = vmatpush1.msra.mxu0 %v2806
    %2889 = vmatprep.subr.mxu0 0.0
    %2890 = vmatpush1.msra.mxu0 %v2807
    %2891 = vmatprep.subr.mxu0 0.0
    %2892 = vmatpush1.msra.mxu0 %v2808
    %2893 = vmatprep.subr.mxu0 0.0
    %2894 = vmatpush1.msra.mxu0 %v2809
    %2895 = vmatprep.subr.mxu0 0.0
    %2896 = vmatpush1.msra.mxu0 %v2810
    %2897 = vmatprep.subr.mxu0 0.0
    %2898 = vmatpush1.msra.mxu0 %v2811
    %2899 = vmatprep.subr.mxu0 0.0
    %2900 = vmatpush1.msra.mxu0 %v2812
    %2901 = vmatprep.subr.mxu0 0.0
    %2902 = vmatpush1.msra.mxu0 %v2813
    %2903 = vmatprep.subr.mxu0 0.0
    %2904 = vmatpush1.msra.mxu0 %v2814
    %2905 = vmatprep.mubr.f32.mxu0 %v2838
    %2906 = vmatmul.mubr.f32.gmra.mrb[0].mxu0 %v2835
    %v2907 = vpop.f32.mrb[0].mxu0
    %v2908 = vadd.f32 %v2820, %v2907
    %v2909 = vpop.f32.mrb[0].mxu0
    %2910 = vdwg.mxu0
    %vm2911 = vcmask 76800
    %2912 = vst.msk [vmem:[#allocation2] sm:$0xf] %vm2911, %v2908
    // Predicated region
    $region26: #{textcnn_pallas.1} parent=1 // pred_check
      _
    $region27: #{textcnn_pallas.1} parent=1 // pred_check_branch
      %2914 = sbr.rel (0) target = $region29
    $region28: #{textcnn_pallas.1} parent=1 // pred_region
      %s2916 = ssub.s32 64, 64
      %2917 = vsyncadd [#allocation3], %s2916
      %s2919 = sshll.u32 [#allocation2], 4
      %s2920 = int_to_ptr.vmem [resolvable:$true] %s2919
      %2922 = dma.vmem_to_hbm [thread:$0]  %s2920, 64, %s6, [#allocation3]
    $region29: #{textcnn_pallas.1} parent=1 // pred_fallthru
      _
    // Predicated region
    $region30: #{textcnn_pallas.1} parent=1 // pred_check
      _
    $region31: #{textcnn_pallas.1} parent=1 // pred_check_branch
      %2924 = sbr.rel (0) target = $region33
    $region32: #{textcnn_pallas.1} parent=1 // pred_region
      %2925 = dma.done [#allocation3], 64
    $region33: #{textcnn_pallas.1} parent=1 // pred_fallthru
      _
    %2926 = vsyncpa [#allocation3], 1

</llo_original>
